<compile_context>
chip_gen: v5e
topology: v5e:2x2
jax: 0.10.0
libtpu: 0.0.40
codegen_flags: <defaults>
</compile_context>

<pallas_src>
import functools
import math

import jax
import jax.numpy as jnp
from jax import lax
from jax.experimental import pallas as pl
from jax.experimental.pallas import tpu as pltpu

# ---------------- tiny synthetic config (dataset: 'JapaneseVowels') ----------------
D_LLM = 128                     # llm_dim (real GPT-J: 4096)
N_HEADS = 4
HEAD_DIM = D_LLM // N_HEADS     # 32
ROTARY_DIM = 16                 # GPT-J applies rotary to the first rotary_dim dims
N_LAYERS = 2                    # real GPT-J: 28
MLP_DIM = 4 * D_LLM
VOCAB = 256
SPECIAL_TOKEN_ID = VOCAB - 1    # synthetic <|patch|> id

FEAT_DIM = 12                   # feat_dim_dict['JapaneseVowels']
MAX_LEN = 29                    # max_len_dict['JapaneseVowels']
NUM_CLASSES = 9                 # num_classes_dict['JapaneseVowels']
KERNEL_WIDTH = 3
STRIDE = 2
PADDING = 1
PATCH_NUM = (MAX_LEN + 2 * PADDING - KERNEL_WIDTH) // STRIDE + 1   # 15

LN_EPS = 1e-5
CLS_PAD = 128                   # padded classifier width -> lane-dense output store

# Rotary-coefficient-map trick (roll across lane boundaries) only holds when the
# rotary region is an even number of dims fully inside each head.
assert ROTARY_DIM % 2 == 0 and ROTARY_DIM <= HEAD_DIM and HEAD_DIM % 2 == 0


def _supports_fast_bf16_elementwise():
    """bf16 VALU/EUP exist on v6e/v7x; on v5e and older keep elementwise math in f32."""
    try:
        kind = jax.devices()[0].device_kind.lower()
    except Exception:
        return False
    return not any(tag in kind for tag in ("v2", "v3", "v4", "v5"))


# ============================ fused transformer kernel ==============================
def _fused_gptj_kernel(x_ref, g1_ref, b1_ref, wqkv_ref, wo_ref,
                       fci_w_ref, fci_b_ref, fco_w_ref, fco_b_ref,
                       cos_ref, sina_ref, sinb_ref,
                       gf_ref, bf_ref, clsw_ref, clsb_ref,
                       logits_ref, res_ref,
                       *, n_heads, head_dim, scale, eps, last_tok, use_bf16_gelu):
    """grid=(B, N_LAYERS): one GPT-J block per step; ln_f+classifier on the last step."""
    l = pl.program_id(1)
    n_layers = pl.num_programs(1)

    # Residual stream lives in VMEM scratch across the whole layer axis.
    @pl.when(l == 0)
    def _():
        res_ref[...] = x_ref[...]

    x = res_ref[...]                                       # [S, D] f32
    seq, d_model = x.shape

    # ---- ln_1 (f32 statistics) ----
    mu = jnp.mean(x, axis=-1, keepdims=True)
    xc = x - mu
    var = jnp.mean(xc * xc, axis=-1, keepdims=True)
    h = xc * lax.rsqrt(var + eps) * g1_ref[...] + b1_ref[...]
    h_bf = h.astype(jnp.bfloat16)

    # ---- Q/K/V: three separate dots (no 48-vreg f32 qkv slab), single bf16 casts ----
    q = jnp.dot(h_bf, wqkv_ref[:, 0 * d_model:1 * d_model],
                preferred_element_type=jnp.float32)
    k = jnp.dot(h_bf, wqkv_ref[:, 1 * d_model:2 * d_model],
                preferred_element_type=jnp.float32)
    v_bf = jnp.dot(h_bf, wqkv_ref[:, 2 * d_model:3 * d_model],
                   preferred_element_type=jnp.float32).astype(jnp.bfloat16)

    # ---- GPT-J interleaved (rotate_every_two) rotary via XLU rolls ----
    # out[2i]   = x[2i]*cos_i - x[2i+1]*sin_i ; out[2i+1] = x[2i+1]*cos_i + x[2i]*sin_i
    # cos / sin_a / sin_b are per-lane maps (identity outside rotary dims; sin_a zero on
    # odd lanes and sin_b zero on even lanes, so rolls never leak across heads).
    cos = cos_ref[...]
    sin_a = sina_ref[...]                                  # coefficient of x[l+1]
    sin_b = sinb_ref[...]                                  # coefficient of x[l-1]

    def rope(t):
        left = pltpu.roll(t, d_model - 1, axis=1)          # == roll(t, -1): t[l+1] at l
        right = pltpu.roll(t, 1, axis=1)                   # t[l-1] at l
        return t * cos + left * sin_a + right * sin_b

    # fold the 1/sqrt(head_dim) attention scale into q once (not per head)
    q_bf = (rope(q) * scale).astype(jnp.bfloat16)
    k_bf = rope(k).astype(jnp.bfloat16)

    # ---- causal attention; per head, accumulate (p@v)@w_o -> lane-dense, no concat ----
    row = lax.broadcasted_iota(jnp.int32, (seq, seq), 0)
    col = lax.broadcasted_iota(jnp.int32, (seq, seq), 1)
    causal = col <= row
    attn_out = jnp.zeros((seq, d_model), jnp.float32)
    for hh in range(n_heads):
        lo = hh * head_dim
        s = lax.dot_general(q_bf[:, lo:lo + head_dim], k_bf[:, lo:lo + head_dim],
                            (((1,), (1,)), ((), ())),
                            preferred_element_type=jnp.float32)
        s = jnp.where(causal, s, jnp.float32(-1e30))
        m = jnp.max(s, axis=-1, keepdims=True)
        p = jnp.exp(s - m)
        denom = jnp.sum(p, axis=-1, keepdims=True)
        p_bf = (p * pl.reciprocal(denom, approx=True)).astype(jnp.bfloat16)   # EUP slot
        ctx_h = jnp.dot(p_bf, v_bf[:, lo:lo + head_dim],
                        preferred_element_type=jnp.float32)                   # [S, hd]
        attn_out = attn_out + jnp.dot(ctx_h.astype(jnp.bfloat16),
                                      wo_ref[lo:lo + head_dim, :],
                                      preferred_element_type=jnp.float32)

    # ---- MLP: fc_in + NewGELU + fc_out (elementwise in bf16 on v6e/v7x) ----
    mh = jnp.dot(h_bf, fci_w_ref[...], preferred_element_type=jnp.float32) + fci_b_ref[...]
    if use_bf16_gelu:
        mh = mh.astype(jnp.bfloat16)
    g = 0.5 * mh * (1.0 + jnp.tanh(0.7978845608028654 * (mh + 0.044715 * (mh * mh * mh))))
    mlp_out = jnp.dot(g.astype(jnp.bfloat16), fco_w_ref[...],
                      preferred_element_type=jnp.float32) + fco_b_ref[...]

    # ---- GPT-J parallel residual ----
    new_x = x + attn_out + mlp_out
    res_ref[...] = new_x

    # ---- fused ln_f + classifier on the last REAL token, only at the last layer ----
    @pl.when(l == n_layers - 1)
    def _():
        xl = new_x[last_tok:last_tok + 1, :]               # [1, D]
        mu_f = jnp.mean(xl, axis=-1, keepdims=True)
        xcf = xl - mu_f
        var_f = jnp.mean(xcf * xcf, axis=-1, keepdims=True)
        hf = xcf * lax.rsqrt(var_f + eps) * gf_ref[...] + bf_ref[...]
        logits = jnp.dot(hf, clsw_ref[...],
                         preferred_element_type=jnp.float32) + clsb_ref[...]  # [1, CLS_PAD]
        logits_ref[...] = jnp.broadcast_to(logits, logits_ref.shape)


def gptj_stack(x, params, *, last_tok, use_bf16_gelu):
    """All GPT-J layers + ln_f + classifier in ONE pallas_call (grid=(B, N_LAYERS))."""
    # TODO(synk): at real GPT-J-6B shapes (D=4096, MLP=16384) per-layer weights exceed
    #             VMEM (96 MiB bf16 qkv alone > v7x's 64 MiB); the full-block weight
    #             specs below would need K/N tiling (extra reduction grid axis or
    #             emit_pipeline) plus an explicit vmem_limit_bytes.
    B, S, D = x.shape
    blk = params["blocks"]
    rot = params["rotary"]

    def lspec(shape):     # per-layer weight, stacked on a leading layer axis
        return pl.BlockSpec((None,) + shape,
                            lambda b, l, _s=shape: (l,) + (0,) * len(_s))

    def rep(shape):       # resident for the whole call
        return pl.BlockSpec(shape, lambda b, l, _n=len(shape): (0,) * _n)

    kernel = functools.partial(
        _fused_gptj_kernel, n_heads=N_HEADS, head_dim=HEAD_DIM,
        scale=1.0 / math.sqrt(HEAD_DIM), eps=LN_EPS,
        last_tok=last_tok, use_bf16_gelu=use_bf16_gelu)

    logits = pl.pallas_call(
        kernel,
        grid=(B, N_LAYERS),
        in_specs=[
            pl.BlockSpec((None, S, D), lambda b, l: (b, 0, 0)),   # inputs_embeds
            lspec((1, D)), lspec((1, D)),                         # ln_1 gamma / beta
            lspec((D, 3 * D)), lspec((D, D)),                     # w_qkv, w_o (bf16)
            lspec((D, MLP_DIM)), lspec((1, MLP_DIM)),             # fc_in w / b
            lspec((MLP_DIM, D)), lspec((1, D)),                   # fc_out w / b
            rep((S, D)), rep((S, D)), rep((S, D)),                # rotary cos/sin_a/sin_b
            rep((1, D)), rep((1, D)),                             # ln_f gamma / beta
            rep((D, CLS_PAD)), rep((1, CLS_PAD)),                 # classifier w / b
        ],
        out_specs=pl.BlockSpec((None, 8, CLS_PAD), lambda b, l: (b, 0, 0)),
        out_shape=jax.ShapeDtypeStruct((B, 8, CLS_PAD), jnp.float32),
        scratch_shapes=[pltpu.VMEM((S, D), jnp.float32)],          # residual stream
        compiler_params=pltpu.CompilerParams(
            dimension_semantics=("parallel", "arbitrary")),
    )(x, blk["ln1_g"], blk["ln1_b"], blk["w_qkv"], blk["w_o"],
      blk["fc_in_w"], blk["fc_in_b"], blk["fc_out_w"], blk["fc_out_b"],
      rot["cos"], rot["sin_a"], rot["sin_b"],
      params["lnf_g"].reshape(1, D), params["lnf_b"].reshape(1, D),
      params["cls_w_pad"], params["cls_b_pad"])
    return logits[:, 0, :]                                         # [B, CLS_PAD]


# ============================ model glue (plain JAX) ================================
def build_text_ids(patch_num, num_classes):
    # Synthetic stand-in for get_text_ids(): prefix tokens, then per patch a few text
    # tokens + one <|patch|> special token, then a suffix listing the classes.
    ids = [5, 17, 23, 9, 41, 2]
    for i in range(patch_num):
        ids += [7, (30 + i) % 200, 11, SPECIAL_TOKEN_ID]
    ids += [3, 19, 28, 4] + [(50 + c) % 200 for c in range(num_classes)] + [6, 8]
    times = list(range(1, patch_num + 1))
    return jnp.asarray(ids, jnp.int32), jnp.asarray(times, jnp.int32)


def im2col_1d(x, kw, stride, padding):
    # x: [B, L, M]; matches PyTorch Conv1d(M, D, kw, stride, padding) applied on [B, M, L].
    B, L, M = x.shape
    xp = jnp.pad(x, ((0, 0), (padding, padding), (0, 0)))
    P = (L + 2 * padding - kw) // stride + 1
    idx = jnp.arange(P)[:, None] * stride + jnp.arange(kw)[None, :]    # [P, kw]
    patches = xp[:, idx, :]                                            # [B, P, kw, M]
    # Conv1d weight flattening is (in_channel m, tap j) -> m*kw + j
    patches = jnp.transpose(patches, (0, 1, 3, 2)).reshape(B, P, M * kw)
    return patches


def make_rotary_coeffs(S, D, head_dim, rotary_dim):
    """Per-lane GPT-J interleaved-rotary coefficient maps.

    out = x * cos + roll(x, -1) * sin_a + roll(x, +1) * sin_b, identity outside the
    first `rotary_dim` dims of each head; sin_a is zero on odd lanes and sin_b zero on
    even lanes so the rolls never mix heads.
    """
    d = jnp.arange(D) % head_dim
    pair = (d // 2).astype(jnp.float32)
    inv_freq = 1.0 / (10000.0 ** (2.0 * pair / rotary_dim))
    pos = jnp.arange(S, dtype=jnp.float32)
    ang = pos[:, None] * inv_freq[None, :]                  # [S, D]
    in_rot = (d < rotary_dim)[None, :]
    is_even = (d % 2 == 0)[None, :]
    cos = jnp.where(in_rot, jnp.cos(ang), 1.0)
    sin = jnp.sin(ang)
    sin_a = jnp.where(in_rot & is_even, -sin, 0.0)          # multiplies x[l+1]
    sin_b = jnp.where(in_rot & (~is_even), sin, 0.0)        # multiplies x[l-1]
    return dict(cos=cos.astype(jnp.float32),
                sin_a=sin_a.astype(jnp.float32),
                sin_b=sin_b.astype(jnp.float32))


def model_forward(params, x_enc, x_mark_enc=None, x_dec=None, x_dec_mark=None,
                  *, use_bf16_gelu=False):
    B = x_enc.shape[0]
    text_ids = params["text_ids"]                              # [S]
    times = params["times"]                                    # [P]
    S = text_ids.shape[0]

    # word embeddings, zeroed at <|patch|> positions
    is_special = text_ids == SPECIAL_TOKEN_ID
    safe_ids = jnp.where(is_special, 0, text_ids)
    word_emb = params["emb"][safe_ids] * (~is_special)[:, None].astype(jnp.float32)  # [S, D]

    # ts_embedding: Conv1d patch embedding (im2col matmul) + positional embedding.
    # TODO(synk): DataEmbedding's exact definition is not in the reference snippet;
    #             implemented as Conv1d value-embedding + learned positional embedding
    #             (eval-mode dropout).  Tiny / unaligned, so left to XLA per review.
    patches = im2col_1d(x_enc, KERNEL_WIDTH, STRIDE, PADDING)                # [B, P, M*kw]
    P = patches.shape[1]
    ts_embed = (jnp.einsum("bpk,kd->bpd", patches, params["conv_w2"])
                + params["pos_emb"][times][None])                           # [B, P, D]

    # scatter ts_embed into the <|patch|> slots (row-major order == patch order)
    patch_idx = jnp.clip(jnp.cumsum(is_special.astype(jnp.int32)) - 1, 0, P - 1)   # [S]
    ts_at_pos = ts_embed[:, patch_idx, :]                                           # [B, S, D]
    inputs_embeds = jnp.where(is_special[None, :, None], ts_at_pos, word_emb[None])

    # Pad the sequence only to the next multiple of 8 (sublane granularity).  Padded
    # rows sit AFTER all real tokens, so the causal mask keeps them out of real rows,
    # and they are discarded before the classifier.
    S_pad = params["rotary"]["cos"].shape[0]
    x = jnp.pad(inputs_embeds, ((0, 0), (0, S_pad - S), (0, 0)))

    # All GPT-J layers + ln_f + classifier: one fused pallas_call.
    logits_pad = gptj_stack(x, params, last_tok=S - 1, use_bf16_gelu=use_bf16_gelu)
    return logits_pad[:, :NUM_CLASSES]


# ============================ deterministic params ==================================
def init_params(key):
    keys = list(jax.random.split(key, 64))
    it = iter(keys)

    def nrm(shape, scale=0.02):
        return scale * jax.random.normal(next(it), shape, dtype=jnp.float32)

    text_ids, times = build_text_ids(PATCH_NUM, NUM_CLASSES)
    S = int(text_ids.shape[0])
    S_pad = ((S + 7) // 8) * 8

    cls_w = nrm((D_LLM, NUM_CLASSES))
    cls_b = jnp.zeros((NUM_CLASSES,), jnp.float32)
    conv_w = nrm((D_LLM, FEAT_DIM, KERNEL_WIDTH))           # Conv1d weight [D, M, kw]

    params = {
        "text_ids": text_ids,
        "times": times,
        "emb": nrm((VOCAB, D_LLM)),
        # Conv1d weight flattened to matmul form [M*kw, D]
        "conv_w2": conv_w.transpose(1, 2, 0).reshape(FEAT_DIM * KERNEL_WIDTH, D_LLM),
        "pos_emb": nrm((PATCH_NUM + 2, D_LLM)),
        "lnf_g": jnp.ones((D_LLM,), jnp.float32),
        "lnf_b": jnp.zeros((D_LLM,), jnp.float32),
        # classifier padded to 128 output columns for a lane-dense Pallas store
        "cls_w_pad": jnp.pad(cls_w, ((0, 0), (0, CLS_PAD - NUM_CLASSES))),
        "cls_b_pad": jnp.pad(cls_b, (0, CLS_PAD - NUM_CLASSES)).reshape(1, CLS_PAD),
        "rotary": make_rotary_coeffs(S_pad, D_LLM, HEAD_DIM, ROTARY_DIM),
    }
    # Per-layer weights stacked on a leading layer axis (streamed per grid step).
    L = N_LAYERS
    params["blocks"] = dict(
        ln1_g=jnp.ones((L, 1, D_LLM), jnp.float32),
        ln1_b=jnp.zeros((L, 1, D_LLM), jnp.float32),
        w_qkv=nrm((L, D_LLM, 3 * D_LLM)).astype(jnp.bfloat16),
        w_o=nrm((L, D_LLM, D_LLM)).astype(jnp.bfloat16),
        fc_in_w=nrm((L, D_LLM, MLP_DIM)).astype(jnp.bfloat16),
        fc_in_b=jnp.zeros((L, 1, MLP_DIM), jnp.float32),
        fc_out_w=nrm((L, MLP_DIM, D_LLM)).astype(jnp.bfloat16),
        fc_out_b=jnp.zeros((L, 1, D_LLM), jnp.float32),
    )
    return params


if __name__ == "__main__":
    key = jax.random.PRNGKey(0)
    pkey, xkey = jax.random.split(key)
    params = init_params(pkey)

    B = 2
    x_enc = jax.random.normal(xkey, (B, MAX_LEN, FEAT_DIM), dtype=jnp.float32)
    x_mark_enc = jnp.zeros((B, MAX_LEN, 1), jnp.float32)    # unused (as in the PyTorch forward)
    x_dec = jnp.zeros((B, 1, FEAT_DIM), jnp.float32)        # unused
    x_dec_mark = jnp.zeros((B, 1, 1), jnp.float32)          # unused

    fwd = jax.jit(functools.partial(model_forward,
                                    use_bf16_gelu=_supports_fast_bf16_elementwise()))
    pred = fwd(params, x_enc, x_mark_enc, x_dec, x_dec_mark)
    jax.block_until_ready(pred)
    assert pred.shape == (B, NUM_CLASSES) and pred.dtype == jnp.float32
    assert bool(jnp.all(jnp.isfinite(pred)))
    print("KERNEL_OK")
</pallas_src>

<mosaic_0001>
module attributes {stable_mosaic.version = 11 : i64} {
  func.func @_fused_gptj_kernel(%arg0: i32, %arg1: i32, %arg2: memref<1x88x128xf32, #tpu.memory_space<vmem>>, %arg3: memref<1x1x128xf32, #tpu.memory_space<vmem>>, %arg4: memref<1x1x128xf32, #tpu.memory_space<vmem>>, %arg5: memref<1x128x384xbf16, #tpu.memory_space<vmem>>, %arg6: memref<1x128x128xbf16, #tpu.memory_space<vmem>>, %arg7: memref<1x128x512xbf16, #tpu.memory_space<vmem>>, %arg8: memref<1x1x512xf32, #tpu.memory_space<vmem>>, %arg9: memref<1x512x128xbf16, #tpu.memory_space<vmem>>, %arg10: memref<1x1x128xf32, #tpu.memory_space<vmem>>, %arg11: memref<88x128xf32, #tpu.memory_space<vmem>>, %arg12: memref<88x128xf32, #tpu.memory_space<vmem>>, %arg13: memref<88x128xf32, #tpu.memory_space<vmem>>, %arg14: memref<1x128xf32, #tpu.memory_space<vmem>>, %arg15: memref<1x128xf32, #tpu.memory_space<vmem>>, %arg16: memref<128x128xf32, #tpu.memory_space<vmem>>, %arg17: memref<1x128xf32, #tpu.memory_space<vmem>>, %arg18: memref<1x8x128xf32, #tpu.memory_space<vmem>>, %arg19: memref<88x128xf32, #tpu.memory_space<vmem>>) attributes {dimension_semantics = [#tpu.dimension_semantics<parallel>, #tpu.dimension_semantics<arbitrary>], iteration_bounds = array<i64: 2, 2>, scalar_prefetch = 0 : i64, scratch_operands = 1 : i64, tpu.core_type = #tpu.core_type<tc>, window_params = [{transform_indices = @transform_0, window_bounds = array<i64: 1, 88, 128>}, {transform_indices = @transform_1, window_bounds = array<i64: 1, 1, 128>}, {transform_indices = @transform_2, window_bounds = array<i64: 1, 1, 128>}, {transform_indices = @transform_3, window_bounds = array<i64: 1, 128, 384>}, {transform_indices = @transform_4, window_bounds = array<i64: 1, 128, 128>}, {transform_indices = @transform_5, window_bounds = array<i64: 1, 128, 512>}, {transform_indices = @transform_6, window_bounds = array<i64: 1, 1, 512>}, {transform_indices = @transform_7, window_bounds = array<i64: 1, 512, 128>}, {transform_indices = @transform_8, window_bounds = array<i64: 1, 1, 128>}, {pipeline_mode = #tpu.pipeline_mode<synchronous>, transform_indices = @transform_9, window_bounds = array<i64: 88, 128>}, {pipeline_mode = #tpu.pipeline_mode<synchronous>, transform_indices = @transform_10, window_bounds = array<i64: 88, 128>}, {pipeline_mode = #tpu.pipeline_mode<synchronous>, transform_indices = @transform_11, window_bounds = array<i64: 88, 128>}, {pipeline_mode = #tpu.pipeline_mode<synchronous>, transform_indices = @transform_12, window_bounds = array<i64: 1, 128>}, {pipeline_mode = #tpu.pipeline_mode<synchronous>, transform_indices = @transform_13, window_bounds = array<i64: 1, 128>}, {pipeline_mode = #tpu.pipeline_mode<synchronous>, transform_indices = @transform_14, window_bounds = array<i64: 128, 128>}, {pipeline_mode = #tpu.pipeline_mode<synchronous>, transform_indices = @transform_15, window_bounds = array<i64: 1, 128>}, {transform_indices = @transform_16, window_bounds = array<i64: 1, 8, 128>}]} {
    %c0_i32 = arith.constant 0 : i32
    %0 = arith.cmpi eq, %arg1, %c0_i32 : i32
    %1 = arith.extui %0 : i1 to i32
    %c0_i32_0 = arith.constant 0 : i32
    %2 = arith.cmpi ne, %1, %c0_i32_0 : i32
    scf.if %2 {
      %c0_87 = arith.constant 0 : index
      %c0_88 = arith.constant 0 : index
      %c0_89 = arith.constant 0 : index
      %190 = vector.load %arg2[%c0_87, %c0_88, %c0_89] : memref<1x88x128xf32, #tpu.memory_space<vmem>>, vector<1x88x128xf32>
      %191 = vector.shape_cast %190 : vector<1x88x128xf32> to vector<88x128xf32>
      %c0_90 = arith.constant 0 : index
      %c0_91 = arith.constant 0 : index
      %192 = vector.load %arg19[%c0_90, %c0_91] : memref<88x128xf32, #tpu.memory_space<vmem>>, vector<88x128xf32>
      tpu.vector_store %arg19[%c0_90, %c0_91], %191 {strides = array<i32>} : memref<88x128xf32, #tpu.memory_space<vmem>>, vector<88x128xf32>,
    } else {
    }
    %c0 = arith.constant 0 : index
    %c0_1 = arith.constant 0 : index
    %3 = vector.load %arg19[%c0, %c0_1] : memref<88x128xf32, #tpu.memory_space<vmem>>, vector<88x128xf32>
    %cst = arith.constant dense<0.000000e+00> : vector<88xf32>
    %4 = vector.multi_reduction <add>, %3, %cst [1] : vector<88x128xf32> to vector<88xf32>
    %5 = vector.shape_cast %4 : vector<88xf32> to vector<88x1xf32>
    %cst_2 = arith.constant 1.280000e+02 : f32
    %6 = vector.broadcast %cst_2 : f32 to vector<88x1xf32>
    %7 = arith.divf %5, %6 : vector<88x1xf32>
    %8 = vector.broadcast %7 : vector<88x1xf32> to vector<88x128xf32>
    %9 = arith.subf %3, %8 : vector<88x128xf32>
    %10 = arith.mulf %9, %9 : vector<88x128xf32>
    %cst_3 = arith.constant dense<0.000000e+00> : vector<88xf32>
    %11 = vector.multi_reduction <add>, %10, %cst_3 [1] : vector<88x128xf32> to vector<88xf32>
    %12 = vector.shape_cast %11 : vector<88xf32> to vector<88x1xf32>
    %cst_4 = arith.constant 1.280000e+02 : f32
    %13 = vector.broadcast %cst_4 : f32 to vector<88x1xf32>
    %14 = arith.divf %12, %13 : vector<88x1xf32>
    %cst_5 = arith.constant 9.99999974E-6 : f32
    %15 = vector.broadcast %cst_5 : f32 to vector<88x1xf32>
    %16 = arith.addf %14, %15 : vector<88x1xf32>
    %17 = math.rsqrt %16 : vector<88x1xf32>
    %18 = vector.broadcast %17 : vector<88x1xf32> to vector<88x128xf32>
    %19 = arith.mulf %9, %18 : vector<88x128xf32>
    %c0_6 = arith.constant 0 : index
    %c0_7 = arith.constant 0 : index
    %c0_8 = arith.constant 0 : index
    %20 = vector.load %arg3[%c0_6, %c0_7, %c0_8] : memref<1x1x128xf32, #tpu.memory_space<vmem>>, vector<1x1x128xf32>
    %21 = vector.shape_cast %20 : vector<1x1x128xf32> to vector<1x128xf32>
    %22 = vector.broadcast %21 : vector<1x128xf32> to vector<88x128xf32>
    %23 = arith.mulf %19, %22 : vector<88x128xf32>
    %c0_9 = arith.constant 0 : index
    %c0_10 = arith.constant 0 : index
    %c0_11 = arith.constant 0 : index
    %24 = vector.load %arg4[%c0_9, %c0_10, %c0_11] : memref<1x1x128xf32, #tpu.memory_space<vmem>>, vector<1x1x128xf32>
    %25 = vector.shape_cast %24 : vector<1x1x128xf32> to vector<1x128xf32>
    %26 = vector.broadcast %25 : vector<1x128xf32> to vector<88x128xf32>
    %27 = arith.addf %23, %26 : vector<88x128xf32>
    %28 = arith.truncf %27 : vector<88x128xf32> to vector<88x128xbf16>
    %c0_12 = arith.constant 0 : index
    %c0_13 = arith.constant 0 : index
    %c0_14 = arith.constant 0 : index
    %29 = vector.load %arg5[%c0_12, %c0_13, %c0_14] : memref<1x128x384xbf16, #tpu.memory_space<vmem>>, vector<1x128x128xbf16>
    %30 = vector.shape_cast %29 : vector<1x128x128xbf16> to vector<128x128xbf16>
    %cst_15 = arith.constant dense<0.000000e+00> : vector<88x128xf32>
    %31 = tpu.matmul %28, %30, %cst_15 {dimension_numbers = #tpu.dot_dimension_numbers<[1], [0], [0], [1], [0, 0, 1, 1], [], []>} : vector<88x128xbf16>, vector<128x128xbf16>, vector<88x128xf32> -> vector<88x128xf32>
    %c0_16 = arith.constant 0 : index
    %c0_17 = arith.constant 0 : index
    %c128 = arith.constant 128 : index
    %32 = vector.load %arg5[%c0_16, %c0_17, %c128] : memref<1x128x384xbf16, #tpu.memory_space<vmem>>, vector<1x128x128xbf16>
    %33 = vector.shape_cast %32 : vector<1x128x128xbf16> to vector<128x128xbf16>
    %cst_18 = arith.constant dense<0.000000e+00> : vector<88x128xf32>
    %34 = tpu.matmul %28, %33, %cst_18 {dimension_numbers = #tpu.dot_dimension_numbers<[1], [0], [0], [1], [0, 0, 1, 1], [], []>} : vector<88x128xbf16>, vector<128x128xbf16>, vector<88x128xf32> -> vector<88x128xf32>
    %c0_19 = arith.constant 0 : index
    %c0_20 = arith.constant 0 : index
    %c256 = arith.constant 256 : index
    %35 = vector.load %arg5[%c0_19, %c0_20, %c256] : memref<1x128x384xbf16, #tpu.memory_space<vmem>>, vector<1x128x128xbf16>
    %36 = vector.shape_cast %35 : vector<1x128x128xbf16> to vector<128x128xbf16>
    %cst_21 = arith.constant dense<0.000000e+00> : vector<88x128xf32>
    %37 = tpu.matmul %28, %36, %cst_21 {dimension_numbers = #tpu.dot_dimension_numbers<[1], [0], [0], [1], [0, 0, 1, 1], [], []>} : vector<88x128xbf16>, vector<128x128xbf16>, vector<88x128xf32> -> vector<88x128xf32>
    %38 = arith.truncf %37 : vector<88x128xf32> to vector<88x128xbf16>
    %c0_22 = arith.constant 0 : index
    %c0_23 = arith.constant 0 : index
    %39 = vector.load %arg11[%c0_22, %c0_23] : memref<88x128xf32, #tpu.memory_space<vmem>>, vector<88x128xf32>
    %c0_24 = arith.constant 0 : index
    %c0_25 = arith.constant 0 : index
    %40 = vector.load %arg12[%c0_24, %c0_25] : memref<88x128xf32, #tpu.memory_space<vmem>>, vector<88x128xf32>
    %c0_26 = arith.constant 0 : index
    %c0_27 = arith.constant 0 : index
    %41 = vector.load %arg13[%c0_26, %c0_27] : memref<88x128xf32, #tpu.memory_space<vmem>>, vector<88x128xf32>
    %c127_i32 = arith.constant 127 : i32
    %42 = tpu.dynamic_rotate %31 by %c127_i32 dim 1 : vector<88x128xf32>, i32 -> vector<88x128xf32>
    %c1_i32 = arith.constant 1 : i32
    %43 = tpu.dynamic_rotate %31 by %c1_i32 dim 1 : vector<88x128xf32>, i32 -> vector<88x128xf32>
    %44 = arith.mulf %31, %39 : vector<88x128xf32>
    %45 = arith.mulf %42, %40 : vector<88x128xf32>
    %46 = arith.addf %44, %45 : vector<88x128xf32>
    %47 = arith.mulf %43, %41 : vector<88x128xf32>
    %48 = arith.addf %46, %47 : vector<88x128xf32>
    %cst_28 = arith.constant 0.176776692 : f32
    %49 = vector.broadcast %cst_28 : f32 to vector<88x128xf32>
    %50 = arith.mulf %48, %49 : vector<88x128xf32>
    %51 = arith.truncf %50 : vector<88x128xf32> to vector<88x128xbf16>
    %c127_i32_29 = arith.constant 127 : i32
    %52 = tpu.dynamic_rotate %34 by %c127_i32_29 dim 1 : vector<88x128xf32>, i32 -> vector<88x128xf32>
    %c1_i32_30 = arith.constant 1 : i32
    %53 = tpu.dynamic_rotate %34 by %c1_i32_30 dim 1 : vector<88x128xf32>, i32 -> vector<88x128xf32>
    %54 = arith.mulf %34, %39 : vector<88x128xf32>
    %55 = arith.mulf %52, %40 : vector<88x128xf32>
    %56 = arith.addf %54, %55 : vector<88x128xf32>
    %57 = arith.mulf %53, %41 : vector<88x128xf32>
    %58 = arith.addf %56, %57 : vector<88x128xf32>
    %59 = arith.truncf %58 : vector<88x128xf32> to vector<88x128xbf16>
    %60 = tpu.iota {dimensions = array<i32: 0>} : vector<88x88xi32>
    %61 = tpu.iota {dimensions = array<i32: 1>} : vector<88x88xi32>
    %62 = arith.cmpi sle, %61, %60 : vector<88x88xi32>
    %cst_31 = arith.constant 0.000000e+00 : f32
    %63 = vector.broadcast %cst_31 : f32 to vector<88x128xf32>
    %64 = vector.extract_strided_slice %51 {offsets = [0, 0], sizes = [88, 32], strides = [1, 1]} : vector<88x128xbf16> to vector<88x32xbf16>
    %65 = vector.extract_strided_slice %59 {offsets = [0, 0], sizes = [88, 32], strides = [1, 1]} : vector<88x128xbf16> to vector<88x32xbf16>
    %cst_32 = arith.constant dense<0.000000e+00> : vector<88x88xf32>
    %66 = tpu.matmul %64, %65, %cst_32 {dimension_numbers = #tpu.dot_dimension_numbers<[1], [1], [0], [0], [0, 0, 1, 0], [], []>} : vector<88x32xbf16>, vector<88x32xbf16>, vector<88x88xf32> -> vector<88x88xf32>
    %cst_33 = arith.constant -1.000000e+30 : f32
    %67 = vector.broadcast %cst_33 : f32 to vector<88x88xf32>
    %68 = arith.select %62, %66, %67 : vector<88x88xi1>, vector<88x88xf32>
    %cst_34 = arith.constant dense<0xFF800000> : vector<88xf32>
    %69 = vector.multi_reduction <maximumf>, %68, %cst_34 [1] : vector<88x88xf32> to vector<88xf32>
    %70 = vector.shape_cast %69 : vector<88xf32> to vector<88x1xf32>
    %71 = vector.broadcast %70 : vector<88x1xf32> to vector<88x88xf32>
    %72 = arith.subf %68, %71 : vector<88x88xf32>
    %73 = math.exp %72 : vector<88x88xf32>
    %cst_35 = arith.constant dense<0.000000e+00> : vector<88xf32>
    %74 = vector.multi_reduction <add>, %73, %cst_35 [1] : vector<88x88xf32> to vector<88xf32>
    %75 = vector.shape_cast %74 : vector<88xf32> to vector<88x1xf32>
    %76 = tpu.reciprocal %75 {approx = true} : vector<88x1xf32> -> vector<88x1xf32>
    %77 = vector.broadcast %76 : vector<88x1xf32> to vector<88x88xf32>
    %78 = arith.mulf %73, %77 : vector<88x88xf32>
    %79 = arith.truncf %78 : vector<88x88xf32> to vector<88x88xbf16>
    %80 = vector.extract_strided_slice %38 {offsets = [0, 0], sizes = [88, 32], strides = [1, 1]} : vector<88x128xbf16> to vector<88x32xbf16>
    %cst_36 = arith.constant dense<0.000000e+00> : vector<88x32xf32>
    %81 = tpu.matmul %79, %80, %cst_36 {dimension_numbers = #tpu.dot_dimension_numbers<[1], [0], [0], [1], [0, 0, 1, 1], [], []>} : vector<88x88xbf16>, vector<88x32xbf16>, vector<88x32xf32> -> vector<88x32xf32>
    %82 = arith.truncf %81 : vector<88x32xf32> to vector<88x32xbf16>
    %c0_37 = arith.constant 0 : index
    %c0_38 = arith.constant 0 : index
    %c0_39 = arith.constant 0 : index
    %83 = vector.load %arg6[%c0_37, %c0_38, %c0_39] : memref<1x128x128xbf16, #tpu.memory_space<vmem>>, vector<1x32x128xbf16>
    %84 = vector.shape_cast %83 : vector<1x32x128xbf16> to vector<32x128xbf16>
    %cst_40 = arith.constant dense<0.000000e+00> : vector<88x128xf32>
    %85 = tpu.matmul %82, %84, %cst_40 {dimension_numbers = #tpu.dot_dimension_numbers<[1], [0], [0], [1], [0, 0, 1, 1], [], []>} : vector<88x32xbf16>, vector<32x128xbf16>, vector<88x128xf32> -> vector<88x128xf32>
    %86 = arith.addf %63, %85 : vector<88x128xf32>
    %87 = vector.extract_strided_slice %51 {offsets = [0, 32], sizes = [88, 32], strides = [1, 1]} : vector<88x128xbf16> to vector<88x32xbf16>
    %88 = vector.extract_strided_slice %59 {offsets = [0, 32], sizes = [88, 32], strides = [1, 1]} : vector<88x128xbf16> to vector<88x32xbf16>
    %cst_41 = arith.constant dense<0.000000e+00> : vector<88x88xf32>
    %89 = tpu.matmul %87, %88, %cst_41 {dimension_numbers = #tpu.dot_dimension_numbers<[1], [1], [0], [0], [0, 0, 1, 0], [], []>} : vector<88x32xbf16>, vector<88x32xbf16>, vector<88x88xf32> -> vector<88x88xf32>
    %cst_42 = arith.constant -1.000000e+30 : f32
    %90 = vector.broadcast %cst_42 : f32 to vector<88x88xf32>
    %91 = arith.select %62, %89, %90 : vector<88x88xi1>, vector<88x88xf32>
    %cst_43 = arith.constant dense<0xFF800000> : vector<88xf32>
    %92 = vector.multi_reduction <maximumf>, %91, %cst_43 [1] : vector<88x88xf32> to vector<88xf32>
    %93 = vector.shape_cast %92 : vector<88xf32> to vector<88x1xf32>
    %94 = vector.broadcast %93 : vector<88x1xf32> to vector<88x88xf32>
    %95 = arith.subf %91, %94 : vector<88x88xf32>
    %96 = math.exp %95 : vector<88x88xf32>
    %cst_44 = arith.constant dense<0.000000e+00> : vector<88xf32>
    %97 = vector.multi_reduction <add>, %96, %cst_44 [1] : vector<88x88xf32> to vector<88xf32>
    %98 = vector.shape_cast %97 : vector<88xf32> to vector<88x1xf32>
    %99 = tpu.reciprocal %98 {approx = true} : vector<88x1xf32> -> vector<88x1xf32>
    %100 = vector.broadcast %99 : vector<88x1xf32> to vector<88x88xf32>
    %101 = arith.mulf %96, %100 : vector<88x88xf32>
    %102 = arith.truncf %101 : vector<88x88xf32> to vector<88x88xbf16>
    %103 = vector.extract_strided_slice %38 {offsets = [0, 32], sizes = [88, 32], strides = [1, 1]} : vector<88x128xbf16> to vector<88x32xbf16>
    %cst_45 = arith.constant dense<0.000000e+00> : vector<88x32xf32>
    %104 = tpu.matmul %102, %103, %cst_45 {dimension_numbers = #tpu.dot_dimension_numbers<[1], [0], [0], [1], [0, 0, 1, 1], [], []>} : vector<88x88xbf16>, vector<88x32xbf16>, vector<88x32xf32> -> vector<88x32xf32>
    %105 = arith.truncf %104 : vector<88x32xf32> to vector<88x32xbf16>
    %c0_46 = arith.constant 0 : index
    %c32 = arith.constant 32 : index
    %c0_47 = arith.constant 0 : index
    %106 = vector.load %arg6[%c0_46, %c32, %c0_47] : memref<1x128x128xbf16, #tpu.memory_space<vmem>>, vector<1x32x128xbf16>
    %107 = vector.shape_cast %106 : vector<1x32x128xbf16> to vector<32x128xbf16>
    %cst_48 = arith.constant dense<0.000000e+00> : vector<88x128xf32>
    %108 = tpu.matmul %105, %107, %cst_48 {dimension_numbers = #tpu.dot_dimension_numbers<[1], [0], [0], [1], [0, 0, 1, 1], [], []>} : vector<88x32xbf16>, vector<32x128xbf16>, vector<88x128xf32> -> vector<88x128xf32>
    %109 = arith.addf %86, %108 : vector<88x128xf32>
    %110 = vector.extract_strided_slice %51 {offsets = [0, 64], sizes = [88, 32], strides = [1, 1]} : vector<88x128xbf16> to vector<88x32xbf16>
    %111 = vector.extract_strided_slice %59 {offsets = [0, 64], sizes = [88, 32], strides = [1, 1]} : vector<88x128xbf16> to vector<88x32xbf16>
    %cst_49 = arith.constant dense<0.000000e+00> : vector<88x88xf32>
    %112 = tpu.matmul %110, %111, %cst_49 {dimension_numbers = #tpu.dot_dimension_numbers<[1], [1], [0], [0], [0, 0, 1, 0], [], []>} : vector<88x32xbf16>, vector<88x32xbf16>, vector<88x88xf32> -> vector<88x88xf32>
    %cst_50 = arith.constant -1.000000e+30 : f32
    %113 = vector.broadcast %cst_50 : f32 to vector<88x88xf32>
    %114 = arith.select %62, %112, %113 : vector<88x88xi1>, vector<88x88xf32>
    %cst_51 = arith.constant dense<0xFF800000> : vector<88xf32>
    %115 = vector.multi_reduction <maximumf>, %114, %cst_51 [1] : vector<88x88xf32> to vector<88xf32>
    %116 = vector.shape_cast %115 : vector<88xf32> to vector<88x1xf32>
    %117 = vector.broadcast %116 : vector<88x1xf32> to vector<88x88xf32>
    %118 = arith.subf %114, %117 : vector<88x88xf32>
    %119 = math.exp %118 : vector<88x88xf32>
    %cst_52 = arith.constant dense<0.000000e+00> : vector<88xf32>
    %120 = vector.multi_reduction <add>, %119, %cst_52 [1] : vector<88x88xf32> to vector<88xf32>
    %121 = vector.shape_cast %120 : vector<88xf32> to vector<88x1xf32>
    %122 = tpu.reciprocal %121 {approx = true} : vector<88x1xf32> -> vector<88x1xf32>
    %123 = vector.broadcast %122 : vector<88x1xf32> to vector<88x88xf32>
    %124 = arith.mulf %119, %123 : vector<88x88xf32>
    %125 = arith.truncf %124 : vector<88x88xf32> to vector<88x88xbf16>
    %126 = vector.extract_strided_slice %38 {offsets = [0, 64], sizes = [88, 32], strides = [1, 1]} : vector<88x128xbf16> to vector<88x32xbf16>
    %cst_53 = arith.constant dense<0.000000e+00> : vector<88x32xf32>
    %127 = tpu.matmul %125, %126, %cst_53 {dimension_numbers = #tpu.dot_dimension_numbers<[1], [0], [0], [1], [0, 0, 1, 1], [], []>} : vector<88x88xbf16>, vector<88x32xbf16>, vector<88x32xf32> -> vector<88x32xf32>
    %128 = arith.truncf %127 : vector<88x32xf32> to vector<88x32xbf16>
    %c0_54 = arith.constant 0 : index
    %c64 = arith.constant 64 : index
    %c0_55 = arith.constant 0 : index
    %129 = vector.load %arg6[%c0_54, %c64, %c0_55] : memref<1x128x128xbf16, #tpu.memory_space<vmem>>, vector<1x32x128xbf16>
    %130 = vector.shape_cast %129 : vector<1x32x128xbf16> to vector<32x128xbf16>
    %cst_56 = arith.constant dense<0.000000e+00> : vector<88x128xf32>
    %131 = tpu.matmul %128, %130, %cst_56 {dimension_numbers = #tpu.dot_dimension_numbers<[1], [0], [0], [1], [0, 0, 1, 1], [], []>} : vector<88x32xbf16>, vector<32x128xbf16>, vector<88x128xf32> -> vector<88x128xf32>
    %132 = arith.addf %109, %131 : vector<88x128xf32>
    %133 = vector.extract_strided_slice %51 {offsets = [0, 96], sizes = [88, 32], strides = [1, 1]} : vector<88x128xbf16> to vector<88x32xbf16>
    %134 = vector.extract_strided_slice %59 {offsets = [0, 96], sizes = [88, 32], strides = [1, 1]} : vector<88x128xbf16> to vector<88x32xbf16>
    %cst_57 = arith.constant dense<0.000000e+00> : vector<88x88xf32>
    %135 = tpu.matmul %133, %134, %cst_57 {dimension_numbers = #tpu.dot_dimension_numbers<[1], [1], [0], [0], [0, 0, 1, 0], [], []>} : vector<88x32xbf16>, vector<88x32xbf16>, vector<88x88xf32> -> vector<88x88xf32>
    %cst_58 = arith.constant -1.000000e+30 : f32
    %136 = vector.broadcast %cst_58 : f32 to vector<88x88xf32>
    %137 = arith.select %62, %135, %136 : vector<88x88xi1>, vector<88x88xf32>
    %cst_59 = arith.constant dense<0xFF800000> : vector<88xf32>
    %138 = vector.multi_reduction <maximumf>, %137, %cst_59 [1] : vector<88x88xf32> to vector<88xf32>
    %139 = vector.shape_cast %138 : vector<88xf32> to vector<88x1xf32>
    %140 = vector.broadcast %139 : vector<88x1xf32> to vector<88x88xf32>
    %141 = arith.subf %137, %140 : vector<88x88xf32>
    %142 = math.exp %141 : vector<88x88xf32>
    %cst_60 = arith.constant dense<0.000000e+00> : vector<88xf32>
    %143 = vector.multi_reduction <add>, %142, %cst_60 [1] : vector<88x88xf32> to vector<88xf32>
    %144 = vector.shape_cast %143 : vector<88xf32> to vector<88x1xf32>
    %145 = tpu.reciprocal %144 {approx = true} : vector<88x1xf32> -> vector<88x1xf32>
    %146 = vector.broadcast %145 : vector<88x1xf32> to vector<88x88xf32>
    %147 = arith.mulf %142, %146 : vector<88x88xf32>
    %148 = arith.truncf %147 : vector<88x88xf32> to vector<88x88xbf16>
    %149 = vector.extract_strided_slice %38 {offsets = [0, 96], sizes = [88, 32], strides = [1, 1]} : vector<88x128xbf16> to vector<88x32xbf16>
    %cst_61 = arith.constant dense<0.000000e+00> : vector<88x32xf32>
    %150 = tpu.matmul %148, %149, %cst_61 {dimension_numbers = #tpu.dot_dimension_numbers<[1], [0], [0], [1], [0, 0, 1, 1], [], []>} : vector<88x88xbf16>, vector<88x32xbf16>, vector<88x32xf32> -> vector<88x32xf32>
    %151 = arith.truncf %150 : vector<88x32xf32> to vector<88x32xbf16>
    %c0_62 = arith.constant 0 : index
    %c96 = arith.constant 96 : index
    %c0_63 = arith.constant 0 : index
    %152 = vector.load %arg6[%c0_62, %c96, %c0_63] : memref<1x128x128xbf16, #tpu.memory_space<vmem>>, vector<1x32x128xbf16>
    %153 = vector.shape_cast %152 : vector<1x32x128xbf16> to vector<32x128xbf16>
    %cst_64 = arith.constant dense<0.000000e+00> : vector<88x128xf32>
    %154 = tpu.matmul %151, %153, %cst_64 {dimension_numbers = #tpu.dot_dimension_numbers<[1], [0], [0], [1], [0, 0, 1, 1], [], []>} : vector<88x32xbf16>, vector<32x128xbf16>, vector<88x128xf32> -> vector<88x128xf32>
    %155 = arith.addf %132, %154 : vector<88x128xf32>
    %c0_65 = arith.constant 0 : index
    %c0_66 = arith.constant 0 : index
    %c0_67 = arith.constant 0 : index
    %156 = vector.load %arg7[%c0_65, %c0_66, %c0_67] : memref<1x128x512xbf16, #tpu.memory_space<vmem>>, vector<1x128x512xbf16>
    %157 = vector.shape_cast %156 : vector<1x128x512xbf16> to vector<128x512xbf16>
    %cst_68 = arith.constant dense<0.000000e+00> : vector<88x512xf32>
    %158 = tpu.matmul %28, %157, %cst_68 {dimension_numbers = #tpu.dot_dimension_numbers<[1], [0], [0], [1], [0, 0, 1, 1], [], []>} : vector<88x128xbf16>, vector<128x512xbf16>, vector<88x512xf32> -> vector<88x512xf32>
    %c0_69 = arith.constant 0 : index
    %c0_70 = arith.constant 0 : index
    %c0_71 = arith.constant 0 : index
    %159 = vector.load %arg8[%c0_69, %c0_70, %c0_71] : memref<1x1x512xf32, #tpu.memory_space<vmem>>, vector<1x1x512xf32>
    %160 = vector.shape_cast %159 : vector<1x1x512xf32> to vector<1x512xf32>
    %161 = vector.broadcast %160 : vector<1x512xf32> to vector<88x512xf32>
    %162 = arith.addf %158, %161 : vector<88x512xf32>
    %163 = arith.truncf %162 : vector<88x512xf32> to vector<88x512xbf16>
    %cst_72 = arith.constant 5.000000e-01 : bf16
    %164 = vector.broadcast %cst_72 : bf16 to vector<88x512xbf16>
    %165 = arith.mulf %164, %163 : vector<88x512xbf16>
    %166 = arith.mulf %163, %163 : vector<88x512xbf16>
    %167 = arith.mulf %166, %163 : vector<88x512xbf16>
    %cst_73 = arith.constant 4.467770e-02 : bf16
    %168 = vector.broadcast %cst_73 : bf16 to vector<88x512xbf16>
    %169 = arith.mulf %168, %167 : vector<88x512xbf16>
    %170 = arith.addf %163, %169 : vector<88x512xbf16>
    %cst_74 = arith.constant 7.968750e-01 : bf16
    %171 = vector.broadcast %cst_74 : bf16 to vector<88x512xbf16>
    %172 = arith.mulf %171, %170 : vector<88x512xbf16>
    %173 = math.tanh %172 : vector<88x512xbf16>
    %cst_75 = arith.constant 1.000000e+00 : bf16
    %174 = vector.broadcast %cst_75 : bf16 to vector<88x512xbf16>
    %175 = arith.addf %174, %173 : vector<88x512xbf16>
    %176 = arith.mulf %165, %175 : vector<88x512xbf16>
    %c0_76 = arith.constant 0 : index
    %c0_77 = arith.constant 0 : index
    %c0_78 = arith.constant 0 : index
    %177 = vector.load %arg9[%c0_76, %c0_77, %c0_78] : memref<1x512x128xbf16, #tpu.memory_space<vmem>>, vector<1x512x128xbf16>
    %178 = vector.shape_cast %177 : vector<1x512x128xbf16> to vector<512x128xbf16>
    %cst_79 = arith.constant dense<0.000000e+00> : vector<88x128xf32>
    %179 = tpu.matmul %176, %178, %cst_79 {dimension_numbers = #tpu.dot_dimension_numbers<[1], [0], [0], [1], [0, 0, 1, 1], [], []>} : vector<88x512xbf16>, vector<512x128xbf16>, vector<88x128xf32> -> vector<88x128xf32>
    %c0_80 = arith.constant 0 : index
    %c0_81 = arith.constant 0 : index
    %c0_82 = arith.constant 0 : index
    %180 = vector.load %arg10[%c0_80, %c0_81, %c0_82] : memref<1x1x128xf32, #tpu.memory_space<vmem>>, vector<1x1x128xf32>
    %181 = vector.shape_cast %180 : vector<1x1x128xf32> to vector<1x128xf32>
    %182 = vector.broadcast %181 : vector<1x128xf32> to vector<88x128xf32>
    %183 = arith.addf %179, %182 : vector<88x128xf32>
    %184 = arith.addf %3, %155 : vector<88x128xf32>
    %185 = arith.addf %184, %183 : vector<88x128xf32>
    %c0_83 = arith.constant 0 : index
    %c0_84 = arith.constant 0 : index
    %186 = vector.load %arg19[%c0_83, %c0_84] : memref<88x128xf32, #tpu.memory_space<vmem>>, vector<88x128xf32>
    tpu.vector_store %arg19[%c0_83, %c0_84], %185 {strides = array<i32>} : memref<88x128xf32, #tpu.memory_space<vmem>>, vector<88x128xf32>,
    %c1_i32_85 = arith.constant 1 : i32
    %187 = arith.cmpi eq, %arg1, %c1_i32_85 : i32
    %188 = arith.extui %187 : i1 to i32
    %c0_i32_86 = arith.constant 0 : i32
    %189 = arith.cmpi ne, %188, %c0_i32_86 : i32
    scf.if %189 {
      %190 = vector.extract_strided_slice %185 {offsets = [80, 0], sizes = [1, 128], strides = [1, 1]} : vector<88x128xf32> to vector<1x128xf32>
      %cst_87 = arith.constant dense<0.000000e+00> : vector<1xf32>
      %191 = vector.multi_reduction <add>, %190, %cst_87 [1] : vector<1x128xf32> to vector<1xf32>
      %192 = vector.shape_cast %191 : vector<1xf32> to vector<1x1xf32>
      %cst_88 = arith.constant 1.280000e+02 : f32
      %193 = vector.broadcast %cst_88 : f32 to vector<1x1xf32>
      %194 = arith.divf %192, %193 : vector<1x1xf32>
      %195 = vector.broadcast %194 : vector<1x1xf32> to vector<1x128xf32>
      %196 = arith.subf %190, %195 : vector<1x128xf32>
      %197 = arith.mulf %196, %196 : vector<1x128xf32>
      %cst_89 = arith.constant dense<0.000000e+00> : vector<1xf32>
      %198 = vector.multi_reduction <add>, %197, %cst_89 [1] : vector<1x128xf32> to vector<1xf32>
      %199 = vector.shape_cast %198 : vector<1xf32> to vector<1x1xf32>
      %cst_90 = arith.constant 1.280000e+02 : f32
      %200 = vector.broadcast %cst_90 : f32 to vector<1x1xf32>
      %201 = arith.divf %199, %200 : vector<1x1xf32>
      %cst_91 = arith.constant 9.99999974E-6 : f32
      %202 = vector.broadcast %cst_91 : f32 to vector<1x1xf32>
      %203 = arith.addf %201, %202 : vector<1x1xf32>
      %204 = math.rsqrt %203 : vector<1x1xf32>
      %205 = vector.broadcast %204 : vector<1x1xf32> to vector<1x128xf32>
      %206 = arith.mulf %196, %205 : vector<1x128xf32>
      %c0_92 = arith.constant 0 : index
      %c0_93 = arith.constant 0 : index
      %207 = vector.load %arg14[%c0_92, %c0_93] : memref<1x128xf32, #tpu.memory_space<vmem>>, vector<1x128xf32>
      %208 = arith.mulf %206, %207 : vector<1x128xf32>
      %c0_94 = arith.constant 0 : index
      %c0_95 = arith.constant 0 : index
      %209 = vector.load %arg15[%c0_94, %c0_95] : memref<1x128xf32, #tpu.memory_space<vmem>>, vector<1x128xf32>
      %210 = arith.addf %208, %209 : vector<1x128xf32>
      %c0_96 = arith.constant 0 : index
      %c0_97 = arith.constant 0 : index
      %211 = vector.load %arg16[%c0_96, %c0_97] : memref<128x128xf32, #tpu.memory_space<vmem>>, vector<128x128xf32>
      %cst_98 = arith.constant dense<0.000000e+00> : vector<1x128xf32>
      %212 = tpu.matmul %210, %211, %cst_98 {dimension_numbers = #tpu.dot_dimension_numbers<[1], [0], [0], [1], [0, 0, 1, 1], [], []>} : vector<1x128xf32>, vector<128x128xf32>, vector<1x128xf32> -> vector<1x128xf32>
      %c0_99 = arith.constant 0 : index
      %c0_100 = arith.constant 0 : index
      %213 = vector.load %arg17[%c0_99, %c0_100] : memref<1x128xf32, #tpu.memory_space<vmem>>, vector<1x128xf32>
      %214 = arith.addf %212, %213 : vector<1x128xf32>
      %215 = vector.shape_cast %214 : vector<1x128xf32> to vector<1x128xf32>
      %216 = vector.broadcast %215 : vector<1x128xf32> to vector<8x128xf32>
      %c0_101 = arith.constant 0 : index
      %c0_102 = arith.constant 0 : index
      %c0_103 = arith.constant 0 : index
      %217 = vector.load %arg18[%c0_101, %c0_102, %c0_103] : memref<1x8x128xf32, #tpu.memory_space<vmem>>, vector<1x8x128xf32>
      %218 = vector.shape_cast %217 : vector<1x8x128xf32> to vector<8x128xf32>
      %219 = vector.shape_cast %216 : vector<8x128xf32> to vector<1x8x128xf32>
      tpu.vector_store %arg18[%c0_101, %c0_102, %c0_103], %219 {strides = array<i32>} : memref<1x8x128xf32, #tpu.memory_space<vmem>>, vector<1x8x128xf32>,
    } else {
    }
    return
  }
  func.func @transform_0(%arg0: i32, %arg1: i32) -> (i32, i32, i32) {
    %c0_i32 = arith.constant 0 : i32
    %c0_i32_0 = arith.constant 0 : i32
    %c0_i32_1 = arith.constant 0 : i32
    return %arg0, %c0_i32, %c0_i32_0 : i32, i32, i32
  }
  func.func @transform_1(%arg0: i32, %arg1: i32) -> (i32, i32, i32) {
    %c0_i32 = arith.constant 0 : i32
    %c0_i32_0 = arith.constant 0 : i32
    %c0_i32_1 = arith.constant 0 : i32
    return %arg1, %c0_i32, %c0_i32_0 : i32, i32, i32
  }
  func.func @transform_2(%arg0: i32, %arg1: i32) -> (i32, i32, i32) {
    %c0_i32 = arith.constant 0 : i32
    %c0_i32_0 = arith.constant 0 : i32
    %c0_i32_1 = arith.constant 0 : i32
    return %arg1, %c0_i32, %c0_i32_0 : i32, i32, i32
  }
  func.func @transform_3(%arg0: i32, %arg1: i32) -> (i32, i32, i32) {
    %c0_i32 = arith.constant 0 : i32
    %c0_i32_0 = arith.constant 0 : i32
    %c0_i32_1 = arith.constant 0 : i32
    return %arg1, %c0_i32, %c0_i32_0 : i32, i32, i32
  }
  func.func @transform_4(%arg0: i32, %arg1: i32) -> (i32, i32, i32) {
    %c0_i32 = arith.constant 0 : i32
    %c0_i32_0 = arith.constant 0 : i32
    %c0_i32_1 = arith.constant 0 : i32
    return %arg1, %c0_i32, %c0_i32_0 : i32, i32, i32
  }
  func.func @transform_5(%arg0: i32, %arg1: i32) -> (i32, i32, i32) {
    %c0_i32 = arith.constant 0 : i32
    %c0_i32_0 = arith.constant 0 : i32
    %c0_i32_1 = arith.constant 0 : i32
    return %arg1, %c0_i32, %c0_i32_0 : i32, i32, i32
  }
  func.func @transform_6(%arg0: i32, %arg1: i32) -> (i32, i32, i32) {
    %c0_i32 = arith.constant 0 : i32
    %c0_i32_0 = arith.constant 0 : i32
    %c0_i32_1 = arith.constant 0 : i32
    return %arg1, %c0_i32, %c0_i32_0 : i32, i32, i32
  }
  func.func @transform_7(%arg0: i32, %arg1: i32) -> (i32, i32, i32) {
    %c0_i32 = arith.constant 0 : i32
    %c0_i32_0 = arith.constant 0 : i32
    %c0_i32_1 = arith.constant 0 : i32
    return %arg1, %c0_i32, %c0_i32_0 : i32, i32, i32
  }
  func.func @transform_8(%arg0: i32, %arg1: i32) -> (i32, i32, i32) {
    %c0_i32 = arith.constant 0 : i32
    %c0_i32_0 = arith.constant 0 : i32
    %c0_i32_1 = arith.constant 0 : i32
    return %arg1, %c0_i32, %c0_i32_0 : i32, i32, i32
  }
  func.func @transform_9(%arg0: i32, %arg1: i32) -> (i32, i32) {
    %c0_i32 = arith.constant 0 : i32
    %c0_i32_0 = arith.constant 0 : i32
    %c0_i32_1 = arith.constant 0 : i32
    return %c0_i32, %c0_i32_0 : i32, i32
  }
  func.func @transform_10(%arg0: i32, %arg1: i32) -> (i32, i32) {
    %c0_i32 = arith.constant 0 : i32
    %c0_i32_0 = arith.constant 0 : i32
    %c0_i32_1 = arith.constant 0 : i32
    return %c0_i32, %c0_i32_0 : i32, i32
  }
  func.func @transform_11(%arg0: i32, %arg1: i32) -> (i32, i32) {
    %c0_i32 = arith.constant 0 : i32
    %c0_i32_0 = arith.constant 0 : i32
    %c0_i32_1 = arith.constant 0 : i32
    return %c0_i32, %c0_i32_0 : i32, i32
  }
  func.func @transform_12(%arg0: i32, %arg1: i32) -> (i32, i32) {
    %c0_i32 = arith.constant 0 : i32
    %c0_i32_0 = arith.constant 0 : i32
    %c0_i32_1 = arith.constant 0 : i32
    return %c0_i32, %c0_i32_0 : i32, i32
  }
  func.func @transform_13(%arg0: i32, %arg1: i32) -> (i32, i32) {
    %c0_i32 = arith.constant 0 : i32
    %c0_i32_0 = arith.constant 0 : i32
    %c0_i32_1 = arith.constant 0 : i32
    return %c0_i32, %c0_i32_0 : i32, i32
  }
  func.func @transform_14(%arg0: i32, %arg1: i32) -> (i32, i32) {
    %c0_i32 = arith.constant 0 : i32
    %c0_i32_0 = arith.constant 0 : i32
    %c0_i32_1 = arith.constant 0 : i32
    return %c0_i32, %c0_i32_0 : i32, i32
  }
  func.func @transform_15(%arg0: i32, %arg1: i32) -> (i32, i32) {
    %c0_i32 = arith.constant 0 : i32
    %c0_i32_0 = arith.constant 0 : i32
    %c0_i32_1 = arith.constant 0 : i32
    return %c0_i32, %c0_i32_0 : i32, i32
  }
  func.func @transform_16(%arg0: i32, %arg1: i32) -> (i32, i32, i32) {
    %c0_i32 = arith.constant 0 : i32
    %c0_i32_0 = arith.constant 0 : i32
    %c0_i32_1 = arith.constant 0 : i32
    return %arg0, %c0_i32, %c0_i32_0 : i32, i32, i32
  }
}

</mosaic_0001>

<llo_original>
// kernel: model_forward.1
$region0: #{model_forward.1}
  #allocation0 [shape = 'u32[]', space=smem, size = 0x4, offset = 0x4, fixed_abs, tag = 'smem constant byte address 0x4 - core index']
  #allocation1 [shape = 'u32[72,128]{1,0:T(1,128)}', space=vmem, size = 0x9000, scoped, tag = 'internal scratch']
  #allocation2 [shape = 'f32[88,128]{1,0:T(8,128)}', space=vmem, size = 0xb000, scoped, tag = 'scratch operand']
  %s0 = inlined_call_operand.vmem [shape: f32[2,88,128], index: 0, kind: input, shape index: {}]
  %s1 = inlined_call_operand.vmem [shape: f32[2,1,128], index: 1, kind: input, shape index: {}]
  %s2 = inlined_call_operand.vmem [shape: f32[2,1,128], index: 2, kind: input, shape index: {}]
  %s3 = inlined_call_operand.vmem [shape: bf16[2,128,384], index: 3, kind: input, shape index: {}]
  %s4 = inlined_call_operand.vmem [shape: bf16[2,128,128], index: 4, kind: input, shape index: {}]
  %s5 = inlined_call_operand.vmem [shape: bf16[2,128,512], index: 5, kind: input, shape index: {}]
  %s6 = inlined_call_operand.vmem [shape: f32[2,1,512], index: 6, kind: input, shape index: {}]
  %s7 = inlined_call_operand.vmem [shape: bf16[2,512,128], index: 7, kind: input, shape index: {}]
  %s8 = inlined_call_operand.vmem [shape: f32[2,1,128], index: 8, kind: input, shape index: {}]
  %s9 = inlined_call_operand.vmem [shape: f32[88,128], index: 9, kind: input, shape index: {}]
  %s10 = inlined_call_operand.vmem [shape: f32[88,128], index: 10, kind: input, shape index: {}]
  %s11 = inlined_call_operand.vmem [shape: f32[88,128], index: 11, kind: input, shape index: {}]
  %s12 = inlined_call_operand.vmem [shape: f32[1,128], index: 12, kind: input, shape index: {}]
  %s13 = inlined_call_operand.vmem [shape: f32[1,128], index: 13, kind: input, shape index: {}]
  %s14 = inlined_call_operand.vmem [shape: f32[128,128], index: 14, kind: input, shape index: {}]
  %s15 = inlined_call_operand.vmem [shape: f32[1,128], index: 15, kind: input, shape index: {}]
  %s16 = inlined_call_operand.vmem [shape: f32[2,8,128], index: 16, kind: output, shape index: {}]
  %s17 = sld [smem:[#allocation0]]
  $region105: #{model_forward.1} parent=0
    _
  %s19 = ssub.s32 1, %s17
  %s20 = scalar_select 0, %s19, %s17
  loop: start=0, step=1, limit=6
  $region2: #{model_forward.1} parent=0 // loop_pre_header
    _
  $region3: #{model_forward.1} parent=0 // loop_header
    %s22 = sphi 0, %s26
    %p23 = scmp.ge.s32.totalorder %s22, 6
    %s29 = sphi 0, %s41
    %s30 = sphi 0, %s37
    %s31 = sphi 0, %s29
    %s32 = sphi 0, %s30
    %s33 = sphi 0, %s31
    %s34 = sphi 0, %s32
    %s44 = sphi 0, %s46
    %s47 = sphi 0, %s44
    %s48 = sphi 0, %s47
    %s64 = sphi 0, %s48
    %s70 = sphi 0, %s72
    %s73 = sphi 0, %s70
    %s74 = sphi 0, %s73
    %s90 = sphi 0, %s74
    %s96 = sphi 0, %s98
    %s99 = sphi 0, %s96
    %s100 = sphi 0, %s99
    %s116 = sphi 0, %s100
    %s122 = sphi 0, %s124
    %s125 = sphi 0, %s122
    %s126 = sphi 0, %s125
    %s142 = sphi 0, %s126
    %s148 = sphi 0, %s150
    %s151 = sphi 0, %s148
    %s152 = sphi 0, %s151
    %s168 = sphi 0, %s152
    %s174 = sphi 0, %s176
    %s177 = sphi 0, %s174
    %s178 = sphi 0, %s177
    %s194 = sphi 0, %s178
    %s200 = sphi 0, %s202
    %s203 = sphi 0, %s200
    %s204 = sphi 0, %s203
    %s220 = sphi 0, %s204
    %s226 = sphi 0, %s228
    %s229 = sphi 0, %s226
    %s230 = sphi 0, %s229
    %s246 = sphi 0, %s230
    %s252 = sphi 0, %s254
    %s255 = sphi 0, %s252
    %s256 = sphi 0, %s255
    %s272 = sphi 0, %s256
    %s276 = sphi 0, %s276
    %s278 = sphi 0, %s276
    %s279 = sphi 0, %s278
    %s293 = sphi 0, %s279
    %s297 = sphi 0, %s297
    %s299 = sphi 0, %s297
    %s300 = sphi 0, %s299
    %s314 = sphi 0, %s300
    %s318 = sphi 0, %s318
    %s320 = sphi 0, %s318
    %s321 = sphi 0, %s320
    %s335 = sphi 0, %s321
    %s339 = sphi 0, %s339
    %s341 = sphi 0, %s339
    %s342 = sphi 0, %s341
    %s356 = sphi 0, %s342
    %s360 = sphi 0, %s360
    %s362 = sphi 0, %s360
    %s363 = sphi 0, %s362
    %s377 = sphi 0, %s363
    %s381 = sphi 0, %s381
    %s383 = sphi 0, %s381
    %s384 = sphi 0, %s383
    %s398 = sphi 0, %s384
    %s402 = sphi 0, %s402
    %s404 = sphi 0, %s402
    %s405 = sphi 0, %s404
    %s419 = sphi 0, %s405
    %s425 = sphi 0, %s427
    %s428 = sphi 0, %s425
    %s429 = sphi 0, %s428
    %s445 = sphi 0, %s429
  $region4: #{model_forward.1} parent=0 // loop_header_branch
    %25 = sbr.rel (%p23) target = $region8
  $region5: #{model_forward.1} parent=0 // loop_body
    %s27 = ssub.s32 %s22, 1
    %s28 = ssub.s32 %s22, 2
    %s35 = sadd.s32 1, %s30
    %p36 = scmp.ge.s32.totalorder %s35, 2
    %s37 = scalar_select %p36, 0, %s35
    %s38 = sadd.s32 1, %s29
    %s39 = scalar_select %p36, %s38, %s29
    %p40 = scmp.ge.s32.totalorder %s39, 2
    %s41 = scalar_select %p40, 0, %s39
    %s42 = ssub.s32 %s29, %s41
    %p43 = scmp.eq.s32.totalorder %s42, 0
    %s45 = sadd.s32 %s44, 1
    %s46 = scalar_select %p43, %s44, %s45
    %p49 = pneg %p43
    %p50 = scmp.eq.s32.totalorder %s22, 3
    %p51 = por %p49, %p50
    %p52 = scmp.ne.s32.totalorder %s44, %s47
    %p53 = scmp.eq.s32.totalorder %s22, 0
    %p54 = por %p52, %p53
    %p55 = scmp.ne.s32.totalorder %s44, %s47
    %p56 = scmp.eq.s32.totalorder %s27, 3
    %p57 = por %p55, %p56
    %p58 = scmp.ne.s32.totalorder %s47, %s48
    %p59 = scmp.eq.s32.totalorder %s27, 0
    %p60 = por %p58, %p59
    %p61 = scmp.ne.s32.totalorder %s47, %s48
    %p62 = scmp.eq.s32.totalorder %s28, 3
    %p63 = por %p61, %p62
    %p65 = scmp.ne.s32.totalorder %s48, %s64
    %p66 = scmp.eq.s32.totalorder %s28, 0
    %p67 = por %p65, %p66
    %s68 = ssub.s32 %s30, %s37
    %p69 = scmp.eq.s32.totalorder %s68, 0
    %s71 = sadd.s32 %s70, 1
    %s72 = scalar_select %p69, %s70, %s71
    %p75 = pneg %p69
    %p76 = scmp.eq.s32.totalorder %s22, 3
    %p77 = por %p75, %p76
    %p78 = scmp.ne.s32.totalorder %s70, %s73
    %p79 = scmp.eq.s32.totalorder %s22, 0
    %p80 = por %p78, %p79
    %p81 = scmp.ne.s32.totalorder %s70, %s73
    %p82 = scmp.eq.s32.totalorder %s27, 3
    %p83 = por %p81, %p82
    %p84 = scmp.ne.s32.totalorder %s73, %s74
    %p85 = scmp.eq.s32.totalorder %s27, 0
    %p86 = por %p84, %p85
    %p87 = scmp.ne.s32.totalorder %s73, %s74
    %p88 = scmp.eq.s32.totalorder %s28, 3
    %p89 = por %p87, %p88
    %p91 = scmp.ne.s32.totalorder %s74, %s90
    %p92 = scmp.eq.s32.totalorder %s28, 0
    %p93 = por %p91, %p92
    %s94 = ssub.s32 %s30, %s37
    %p95 = scmp.eq.s32.totalorder %s94, 0
    %s97 = sadd.s32 %s96, 1
    %s98 = scalar_select %p95, %s96, %s97
    %p101 = pneg %p95
    %p102 = scmp.eq.s32.totalorder %s22, 3
    %p103 = por %p101, %p102
    %p104 = scmp.ne.s32.totalorder %s96, %s99
    %p105 = scmp.eq.s32.totalorder %s22, 0
    %p106 = por %p104, %p105
    %p107 = scmp.ne.s32.totalorder %s96, %s99
    %p108 = scmp.eq.s32.totalorder %s27, 3
    %p109 = por %p107, %p108
    %p110 = scmp.ne.s32.totalorder %s99, %s100
    %p111 = scmp.eq.s32.totalorder %s27, 0
    %p112 = por %p110, %p111
    %p113 = scmp.ne.s32.totalorder %s99, %s100
    %p114 = scmp.eq.s32.totalorder %s28, 3
    %p115 = por %p113, %p114
    %p117 = scmp.ne.s32.totalorder %s100, %s116
    %p118 = scmp.eq.s32.totalorder %s28, 0
    %p119 = por %p117, %p118
    %s120 = ssub.s32 %s30, %s37
    %p121 = scmp.eq.s32.totalorder %s120, 0
    %s123 = sadd.s32 %s122, 1
    %s124 = scalar_select %p121, %s122, %s123
    %p127 = pneg %p121
    %p128 = scmp.eq.s32.totalorder %s22, 3
    %p129 = por %p127, %p128
    %p130 = scmp.ne.s32.totalorder %s122, %s125
    %p131 = scmp.eq.s32.totalorder %s22, 0
    %p132 = por %p130, %p131
    %p133 = scmp.ne.s32.totalorder %s122, %s125
    %p134 = scmp.eq.s32.totalorder %s27, 3
    %p135 = por %p133, %p134
    %p136 = scmp.ne.s32.totalorder %s125, %s126
    %p137 = scmp.eq.s32.totalorder %s27, 0
    %p138 = por %p136, %p137
    %p139 = scmp.ne.s32.totalorder %s125, %s126
    %p140 = scmp.eq.s32.totalorder %s28, 3
    %p141 = por %p139, %p140
    %p143 = scmp.ne.s32.totalorder %s126, %s142
    %p144 = scmp.eq.s32.totalorder %s28, 0
    %p145 = por %p143, %p144
    %s146 = ssub.s32 %s30, %s37
    %p147 = scmp.eq.s32.totalorder %s146, 0
    %s149 = sadd.s32 %s148, 1
    %s150 = scalar_select %p147, %s148, %s149
    %p153 = pneg %p147
    %p154 = scmp.eq.s32.totalorder %s22, 3
    %p155 = por %p153, %p154
    %p156 = scmp.ne.s32.totalorder %s148, %s151
    %p157 = scmp.eq.s32.totalorder %s22, 0
    %p158 = por %p156, %p157
    %p159 = scmp.ne.s32.totalorder %s148, %s151
    %p160 = scmp.eq.s32.totalorder %s27, 3
    %p161 = por %p159, %p160
    %p162 = scmp.ne.s32.totalorder %s151, %s152
    %p163 = scmp.eq.s32.totalorder %s27, 0
    %p164 = por %p162, %p163
    %p165 = scmp.ne.s32.totalorder %s151, %s152
    %p166 = scmp.eq.s32.totalorder %s28, 3
    %p167 = por %p165, %p166
    %p169 = scmp.ne.s32.totalorder %s152, %s168
    %p170 = scmp.eq.s32.totalorder %s28, 0
    %p171 = por %p169, %p170
    %s172 = ssub.s32 %s30, %s37
    %p173 = scmp.eq.s32.totalorder %s172, 0
    %s175 = sadd.s32 %s174, 1
    %s176 = scalar_select %p173, %s174, %s175
    %p179 = pneg %p173
    %p180 = scmp.eq.s32.totalorder %s22, 3
    %p181 = por %p179, %p180
    %p182 = scmp.ne.s32.totalorder %s174, %s177
    %p183 = scmp.eq.s32.totalorder %s22, 0
    %p184 = por %p182, %p183
    %p185 = scmp.ne.s32.totalorder %s174, %s177
    %p186 = scmp.eq.s32.totalorder %s27, 3
    %p187 = por %p185, %p186
    %p188 = scmp.ne.s32.totalorder %s177, %s178
    %p189 = scmp.eq.s32.totalorder %s27, 0
    %p190 = por %p188, %p189
    %p191 = scmp.ne.s32.totalorder %s177, %s178
    %p192 = scmp.eq.s32.totalorder %s28, 3
    %p193 = por %p191, %p192
    %p195 = scmp.ne.s32.totalorder %s178, %s194
    %p196 = scmp.eq.s32.totalorder %s28, 0
    %p197 = por %p195, %p196
    %s198 = ssub.s32 %s30, %s37
    %p199 = scmp.eq.s32.totalorder %s198, 0
    %s201 = sadd.s32 %s200, 1
    %s202 = scalar_select %p199, %s200, %s201
    %p205 = pneg %p199
    %p206 = scmp.eq.s32.totalorder %s22, 3
    %p207 = por %p205, %p206
    %p208 = scmp.ne.s32.totalorder %s200, %s203
    %p209 = scmp.eq.s32.totalorder %s22, 0
    %p210 = por %p208, %p209
    %p211 = scmp.ne.s32.totalorder %s200, %s203
    %p212 = scmp.eq.s32.totalorder %s27, 3
    %p213 = por %p211, %p212
    %p214 = scmp.ne.s32.totalorder %s203, %s204
    %p215 = scmp.eq.s32.totalorder %s27, 0
    %p216 = por %p214, %p215
    %p217 = scmp.ne.s32.totalorder %s203, %s204
    %p218 = scmp.eq.s32.totalorder %s28, 3
    %p219 = por %p217, %p218
    %p221 = scmp.ne.s32.totalorder %s204, %s220
    %p222 = scmp.eq.s32.totalorder %s28, 0
    %p223 = por %p221, %p222
    %s224 = ssub.s32 %s30, %s37
    %p225 = scmp.eq.s32.totalorder %s224, 0
    %s227 = sadd.s32 %s226, 1
    %s228 = scalar_select %p225, %s226, %s227
    %p231 = pneg %p225
    %p232 = scmp.eq.s32.totalorder %s22, 3
    %p233 = por %p231, %p232
    %p234 = scmp.ne.s32.totalorder %s226, %s229
    %p235 = scmp.eq.s32.totalorder %s22, 0
    %p236 = por %p234, %p235
    %p237 = scmp.ne.s32.totalorder %s226, %s229
    %p238 = scmp.eq.s32.totalorder %s27, 3
    %p239 = por %p237, %p238
    %p240 = scmp.ne.s32.totalorder %s229, %s230
    %p241 = scmp.eq.s32.totalorder %s27, 0
    %p242 = por %p240, %p241
    %p243 = scmp.ne.s32.totalorder %s229, %s230
    %p244 = scmp.eq.s32.totalorder %s28, 3
    %p245 = por %p243, %p244
    %p247 = scmp.ne.s32.totalorder %s230, %s246
    %p248 = scmp.eq.s32.totalorder %s28, 0
    %p249 = por %p247, %p248
    %s250 = ssub.s32 %s30, %s37
    %p251 = scmp.eq.s32.totalorder %s250, 0
    %s253 = sadd.s32 %s252, 1
    %s254 = scalar_select %p251, %s252, %s253
    %p257 = pneg %p251
    %p258 = scmp.eq.s32.totalorder %s22, 3
    %p259 = por %p257, %p258
    %p260 = scmp.ne.s32.totalorder %s252, %s255
    %p261 = scmp.eq.s32.totalorder %s22, 0
    %p262 = por %p260, %p261
    %p263 = scmp.ne.s32.totalorder %s252, %s255
    %p264 = scmp.eq.s32.totalorder %s27, 3
    %p265 = por %p263, %p264
    %p266 = scmp.ne.s32.totalorder %s255, %s256
    %p267 = scmp.eq.s32.totalorder %s27, 0
    %p268 = por %p266, %p267
    %p269 = scmp.ne.s32.totalorder %s255, %s256
    %p270 = scmp.eq.s32.totalorder %s28, 3
    %p271 = por %p269, %p270
    %p273 = scmp.ne.s32.totalorder %s256, %s272
    %p274 = scmp.eq.s32.totalorder %s28, 0
    %p275 = por %p273, %p274
    %s277 = sadd.s32 %s276, 1
    %p280 = scmp.eq.s32.totalorder %s22, 3
    %p281 = scmp.ne.s32.totalorder %s276, %s278
    %p282 = scmp.eq.s32.totalorder %s22, 0
    %p283 = por %p281, %p282
    %p284 = scmp.ne.s32.totalorder %s276, %s278
    %p285 = scmp.eq.s32.totalorder %s27, 3
    %p286 = por %p284, %p285
    %p287 = scmp.ne.s32.totalorder %s278, %s279
    %p288 = scmp.eq.s32.totalorder %s27, 0
    %p289 = por %p287, %p288
    %p290 = scmp.ne.s32.totalorder %s278, %s279
    %p291 = scmp.eq.s32.totalorder %s28, 3
    %p292 = por %p290, %p291
    %p294 = scmp.ne.s32.totalorder %s279, %s293
    %p295 = scmp.eq.s32.totalorder %s28, 0
    %p296 = por %p294, %p295
    %s298 = sadd.s32 %s297, 1
    %p301 = scmp.eq.s32.totalorder %s22, 3
    %p302 = scmp.ne.s32.totalorder %s297, %s299
    %p303 = scmp.eq.s32.totalorder %s22, 0
    %p304 = por %p302, %p303
    %p305 = scmp.ne.s32.totalorder %s297, %s299
    %p306 = scmp.eq.s32.totalorder %s27, 3
    %p307 = por %p305, %p306
    %p308 = scmp.ne.s32.totalorder %s299, %s300
    %p309 = scmp.eq.s32.totalorder %s27, 0
    %p310 = por %p308, %p309
    %p311 = scmp.ne.s32.totalorder %s299, %s300
    %p312 = scmp.eq.s32.totalorder %s28, 3
    %p313 = por %p311, %p312
    %p315 = scmp.ne.s32.totalorder %s300, %s314
    %p316 = scmp.eq.s32.totalorder %s28, 0
    %p317 = por %p315, %p316
    %s319 = sadd.s32 %s318, 1
    %p322 = scmp.eq.s32.totalorder %s22, 3
    %p323 = scmp.ne.s32.totalorder %s318, %s320
    %p324 = scmp.eq.s32.totalorder %s22, 0
    %p325 = por %p323, %p324
    %p326 = scmp.ne.s32.totalorder %s318, %s320
    %p327 = scmp.eq.s32.totalorder %s27, 3
    %p328 = por %p326, %p327
    %p329 = scmp.ne.s32.totalorder %s320, %s321
    %p330 = scmp.eq.s32.totalorder %s27, 0
    %p331 = por %p329, %p330
    %p332 = scmp.ne.s32.totalorder %s320, %s321
    %p333 = scmp.eq.s32.totalorder %s28, 3
    %p334 = por %p332, %p333
    %p336 = scmp.ne.s32.totalorder %s321, %s335
    %p337 = scmp.eq.s32.totalorder %s28, 0
    %p338 = por %p336, %p337
    %s340 = sadd.s32 %s339, 1
    %p343 = scmp.eq.s32.totalorder %s22, 3
    %p344 = scmp.ne.s32.totalorder %s339, %s341
    %p345 = scmp.eq.s32.totalorder %s22, 0
    %p346 = por %p344, %p345
    %p347 = scmp.ne.s32.totalorder %s339, %s341
    %p348 = scmp.eq.s32.totalorder %s27, 3
    %p349 = por %p347, %p348
    %p350 = scmp.ne.s32.totalorder %s341, %s342
    %p351 = scmp.eq.s32.totalorder %s27, 0
    %p352 = por %p350, %p351
    %p353 = scmp.ne.s32.totalorder %s341, %s342
    %p354 = scmp.eq.s32.totalorder %s28, 3
    %p355 = por %p353, %p354
    %p357 = scmp.ne.s32.totalorder %s342, %s356
    %p358 = scmp.eq.s32.totalorder %s28, 0
    %p359 = por %p357, %p358
    %s361 = sadd.s32 %s360, 1
    %p364 = scmp.eq.s32.totalorder %s22, 3
    %p365 = scmp.ne.s32.totalorder %s360, %s362
    %p366 = scmp.eq.s32.totalorder %s22, 0
    %p367 = por %p365, %p366
    %p368 = scmp.ne.s32.totalorder %s360, %s362
    %p369 = scmp.eq.s32.totalorder %s27, 3
    %p370 = por %p368, %p369
    %p371 = scmp.ne.s32.totalorder %s362, %s363
    %p372 = scmp.eq.s32.totalorder %s27, 0
    %p373 = por %p371, %p372
    %p374 = scmp.ne.s32.totalorder %s362, %s363
    %p375 = scmp.eq.s32.totalorder %s28, 3
    %p376 = por %p374, %p375
    %p378 = scmp.ne.s32.totalorder %s363, %s377
    %p379 = scmp.eq.s32.totalorder %s28, 0
    %p380 = por %p378, %p379
    %s382 = sadd.s32 %s381, 1
    %p385 = scmp.eq.s32.totalorder %s22, 3
    %p386 = scmp.ne.s32.totalorder %s381, %s383
    %p387 = scmp.eq.s32.totalorder %s22, 0
    %p388 = por %p386, %p387
    %p389 = scmp.ne.s32.totalorder %s381, %s383
    %p390 = scmp.eq.s32.totalorder %s27, 3
    %p391 = por %p389, %p390
    %p392 = scmp.ne.s32.totalorder %s383, %s384
    %p393 = scmp.eq.s32.totalorder %s27, 0
    %p394 = por %p392, %p393
    %p395 = scmp.ne.s32.totalorder %s383, %s384
    %p396 = scmp.eq.s32.totalorder %s28, 3
    %p397 = por %p395, %p396
    %p399 = scmp.ne.s32.totalorder %s384, %s398
    %p400 = scmp.eq.s32.totalorder %s28, 0
    %p401 = por %p399, %p400
    %s403 = sadd.s32 %s402, 1
    %p406 = scmp.eq.s32.totalorder %s22, 3
    %p407 = scmp.ne.s32.totalorder %s402, %s404
    %p408 = scmp.eq.s32.totalorder %s22, 0
    %p409 = por %p407, %p408
    %p410 = scmp.ne.s32.totalorder %s402, %s404
    %p411 = scmp.eq.s32.totalorder %s27, 3
    %p412 = por %p410, %p411
    %p413 = scmp.ne.s32.totalorder %s404, %s405
    %p414 = scmp.eq.s32.totalorder %s27, 0
    %p415 = por %p413, %p414
    %p416 = scmp.ne.s32.totalorder %s404, %s405
    %p417 = scmp.eq.s32.totalorder %s28, 3
    %p418 = por %p416, %p417
    %p420 = scmp.ne.s32.totalorder %s405, %s419
    %p421 = scmp.eq.s32.totalorder %s28, 0
    %p422 = por %p420, %p421
    %s423 = ssub.s32 %s29, %s41
    %p424 = scmp.eq.s32.totalorder %s423, 0
    %s426 = sadd.s32 %s425, 1
    %s427 = scalar_select %p424, %s425, %s426
    %p430 = pneg %p424
    %p431 = scmp.eq.s32.totalorder %s22, 3
    %p432 = por %p430, %p431
    %p433 = scmp.ne.s32.totalorder %s425, %s428
    %p434 = scmp.eq.s32.totalorder %s22, 0
    %p435 = por %p433, %p434
    %p436 = scmp.ne.s32.totalorder %s425, %s428
    %p437 = scmp.eq.s32.totalorder %s27, 3
    %p438 = por %p436, %p437
    %p439 = scmp.ne.s32.totalorder %s428, %s429
    %p440 = scmp.eq.s32.totalorder %s27, 0
    %p441 = por %p439, %p440
    %p442 = scmp.ne.s32.totalorder %s428, %s429
    %p443 = scmp.eq.s32.totalorder %s28, 3
    %p444 = por %p442, %p443
    %p446 = scmp.ne.s32.totalorder %s429, %s445
    %p447 = scmp.eq.s32.totalorder %s28, 0
    %p448 = por %p446, %p447
    %p449 = scmp.le.s32.totalorder 1, %s22
    %p450 = scmp.lt.s32.totalorder %s22, 5
    %p451 = pnand %p449, %p450
    %p452 = pneg %p451
    // Predicated region
    $region9: #{model_forward.1} parent=5 // pred_check
      _
    $region10: #{model_forward.1} parent=5 // pred_check_branch
      %454 = sbr.rel (%p451) target = $region12
    $region11: #{model_forward.1} parent=5 // pred_region
      %s455 = ssub.s32 %s22, 1
      // Predicated region
      $region13: #{model_forward.1} parent=11 // pred_check
        %p456 = pneg %p289
      $region14: #{model_forward.1} parent=11 // pred_check_branch
        %458 = sbr.rel (%p456) target = $region16
      $region15: #{model_forward.1} parent=11 // pred_region
        _
      $region16: #{model_forward.1} parent=11 // pred_fallthru
        _
      // Predicated region
      $region17: #{model_forward.1} parent=11 // pred_check
        %p459 = pneg %p310
      $region18: #{model_forward.1} parent=11 // pred_check_branch
        %461 = sbr.rel (%p459) target = $region20
      $region19: #{model_forward.1} parent=11 // pred_region
        _
      $region20: #{model_forward.1} parent=11 // pred_fallthru
        _
      // Predicated region
      $region21: #{model_forward.1} parent=11 // pred_check
        %p462 = pneg %p331
      $region22: #{model_forward.1} parent=11 // pred_check_branch
        %464 = sbr.rel (%p462) target = $region24
      $region23: #{model_forward.1} parent=11 // pred_region
        _
      $region24: #{model_forward.1} parent=11 // pred_fallthru
        _
      // Predicated region
      $region25: #{model_forward.1} parent=11 // pred_check
        %p465 = pneg %p352
      $region26: #{model_forward.1} parent=11 // pred_check_branch
        %467 = sbr.rel (%p465) target = $region28
      $region27: #{model_forward.1} parent=11 // pred_region
        _
      $region28: #{model_forward.1} parent=11 // pred_fallthru
        _
      // Predicated region
      $region29: #{model_forward.1} parent=11 // pred_check
        %p468 = pneg %p373
      $region30: #{model_forward.1} parent=11 // pred_check_branch
        %470 = sbr.rel (%p468) target = $region32
      $region31: #{model_forward.1} parent=11 // pred_region
        _
      $region32: #{model_forward.1} parent=11 // pred_fallthru
        _
      // Predicated region
      $region33: #{model_forward.1} parent=11 // pred_check
        %p471 = pneg %p394
      $region34: #{model_forward.1} parent=11 // pred_check_branch
        %473 = sbr.rel (%p471) target = $region36
      $region35: #{model_forward.1} parent=11 // pred_region
        _
      $region36: #{model_forward.1} parent=11 // pred_fallthru
        _
      // Predicated region
      $region37: #{model_forward.1} parent=11 // pred_check
        %p474 = pneg %p415
      $region38: #{model_forward.1} parent=11 // pred_check_branch
        %476 = sbr.rel (%p474) target = $region40
      $region39: #{model_forward.1} parent=11 // pred_region
        _
      $region40: #{model_forward.1} parent=11 // pred_fallthru
        _
    $region12: #{model_forward.1} parent=5 // pred_fallthru
      _
    %p477 = scmp.lt.s32.totalorder %s22, 4
    // Predicated region
    $region41: #{model_forward.1} parent=5 // pred_check
      %p478 = pneg %p477
    $region42: #{model_forward.1} parent=5 // pred_check_branch
      %480 = sbr.rel (%p478) target = $region44
    $region43: #{model_forward.1} parent=5 // pred_region
      // Predicated region
      $region45: #{model_forward.1} parent=43 // pred_check
        %p481 = pneg %p54
      $region46: #{model_forward.1} parent=43 // pred_check_branch
        %483 = sbr.rel (%p481) target = $region48
      $region47: #{model_forward.1} parent=43 // pred_region
        %p484 = scmp.lt.s32.totalorder %s29, 1
        %s485 = scalar_select %p484, %s29, 1
        %s486 = smul.addr %s485, 11
        %s487 = smul.addr %s486, 8
        %s488 = scalar_lea.vmem %s0, %s487
      $region48: #{model_forward.1} parent=43 // pred_fallthru
        _
      // Predicated region
      $region49: #{model_forward.1} parent=43 // pred_check
        %p489 = pneg %p80
      $region50: #{model_forward.1} parent=43 // pred_check_branch
        %491 = sbr.rel (%p489) target = $region52
      $region51: #{model_forward.1} parent=43 // pred_region
        %p492 = scmp.lt.s32.totalorder %s30, 1
        %s493 = scalar_select %p492, %s30, 1
        %s494 = scalar_lea.vmem %s1, %s493
      $region52: #{model_forward.1} parent=43 // pred_fallthru
        _
      // Predicated region
      $region53: #{model_forward.1} parent=43 // pred_check
        %p495 = pneg %p106
      $region54: #{model_forward.1} parent=43 // pred_check_branch
        %497 = sbr.rel (%p495) target = $region56
      $region55: #{model_forward.1} parent=43 // pred_region
        %p498 = scmp.lt.s32.totalorder %s30, 1
        %s499 = scalar_select %p498, %s30, 1
        %s500 = scalar_lea.vmem %s2, %s499
      $region56: #{model_forward.1} parent=43 // pred_fallthru
        _
      // Predicated region
      $region57: #{model_forward.1} parent=43 // pred_check
        %p501 = pneg %p132
      $region58: #{model_forward.1} parent=43 // pred_check_branch
        %503 = sbr.rel (%p501) target = $region60
      $region59: #{model_forward.1} parent=43 // pred_region
        %p504 = scmp.lt.s32.totalorder %s30, 1
        %s505 = scalar_select %p504, %s30, 1
        %s506 = smul.addr %s505, 48
        %s507 = smul.addr %s506, 4
        %s508 = scalar_lea.vmem %s3, %s507
      $region60: #{model_forward.1} parent=43 // pred_fallthru
        _
      // Predicated region
      $region61: #{model_forward.1} parent=43 // pred_check
        %p509 = pneg %p158
      $region62: #{model_forward.1} parent=43 // pred_check_branch
        %511 = sbr.rel (%p509) target = $region64
      $region63: #{model_forward.1} parent=43 // pred_region
        %p512 = scmp.lt.s32.totalorder %s30, 1
        %s513 = scalar_select %p512, %s30, 1
        %s514 = smul.addr %s513, 16
        %s515 = smul.addr %s514, 4
        %s516 = scalar_lea.vmem %s4, %s515
      $region64: #{model_forward.1} parent=43 // pred_fallthru
        _
      // Predicated region
      $region65: #{model_forward.1} parent=43 // pred_check
        %p517 = pneg %p184
      $region66: #{model_forward.1} parent=43 // pred_check_branch
        %519 = sbr.rel (%p517) target = $region68
      $region67: #{model_forward.1} parent=43 // pred_region
        %p520 = scmp.lt.s32.totalorder %s30, 1
        %s521 = scalar_select %p520, %s30, 1
        %s522 = smul.addr %s521, 64
        %s523 = smul.addr %s522, 4
        %s524 = scalar_lea.vmem %s5, %s523
      $region68: #{model_forward.1} parent=43 // pred_fallthru
        _
      // Predicated region
      $region69: #{model_forward.1} parent=43 // pred_check
        %p525 = pneg %p210
      $region70: #{model_forward.1} parent=43 // pred_check_branch
        %527 = sbr.rel (%p525) target = $region72
      $region71: #{model_forward.1} parent=43 // pred_region
        %p528 = scmp.lt.s32.totalorder %s30, 1
        %s529 = scalar_select %p528, %s30, 1
        %s530 = smul.addr %s529, 4
        %s531 = scalar_lea.vmem %s6, %s530
      $region72: #{model_forward.1} parent=43 // pred_fallthru
        _
      // Predicated region
      $region73: #{model_forward.1} parent=43 // pred_check
        %p532 = pneg %p236
      $region74: #{model_forward.1} parent=43 // pred_check_branch
        %534 = sbr.rel (%p532) target = $region76
      $region75: #{model_forward.1} parent=43 // pred_region
        %p535 = scmp.lt.s32.totalorder %s30, 1
        %s536 = scalar_select %p535, %s30, 1
        %s537 = smul.addr %s536, 64
        %s538 = smul.addr %s537, 4
        %s539 = scalar_lea.vmem %s7, %s538
      $region76: #{model_forward.1} parent=43 // pred_fallthru
        _
      // Predicated region
      $region77: #{model_forward.1} parent=43 // pred_check
        %p540 = pneg %p262
      $region78: #{model_forward.1} parent=43 // pred_check_branch
        %542 = sbr.rel (%p540) target = $region80
      $region79: #{model_forward.1} parent=43 // pred_region
        %p543 = scmp.lt.s32.totalorder %s30, 1
        %s544 = scalar_select %p543, %s30, 1
        %s545 = scalar_lea.vmem %s8, %s544
      $region80: #{model_forward.1} parent=43 // pred_fallthru
        _
    $region44: #{model_forward.1} parent=5 // pred_fallthru
      _
    %p546 = scmp.le.s32.totalorder 1, %s22
    %p547 = scmp.lt.s32.totalorder %s22, 5
    %p548 = pnand %p546, %p547
    %p549 = pneg %p548
    // Predicated region
    $region81: #{model_forward.1} parent=5 // pred_check
      _
    $region82: #{model_forward.1} parent=5 // pred_check_branch
      %551 = sbr.rel (%p548) target = $region84
    $region83: #{model_forward.1} parent=5 // pred_region
      %s552 = ssub.s32 %s22, 1
      %p553 = scmp.lt.s32.totalorder %s31, 1
      %s554 = scalar_select %p553, %s31, 1
      %s555 = smul.addr %s554, 11
      %s556 = smul.addr %s555, 8
      %s557 = scalar_lea.vmem %s0, %s556
      %p558 = pneg %p60
      %p559 = pneg %p57
      %p560 = scmp.lt.s32.totalorder %s32, 1
      %s561 = scalar_select %p560, %s32, 1
      %s562 = scalar_lea.vmem %s1, %s561
      %p563 = pneg %p86
      %p564 = pneg %p83
      %p565 = scmp.lt.s32.totalorder %s32, 1
      %s566 = scalar_select %p565, %s32, 1
      %s567 = scalar_lea.vmem %s2, %s566
      %p568 = pneg %p112
      %p569 = pneg %p109
      %p570 = scmp.lt.s32.totalorder %s32, 1
      %s571 = scalar_select %p570, %s32, 1
      %s572 = smul.addr %s571, 48
      %s573 = smul.addr %s572, 4
      %s574 = scalar_lea.vmem %s3, %s573
      %p575 = pneg %p138
      %p576 = pneg %p135
      %p577 = scmp.lt.s32.totalorder %s32, 1
      %s578 = scalar_select %p577, %s32, 1
      %s579 = smul.addr %s578, 16
      %s580 = smul.addr %s579, 4
      %s581 = scalar_lea.vmem %s4, %s580
      %p582 = pneg %p164
      %p583 = pneg %p161
      %p584 = scmp.lt.s32.totalorder %s32, 1
      %s585 = scalar_select %p584, %s32, 1
      %s586 = smul.addr %s585, 64
      %s587 = smul.addr %s586, 4
      %s588 = scalar_lea.vmem %s5, %s587
      %p589 = pneg %p190
      %p590 = pneg %p187
      %p591 = scmp.lt.s32.totalorder %s32, 1
      %s592 = scalar_select %p591, %s32, 1
      %s593 = smul.addr %s592, 4
      %s594 = scalar_lea.vmem %s6, %s593
      %p595 = pneg %p216
      %p596 = pneg %p213
      %p597 = scmp.lt.s32.totalorder %s32, 1
      %s598 = scalar_select %p597, %s32, 1
      %s599 = smul.addr %s598, 64
      %s600 = smul.addr %s599, 4
      %s601 = scalar_lea.vmem %s7, %s600
      %p602 = pneg %p242
      %p603 = pneg %p239
      %p604 = scmp.lt.s32.totalorder %s32, 1
      %s605 = scalar_select %p604, %s32, 1
      %s606 = scalar_lea.vmem %s8, %s605
      %p607 = pneg %p268
      %p608 = pneg %p265
      %p609 = pneg %p289
      %p610 = pneg %p286
      %p611 = pneg %p310
      %p612 = pneg %p307
      %p613 = pneg %p331
      %p614 = pneg %p328
      %p615 = pneg %p352
      %p616 = pneg %p349
      %p617 = pneg %p373
      %p618 = pneg %p370
      %p619 = pneg %p394
      %p620 = pneg %p391
      %p621 = pneg %p415
      %p622 = pneg %p412
      %p623 = pneg %p441
      %p624 = pneg %p438
      %p625 = scmp.lt.s32.totalorder %s31, 1
      %s626 = scalar_select %p625, %s31, 1
      %s627 = smul.addr %s626, 8
      %s628 = scalar_lea.vmem %s16, %s627
      %p629 = scmp.lt.s32.totalorder %s31, 1
      %s630 = scalar_select %p629, %s31, 1
      %s631 = smul.addr %s630, 11
      %s632 = smul.addr %s631, 8
      %s633 = scalar_lea.vmem %s0, %s632
      %p634 = scmp.lt.s32.totalorder %s32, 1
      %s635 = scalar_select %p634, %s32, 1
      %s636 = scalar_lea.vmem %s1, %s635
      %p637 = scmp.lt.s32.totalorder %s32, 1
      %s638 = scalar_select %p637, %s32, 1
      %s639 = scalar_lea.vmem %s2, %s638
      %p640 = scmp.lt.s32.totalorder %s32, 1
      %s641 = scalar_select %p640, %s32, 1
      %s642 = smul.addr %s641, 48
      %s643 = smul.addr %s642, 4
      %s644 = scalar_lea.vmem %s3, %s643
      %p645 = scmp.lt.s32.totalorder %s32, 1
      %s646 = scalar_select %p645, %s32, 1
      %s647 = smul.addr %s646, 16
      %s648 = smul.addr %s647, 4
      %s649 = scalar_lea.vmem %s4, %s648
      %p650 = scmp.lt.s32.totalorder %s32, 1
      %s651 = scalar_select %p650, %s32, 1
      %s652 = smul.addr %s651, 64
      %s653 = smul.addr %s652, 4
      %s654 = scalar_lea.vmem %s5, %s653
      %p655 = scmp.lt.s32.totalorder %s32, 1
      %s656 = scalar_select %p655, %s32, 1
      %s657 = smul.addr %s656, 4
      %s658 = scalar_lea.vmem %s6, %s657
      %p659 = scmp.lt.s32.totalorder %s32, 1
      %s660 = scalar_select %p659, %s32, 1
      %s661 = smul.addr %s660, 64
      %s662 = smul.addr %s661, 4
      %s663 = scalar_lea.vmem %s7, %s662
      %p664 = scmp.lt.s32.totalorder %s32, 1
      %s665 = scalar_select %p664, %s32, 1
      %s666 = scalar_lea.vmem %s8, %s665
      %p667 = scmp.lt.s32.totalorder %s31, 1
      %s668 = scalar_select %p667, %s31, 1
      %s669 = smul.addr %s668, 8
      %s670 = scalar_lea.vmem %s16, %s669
      %p672 = scmp.eq.s32.totalorder %s32, 0
      // Predicated region
      $region85: #{model_forward.1} parent=83 // pred_check
        %p673 = pneg %p672
      $region86: #{model_forward.1} parent=83 // pred_check_branch
        %675 = sbr.rel (%p673) target = $region88
      $region87: #{model_forward.1} parent=83 // pred_region
        %v676 = vld [vmem:[%s633] sm:$0xff]
        %v677 = vld [vmem:[%s633 + $0x8] sm:$0xff]
        %v678 = vld [vmem:[%s633 + $0x10] sm:$0xff]
        %v679 = vld [vmem:[%s633 + $0x18] sm:$0xff]
        %v680 = vld [vmem:[%s633 + $0x20] sm:$0xff]
        %v681 = vld [vmem:[%s633 + $0x28] sm:$0xff]
        %v682 = vld [vmem:[%s633 + $0x30] sm:$0xff]
        %v683 = vld [vmem:[%s633 + $0x38] sm:$0xff]
        %v684 = vld [vmem:[%s633 + $0x40] sm:$0xff]
        %v685 = vld [vmem:[%s633 + $0x48] sm:$0xff]
        %v686 = vld [vmem:[%s633 + $0x50] sm:$0xff]
        %687 = vst [vmem:[#allocation2] sm:$0xff] %v676
        %688 = vst [vmem:[#allocation2 + $0x8] sm:$0xff] %v677
        %689 = vst [vmem:[#allocation2 + $0x10] sm:$0xff] %v678
        %690 = vst [vmem:[#allocation2 + $0x18] sm:$0xff] %v679
        %691 = vst [vmem:[#allocation2 + $0x20] sm:$0xff] %v680
        %692 = vst [vmem:[#allocation2 + $0x28] sm:$0xff] %v681
        %693 = vst [vmem:[#allocation2 + $0x30] sm:$0xff] %v682
        %694 = vst [vmem:[#allocation2 + $0x38] sm:$0xff] %v683
        %695 = vst [vmem:[#allocation2 + $0x40] sm:$0xff] %v684
        %696 = vst [vmem:[#allocation2 + $0x48] sm:$0xff] %v685
        %697 = vst [vmem:[#allocation2 + $0x50] sm:$0xff] %v686
      $region88: #{model_forward.1} parent=83 // pred_fallthru
        _
      %v698 = vld [vmem:[#allocation2] sm:$0xff]
      %v699 = vld [vmem:[#allocation2 + $0x8] sm:$0xff]
      %v700 = vld [vmem:[#allocation2 + $0x10] sm:$0xff]
      %v701 = vld [vmem:[#allocation2 + $0x18] sm:$0xff]
      %v702 = vld [vmem:[#allocation2 + $0x20] sm:$0xff]
      %v703 = vld [vmem:[#allocation2 + $0x28] sm:$0xff]
      %v704 = vld [vmem:[#allocation2 + $0x30] sm:$0xff]
      %v705 = vld [vmem:[#allocation2 + $0x38] sm:$0xff]
      %v706 = vld [vmem:[#allocation2 + $0x40] sm:$0xff]
      %v707 = vld [vmem:[#allocation2 + $0x48] sm:$0xff]
      %v708 = vld [vmem:[#allocation2 + $0x50] sm:$0xff]
      %709 = vadd.xlane.f32.xlu0 %v698
      %v710 = vpop.xlane.xlu0 %709
      %711 = vadd.xlane.f32.xlu0 %v699
      %v712 = vpop.xlane.xlu0 %711
      %713 = vadd.xlane.f32.xlu0 %v700
      %v714 = vpop.xlane.xlu0 %713
      %715 = vadd.xlane.f32.xlu0 %v701
      %v716 = vpop.xlane.xlu0 %715
      %717 = vadd.xlane.f32.xlu0 %v702
      %v718 = vpop.xlane.xlu0 %717
      %719 = vadd.xlane.f32.xlu0 %v703
      %v720 = vpop.xlane.xlu0 %719
      %721 = vadd.xlane.f32.xlu0 %v704
      %v722 = vpop.xlane.xlu0 %721
      %723 = vadd.xlane.f32.xlu0 %v705
      %v724 = vpop.xlane.xlu0 %723
      %725 = vadd.xlane.f32.xlu0 %v706
      %v726 = vpop.xlane.xlu0 %725
      %727 = vadd.xlane.f32.xlu0 %v707
      %v728 = vpop.xlane.xlu0 %727
      %729 = vadd.xlane.f32.xlu0 %v708
      %v730 = vpop.xlane.xlu0 %729
      %v731 = vrcp.pop 128.0
      %v732 = vmul.f32 128.0, %v731
      %v733 = vsub.f32 1.0, %v732
      %v734 = vmul.f32 %v731, %v733
      %v735 = vadd.f32 %v731, %v734
      %vm736 = vweird.f32 %v731
      %v737 = vsel %vm736, %v731, %v735
      %v738 = vmul.f32 %v710, %v737
      %v739 = vmul.f32 %v712, %v737
      %v740 = vmul.f32 %v714, %v737
      %v741 = vmul.f32 %v716, %v737
      %v742 = vmul.f32 %v718, %v737
      %v743 = vmul.f32 %v720, %v737
      %v744 = vmul.f32 %v722, %v737
      %v745 = vmul.f32 %v724, %v737
      %v746 = vmul.f32 %v726, %v737
      %v747 = vmul.f32 %v728, %v737
      %v748 = vmul.f32 %v730, %v737
      %v749 = vsub.f32 %v698, %v738
      %v750 = vsub.f32 %v699, %v739
      %v751 = vsub.f32 %v700, %v740
      %v752 = vsub.f32 %v701, %v741
      %v753 = vsub.f32 %v702, %v742
      %v754 = vsub.f32 %v703, %v743
      %v755 = vsub.f32 %v704, %v744
      %v756 = vsub.f32 %v705, %v745
      %v757 = vsub.f32 %v706, %v746
      %v758 = vsub.f32 %v707, %v747
      %v759 = vsub.f32 %v708, %v748
      %v760 = vmul.f32 %v749, %v749
      %v761 = vmul.f32 %v750, %v750
      %v762 = vmul.f32 %v751, %v751
      %v763 = vmul.f32 %v752, %v752
      %v764 = vmul.f32 %v753, %v753
      %v765 = vmul.f32 %v754, %v754
      %v766 = vmul.f32 %v755, %v755
      %v767 = vmul.f32 %v756, %v756
      %v768 = vmul.f32 %v757, %v757
      %v769 = vmul.f32 %v758, %v758
      %v770 = vmul.f32 %v759, %v759
      %771 = vadd.xlane.f32.xlu0 %v760
      %v772 = vpop.xlane.xlu0 %771
      %773 = vadd.xlane.f32.xlu0 %v761
      %v774 = vpop.xlane.xlu0 %773
      %775 = vadd.xlane.f32.xlu0 %v762
      %v776 = vpop.xlane.xlu0 %775
      %777 = vadd.xlane.f32.xlu0 %v763
      %v778 = vpop.xlane.xlu0 %777
      %779 = vadd.xlane.f32.xlu0 %v764
      %v780 = vpop.xlane.xlu0 %779
      %781 = vadd.xlane.f32.xlu0 %v765
      %v782 = vpop.xlane.xlu0 %781
      %783 = vadd.xlane.f32.xlu0 %v766
      %v784 = vpop.xlane.xlu0 %783
      %785 = vadd.xlane.f32.xlu0 %v767
      %v786 = vpop.xlane.xlu0 %785
      %787 = vadd.xlane.f32.xlu0 %v768
      %v788 = vpop.xlane.xlu0 %787
      %789 = vadd.xlane.f32.xlu0 %v769
      %v790 = vpop.xlane.xlu0 %789
      %791 = vadd.xlane.f32.xlu0 %v770
      %v792 = vpop.xlane.xlu0 %791
      %v793 = vmul.f32 %v772, %v737
      %v794 = vmul.f32 %v774, %v737
      %v795 = vmul.f32 %v776, %v737
      %v796 = vmul.f32 %v778, %v737
      %v797 = vmul.f32 %v780, %v737
      %v798 = vmul.f32 %v782, %v737
      %v799 = vmul.f32 %v784, %v737
      %v800 = vmul.f32 %v786, %v737
      %v801 = vmul.f32 %v788, %v737
      %v802 = vmul.f32 %v790, %v737
      %v803 = vmul.f32 %v792, %v737
      %v804 = vadd.f32 %v793, 1e-05
      %v805 = vadd.f32 %v794, 1e-05
      %v806 = vadd.f32 %v795, 1e-05
      %v807 = vadd.f32 %v796, 1e-05
      %v808 = vadd.f32 %v797, 1e-05
      %v809 = vadd.f32 %v798, 1e-05
      %v810 = vadd.f32 %v799, 1e-05
      %v811 = vadd.f32 %v800, 1e-05
      %v812 = vadd.f32 %v801, 1e-05
      %v813 = vadd.f32 %v802, 1e-05
      %v814 = vadd.f32 %v803, 1e-05
      %v815 = vrsqrt.pop %v804
      %v816 = vmul.f32 %v815, %v804
      %v817 = vmul.f32 %v816, %v815
      %v818 = vmul.f32 0.5, %v817
      %v819 = vsub.f32 1.5, %v818
      %v820 = vmul.f32 %v815, %v819
      %vm821 = vweird.f32 %v804
      %vm822 = vweird.f32 %v815
      %vm823 = vmor %vm821, %vm822
      %v824 = vsel %vm823, %v815, %v820
      %v825 = vrsqrt.pop %v805
      %v826 = vmul.f32 %v825, %v805
      %v827 = vmul.f32 %v826, %v825
      %v828 = vmul.f32 0.5, %v827
      %v829 = vsub.f32 1.5, %v828
      %v830 = vmul.f32 %v825, %v829
      %vm831 = vweird.f32 %v805
      %vm832 = vweird.f32 %v825
      %vm833 = vmor %vm831, %vm832
      %v834 = vsel %vm833, %v825, %v830
      %v835 = vrsqrt.pop %v806
      %v836 = vmul.f32 %v835, %v806
      %v837 = vmul.f32 %v836, %v835
      %v838 = vmul.f32 0.5, %v837
      %v839 = vsub.f32 1.5, %v838
      %v840 = vmul.f32 %v835, %v839
      %vm841 = vweird.f32 %v806
      %vm842 = vweird.f32 %v835
      %vm843 = vmor %vm841, %vm842
      %v844 = vsel %vm843, %v835, %v840
      %v845 = vrsqrt.pop %v807
      %v846 = vmul.f32 %v845, %v807
      %v847 = vmul.f32 %v846, %v845
      %v848 = vmul.f32 0.5, %v847
      %v849 = vsub.f32 1.5, %v848
      %v850 = vmul.f32 %v845, %v849
      %vm851 = vweird.f32 %v807
      %vm852 = vweird.f32 %v845
      %vm853 = vmor %vm851, %vm852
      %v854 = vsel %vm853, %v845, %v850
      %v855 = vrsqrt.pop %v808
      %v856 = vmul.f32 %v855, %v808
      %v857 = vmul.f32 %v856, %v855
      %v858 = vmul.f32 0.5, %v857
      %v859 = vsub.f32 1.5, %v858
      %v860 = vmul.f32 %v855, %v859
      %vm861 = vweird.f32 %v808
      %vm862 = vweird.f32 %v855
      %vm863 = vmor %vm861, %vm862
      %v864 = vsel %vm863, %v855, %v860
      %v865 = vrsqrt.pop %v809
      %v866 = vmul.f32 %v865, %v809
      %v867 = vmul.f32 %v866, %v865
      %v868 = vmul.f32 0.5, %v867
      %v869 = vsub.f32 1.5, %v868
      %v870 = vmul.f32 %v865, %v869
      %vm871 = vweird.f32 %v809
      %vm872 = vweird.f32 %v865
      %vm873 = vmor %vm871, %vm872
      %v874 = vsel %vm873, %v865, %v870
      %v875 = vrsqrt.pop %v810
      %v876 = vmul.f32 %v875, %v810
      %v877 = vmul.f32 %v876, %v875
      %v878 = vmul.f32 0.5, %v877
      %v879 = vsub.f32 1.5, %v878
      %v880 = vmul.f32 %v875, %v879
      %vm881 = vweird.f32 %v810
      %vm882 = vweird.f32 %v875
      %vm883 = vmor %vm881, %vm882
      %v884 = vsel %vm883, %v875, %v880
      %v885 = vrsqrt.pop %v811
      %v886 = vmul.f32 %v885, %v811
      %v887 = vmul.f32 %v886, %v885
      %v888 = vmul.f32 0.5, %v887
      %v889 = vsub.f32 1.5, %v888
      %v890 = vmul.f32 %v885, %v889
      %vm891 = vweird.f32 %v811
      %vm892 = vweird.f32 %v885
      %vm893 = vmor %vm891, %vm892
      %v894 = vsel %vm893, %v885, %v890
      %v895 = vrsqrt.pop %v812
      %v896 = vmul.f32 %v895, %v812
      %v897 = vmul.f32 %v896, %v895
      %v898 = vmul.f32 0.5, %v897
      %v899 = vsub.f32 1.5, %v898
      %v900 = vmul.f32 %v895, %v899
      %vm901 = vweird.f32 %v812
      %vm902 = vweird.f32 %v895
      %vm903 = vmor %vm901, %vm902
      %v904 = vsel %vm903, %v895, %v900
      %v905 = vrsqrt.pop %v813
      %v906 = vmul.f32 %v905, %v813
      %v907 = vmul.f32 %v906, %v905
      %v908 = vmul.f32 0.5, %v907
      %v909 = vsub.f32 1.5, %v908
      %v910 = vmul.f32 %v905, %v909
      %vm911 = vweird.f32 %v813
      %vm912 = vweird.f32 %v905
      %vm913 = vmor %vm911, %vm912
      %v914 = vsel %vm913, %v905, %v910
      %v915 = vrsqrt.pop %v814
      %v916 = vmul.f32 %v915, %v814
      %v917 = vmul.f32 %v916, %v915
      %v918 = vmul.f32 0.5, %v917
      %v919 = vsub.f32 1.5, %v918
      %v920 = vmul.f32 %v915, %v919
      %vm921 = vweird.f32 %v814
      %vm922 = vweird.f32 %v915
      %vm923 = vmor %vm921, %vm922
      %v924 = vsel %vm923, %v915, %v920
      %v925 = vmul.f32 %v749, %v824
      %v926 = vmul.f32 %v750, %v834
      %v927 = vmul.f32 %v751, %v844
      %v928 = vmul.f32 %v752, %v854
      %v929 = vmul.f32 %v753, %v864
      %v930 = vmul.f32 %v754, %v874
      %v931 = vmul.f32 %v755, %v884
      %v932 = vmul.f32 %v756, %v894
      %v933 = vmul.f32 %v757, %v904
      %v934 = vmul.f32 %v758, %v914
      %v935 = vmul.f32 %v759, %v924
      %v936 = vld [vmem:[%s636] sm:$0x1]
      %v938 = vperm.slane %v936, 0
      %v940 = vmul.f32 %v925, %v938
      %v941 = vmul.f32 %v926, %v938
      %v942 = vmul.f32 %v927, %v938
      %v943 = vmul.f32 %v928, %v938
      %v944 = vmul.f32 %v929, %v938
      %v945 = vmul.f32 %v930, %v938
      %v946 = vmul.f32 %v931, %v938
      %v947 = vmul.f32 %v932, %v938
      %v948 = vmul.f32 %v933, %v938
      %v949 = vmul.f32 %v934, %v938
      %v950 = vmul.f32 %v935, %v938
      %v951 = vld [vmem:[%s639] sm:$0x1]
      %v953 = vperm.slane %v951, 0
      %v955 = vadd.f32 %v940, %v953
      %v956 = vadd.f32 %v941, %v953
      %v957 = vadd.f32 %v942, %v953
      %v958 = vadd.f32 %v943, %v953
      %v959 = vadd.f32 %v944, %v953
      %v960 = vadd.f32 %v945, %v953
      %v961 = vadd.f32 %v946, %v953
      %v962 = vadd.f32 %v947, %v953
      %v963 = vadd.f32 %v948, %v953
      %v964 = vadd.f32 %v949, %v953
      %v965 = vadd.f32 %v950, %v953
      %v966 = vpack.c.bf16 %v956, %v955
      %v967 = vpack.c.bf16 %v958, %v957
      %v968 = vpack.c.bf16 %v960, %v959
      %v969 = vpack.c.bf16 %v962, %v961
      %v970 = vpack.c.bf16 %v964, %v963
      %v971 = vpack.c.bf16 %v965, %v965
      %v972 = vld [vmem:[%s644] sm:$0xf]
      %v973 = vld [vmem:[%s644 + $0xc] sm:$0xf]
      %v974 = vld [vmem:[%s644 + $0x18] sm:$0xf]
      %v975 = vld [vmem:[%s644 + $0x24] sm:$0xf]
      %v976 = vld [vmem:[%s644 + $0x30] sm:$0xf]
      %v977 = vld [vmem:[%s644 + $0x3c] sm:$0xf]
      %v978 = vld [vmem:[%s644 + $0x48] sm:$0xf]
      %v979 = vld [vmem:[%s644 + $0x54] sm:$0xf]
      %v980 = vld [vmem:[%s644 + $0x60] sm:$0xf]
      %v981 = vld [vmem:[%s644 + $0x6c] sm:$0xf]
      %v982 = vld [vmem:[%s644 + $0x78] sm:$0xf]
      %v983 = vld [vmem:[%s644 + $0x84] sm:$0xf]
      %v984 = vld [vmem:[%s644 + $0x90] sm:$0xf]
      %v985 = vld [vmem:[%s644 + $0x9c] sm:$0xf]
      %v986 = vld [vmem:[%s644 + $0xa8] sm:$0xf]
      %v987 = vld [vmem:[%s644 + $0xb4] sm:$0xf]
      %v1004 = vunpack.c.l.b16 %v972
      %v1005 = vunpack.c.l.b16 %v973
      %v1006 = vunpack.c.l.b16 %v974
      %v1007 = vunpack.c.l.b16 %v975
      %v1008 = vunpack.c.l.b16 %v976
      %v1009 = vunpack.c.l.b16 %v977
      %v1010 = vunpack.c.l.b16 %v978
      %v1011 = vunpack.c.l.b16 %v979
      %v1012 = vunpack.c.l.b16 %v980
      %v1013 = vunpack.c.l.b16 %v981
      %v1014 = vunpack.c.l.b16 %v982
      %v1015 = vunpack.c.l.b16 %v983
      %v1016 = vunpack.c.l.b16 %v984
      %v1017 = vunpack.c.l.b16 %v985
      %v1018 = vunpack.c.l.b16 %v986
      %v1019 = vunpack.c.l.b16 %v987
      %v1020 = vpack.c.b16 %v1005, %v1004
      %v1021 = vpack.c.b16 %v1007, %v1006
      %v1022 = vpack.c.b16 %v1009, %v1008
      %v1023 = vpack.c.b16 %v1011, %v1010
      %v1024 = vpack.c.b16 %v1013, %v1012
      %v1025 = vpack.c.b16 %v1015, %v1014
      %v1026 = vpack.c.b16 %v1017, %v1016
      %v1027 = vpack.c.b16 %v1019, %v1018
      %1036 = vmatpush.bf16.msra.mxu0 %v1027
      %1037 = vmatpush.bf16.msra.mxu0 %v1026
      %1038 = vmatpush.bf16.msra.mxu0 %v1025
      %1039 = vmatpush.bf16.msra.mxu0 %v1024
      %1040 = vmatpush.bf16.msra.mxu0 %v1023
      %1041 = vmatpush.bf16.msra.mxu0 %v1022
      %1042 = vmatpush.bf16.msra.mxu0 %v1021
      %1043 = vmatpush.bf16.msra.mxu0 %v1020
      %1044 = vmatmul.bf16.gmra.mxu0 %v966
      %v1045 = vpop.f32.mrf.mxu0
      %v1046 = vadd.f32 0.0, %v1045
      %v1047 = vpop.f32.mrf.mxu0
      %v1048 = vadd.f32 0.0, %v1047
      %1049 = vmatmul.bf16.gmra.mxu0 %v967
      %v1050 = vpop.f32.mrf.mxu0
      %v1051 = vadd.f32 0.0, %v1050
      %v1052 = vpop.f32.mrf.mxu0
      %v1053 = vadd.f32 0.0, %v1052
      %1054 = vmatmul.bf16.gmra.mxu0 %v968
      %v1055 = vpop.f32.mrf.mxu0
      %v1056 = vadd.f32 0.0, %v1055
      %v1057 = vpop.f32.mrf.mxu0
      %v1058 = vadd.f32 0.0, %v1057
      %1059 = vmatmul.bf16.gmra.mxu0 %v969
      %v1060 = vpop.f32.mrf.mxu0
      %v1061 = vadd.f32 0.0, %v1060
      %v1062 = vpop.f32.mrf.mxu0
      %v1063 = vadd.f32 0.0, %v1062
      %1064 = vmatmul.bf16.gmra.mxu0 %v970
      %v1065 = vpop.f32.mrf.mxu0
      %v1066 = vadd.f32 0.0, %v1065
      %v1067 = vpop.f32.mrf.mxu0
      %v1068 = vadd.f32 0.0, %v1067
      %1069 = vmatmul.bf16.gmra.mxu0 %v971
      %v1070 = vpop.f32.mrf.mxu0
      %v1071 = vadd.f32 0.0, %v1070
      %v1072 = vpop.f32.mrf.mxu0
      %1073 = vdwg.mxu0
      %v1074 = vld [vmem:[%s644 + $0x4] sm:$0xf]
      %v1075 = vld [vmem:[%s644 + $0x10] sm:$0xf]
      %v1076 = vld [vmem:[%s644 + $0x1c] sm:$0xf]
      %v1077 = vld [vmem:[%s644 + $0x28] sm:$0xf]
      %v1078 = vld [vmem:[%s644 + $0x34] sm:$0xf]
      %v1079 = vld [vmem:[%s644 + $0x40] sm:$0xf]
      %v1080 = vld [vmem:[%s644 + $0x4c] sm:$0xf]
      %v1081 = vld [vmem:[%s644 + $0x58] sm:$0xf]
      %v1082 = vld [vmem:[%s644 + $0x64] sm:$0xf]
      %v1083 = vld [vmem:[%s644 + $0x70] sm:$0xf]
      %v1084 = vld [vmem:[%s644 + $0x7c] sm:$0xf]
      %v1085 = vld [vmem:[%s644 + $0x88] sm:$0xf]
      %v1086 = vld [vmem:[%s644 + $0x94] sm:$0xf]
      %v1087 = vld [vmem:[%s644 + $0xa0] sm:$0xf]
      %v1088 = vld [vmem:[%s644 + $0xac] sm:$0xf]
      %v1089 = vld [vmem:[%s644 + $0xb8] sm:$0xf]
      %v1106 = vunpack.c.l.b16 %v1074
      %v1107 = vunpack.c.l.b16 %v1075
      %v1108 = vunpack.c.l.b16 %v1076
      %v1109 = vunpack.c.l.b16 %v1077
      %v1110 = vunpack.c.l.b16 %v1078
      %v1111 = vunpack.c.l.b16 %v1079
      %v1112 = vunpack.c.l.b16 %v1080
      %v1113 = vunpack.c.l.b16 %v1081
      %v1114 = vunpack.c.l.b16 %v1082
      %v1115 = vunpack.c.l.b16 %v1083
      %v1116 = vunpack.c.l.b16 %v1084
      %v1117 = vunpack.c.l.b16 %v1085
      %v1118 = vunpack.c.l.b16 %v1086
      %v1119 = vunpack.c.l.b16 %v1087
      %v1120 = vunpack.c.l.b16 %v1088
      %v1121 = vunpack.c.l.b16 %v1089
      %v1122 = vpack.c.b16 %v1107, %v1106
      %v1123 = vpack.c.b16 %v1109, %v1108
      %v1124 = vpack.c.b16 %v1111, %v1110
      %v1125 = vpack.c.b16 %v1113, %v1112
      %v1126 = vpack.c.b16 %v1115, %v1114
      %v1127 = vpack.c.b16 %v1117, %v1116
      %v1128 = vpack.c.b16 %v1119, %v1118
      %v1129 = vpack.c.b16 %v1121, %v1120
      %1138 = vmatpush.bf16.msra.mxu0 %v1129
      %1139 = vmatpush.bf16.msra.mxu0 %v1128
      %1140 = vmatpush.bf16.msra.mxu0 %v1127
      %1141 = vmatpush.bf16.msra.mxu0 %v1126
      %1142 = vmatpush.bf16.msra.mxu0 %v1125
      %1143 = vmatpush.bf16.msra.mxu0 %v1124
      %1144 = vmatpush.bf16.msra.mxu0 %v1123
      %1145 = vmatpush.bf16.msra.mxu0 %v1122
      %1146 = vmatmul.bf16.gmra.mxu0 %v966
      %v1147 = vpop.f32.mrf.mxu0
      %v1148 = vadd.f32 0.0, %v1147
      %v1149 = vpop.f32.mrf.mxu0
      %v1150 = vadd.f32 0.0, %v1149
      %1151 = vmatmul.bf16.gmra.mxu0 %v967
      %v1152 = vpop.f32.mrf.mxu0
      %v1153 = vadd.f32 0.0, %v1152
      %v1154 = vpop.f32.mrf.mxu0
      %v1155 = vadd.f32 0.0, %v1154
      %1156 = vmatmul.bf16.gmra.mxu0 %v968
      %v1157 = vpop.f32.mrf.mxu0
      %v1158 = vadd.f32 0.0, %v1157
      %v1159 = vpop.f32.mrf.mxu0
      %v1160 = vadd.f32 0.0, %v1159
      %1161 = vmatmul.bf16.gmra.mxu0 %v969
      %v1162 = vpop.f32.mrf.mxu0
      %v1163 = vadd.f32 0.0, %v1162
      %v1164 = vpop.f32.mrf.mxu0
      %v1165 = vadd.f32 0.0, %v1164
      %1166 = vmatmul.bf16.gmra.mxu0 %v970
      %v1167 = vpop.f32.mrf.mxu0
      %v1168 = vadd.f32 0.0, %v1167
      %v1169 = vpop.f32.mrf.mxu0
      %v1170 = vadd.f32 0.0, %v1169
      %1171 = vmatmul.bf16.gmra.mxu0 %v971
      %v1172 = vpop.f32.mrf.mxu0
      %v1173 = vadd.f32 0.0, %v1172
      %v1174 = vpop.f32.mrf.mxu0
      %1175 = vdwg.mxu0
      %v1176 = vld [vmem:[%s644 + $0x8] sm:$0xf]
      %v1177 = vld [vmem:[%s644 + $0x14] sm:$0xf]
      %v1178 = vld [vmem:[%s644 + $0x20] sm:$0xf]
      %v1179 = vld [vmem:[%s644 + $0x2c] sm:$0xf]
      %v1180 = vld [vmem:[%s644 + $0x38] sm:$0xf]
      %v1181 = vld [vmem:[%s644 + $0x44] sm:$0xf]
      %v1182 = vld [vmem:[%s644 + $0x50] sm:$0xf]
      %v1183 = vld [vmem:[%s644 + $0x5c] sm:$0xf]
      %v1184 = vld [vmem:[%s644 + $0x68] sm:$0xf]
      %v1185 = vld [vmem:[%s644 + $0x74] sm:$0xf]
      %v1186 = vld [vmem:[%s644 + $0x80] sm:$0xf]
      %v1187 = vld [vmem:[%s644 + $0x8c] sm:$0xf]
      %v1188 = vld [vmem:[%s644 + $0x98] sm:$0xf]
      %v1189 = vld [vmem:[%s644 + $0xa4] sm:$0xf]
      %v1190 = vld [vmem:[%s644 + $0xb0] sm:$0xf]
      %v1191 = vld [vmem:[%s644 + $0xbc] sm:$0xf]
      %v1208 = vunpack.c.l.b16 %v1176
      %v1209 = vunpack.c.l.b16 %v1177
      %v1210 = vunpack.c.l.b16 %v1178
      %v1211 = vunpack.c.l.b16 %v1179
      %v1212 = vunpack.c.l.b16 %v1180
      %v1213 = vunpack.c.l.b16 %v1181
      %v1214 = vunpack.c.l.b16 %v1182
      %v1215 = vunpack.c.l.b16 %v1183
      %v1216 = vunpack.c.l.b16 %v1184
      %v1217 = vunpack.c.l.b16 %v1185
      %v1218 = vunpack.c.l.b16 %v1186
      %v1219 = vunpack.c.l.b16 %v1187
      %v1220 = vunpack.c.l.b16 %v1188
      %v1221 = vunpack.c.l.b16 %v1189
      %v1222 = vunpack.c.l.b16 %v1190
      %v1223 = vunpack.c.l.b16 %v1191
      %v1224 = vpack.c.b16 %v1209, %v1208
      %v1225 = vpack.c.b16 %v1211, %v1210
      %v1226 = vpack.c.b16 %v1213, %v1212
      %v1227 = vpack.c.b16 %v1215, %v1214
      %v1228 = vpack.c.b16 %v1217, %v1216
      %v1229 = vpack.c.b16 %v1219, %v1218
      %v1230 = vpack.c.b16 %v1221, %v1220
      %v1231 = vpack.c.b16 %v1223, %v1222
      %1240 = vmatpush.bf16.msra.mxu0 %v1231
      %1241 = vmatpush.bf16.msra.mxu0 %v1230
      %1242 = vmatpush.bf16.msra.mxu0 %v1229
      %1243 = vmatpush.bf16.msra.mxu0 %v1228
      %1244 = vmatpush.bf16.msra.mxu0 %v1227
      %1245 = vmatpush.bf16.msra.mxu0 %v1226
      %1246 = vmatpush.bf16.msra.mxu0 %v1225
      %1247 = vmatpush.bf16.msra.mxu0 %v1224
      %1248 = vmatmul.bf16.gmra.mxu0 %v966
      %v1249 = vpop.f32.mrf.mxu0
      %v1250 = vadd.f32 0.0, %v1249
      %v1251 = vpop.f32.mrf.mxu0
      %v1252 = vadd.f32 0.0, %v1251
      %1253 = vmatmul.bf16.gmra.mxu0 %v967
      %v1254 = vpop.f32.mrf.mxu0
      %v1255 = vadd.f32 0.0, %v1254
      %v1256 = vpop.f32.mrf.mxu0
      %v1257 = vadd.f32 0.0, %v1256
      %1258 = vmatmul.bf16.gmra.mxu0 %v968
      %v1259 = vpop.f32.mrf.mxu0
      %v1260 = vadd.f32 0.0, %v1259
      %v1261 = vpop.f32.mrf.mxu0
      %v1262 = vadd.f32 0.0, %v1261
      %1263 = vmatmul.bf16.gmra.mxu0 %v969
      %v1264 = vpop.f32.mrf.mxu0
      %v1265 = vadd.f32 0.0, %v1264
      %v1266 = vpop.f32.mrf.mxu0
      %v1267 = vadd.f32 0.0, %v1266
      %1268 = vmatmul.bf16.gmra.mxu0 %v970
      %v1269 = vpop.f32.mrf.mxu0
      %v1270 = vadd.f32 0.0, %v1269
      %v1271 = vpop.f32.mrf.mxu0
      %v1272 = vadd.f32 0.0, %v1271
      %1273 = vmatmul.bf16.gmra.mxu0 %v971
      %v1274 = vpop.f32.mrf.mxu0
      %v1275 = vadd.f32 0.0, %v1274
      %v1276 = vpop.f32.mrf.mxu0
      %1277 = vdwg.mxu0
      %v1278 = vpack.c.bf16 %v1250, %v1250
      %v1279 = vpack.c.bf16 %v1252, %v1252
      %v1280 = vpack.c.bf16 %v1255, %v1255
      %v1281 = vpack.c.bf16 %v1257, %v1257
      %v1282 = vpack.c.bf16 %v1260, %v1260
      %v1283 = vpack.c.bf16 %v1262, %v1262
      %v1284 = vpack.c.bf16 %v1265, %v1265
      %v1285 = vpack.c.bf16 %v1267, %v1267
      %v1286 = vpack.c.bf16 %v1270, %v1270
      %v1287 = vpack.c.bf16 %v1272, %v1272
      %v1288 = vpack.c.bf16 %v1275, %v1275
      %v1289 = vld [vmem:[%s9] sm:$0xff]
      %v1290 = vld [vmem:[%s9 + $0x8] sm:$0xff]
      %v1291 = vld [vmem:[%s9 + $0x10] sm:$0xff]
      %v1292 = vld [vmem:[%s9 + $0x18] sm:$0xff]
      %v1293 = vld [vmem:[%s9 + $0x20] sm:$0xff]
      %v1294 = vld [vmem:[%s9 + $0x28] sm:$0xff]
      %v1295 = vld [vmem:[%s9 + $0x30] sm:$0xff]
      %v1296 = vld [vmem:[%s9 + $0x38] sm:$0xff]
      %v1297 = vld [vmem:[%s9 + $0x40] sm:$0xff]
      %v1298 = vld [vmem:[%s9 + $0x48] sm:$0xff]
      %v1299 = vld [vmem:[%s9 + $0x50] sm:$0xff]
      %v1300 = vld [vmem:[%s10] sm:$0xff]
      %v1301 = vld [vmem:[%s10 + $0x8] sm:$0xff]
      %v1302 = vld [vmem:[%s10 + $0x10] sm:$0xff]
      %v1303 = vld [vmem:[%s10 + $0x18] sm:$0xff]
      %v1304 = vld [vmem:[%s10 + $0x20] sm:$0xff]
      %v1305 = vld [vmem:[%s10 + $0x28] sm:$0xff]
      %v1306 = vld [vmem:[%s10 + $0x30] sm:$0xff]
      %v1307 = vld [vmem:[%s10 + $0x38] sm:$0xff]
      %v1308 = vld [vmem:[%s10 + $0x40] sm:$0xff]
      %v1309 = vld [vmem:[%s10 + $0x48] sm:$0xff]
      %v1310 = vld [vmem:[%s10 + $0x50] sm:$0xff]
      %v1311 = vld [vmem:[%s11] sm:$0xff]
      %v1312 = vld [vmem:[%s11 + $0x8] sm:$0xff]
      %v1313 = vld [vmem:[%s11 + $0x10] sm:$0xff]
      %v1314 = vld [vmem:[%s11 + $0x18] sm:$0xff]
      %v1315 = vld [vmem:[%s11 + $0x20] sm:$0xff]
      %v1316 = vld [vmem:[%s11 + $0x28] sm:$0xff]
      %v1317 = vld [vmem:[%s11 + $0x30] sm:$0xff]
      %v1318 = vld [vmem:[%s11 + $0x38] sm:$0xff]
      %v1319 = vld [vmem:[%s11 + $0x40] sm:$0xff]
      %v1320 = vld [vmem:[%s11 + $0x48] sm:$0xff]
      %v1321 = vld [vmem:[%s11 + $0x50] sm:$0xff]
      %1322 = vrot.lane.b32.xlu0 %v1046, 127
      %v1323 = vpop.permute.xlu0 %1322
      %1324 = vrot.lane.b32.xlu0 %v1048, 127
      %v1325 = vpop.permute.xlu0 %1324
      %1326 = vrot.lane.b32.xlu0 %v1051, 127
      %v1327 = vpop.permute.xlu0 %1326
      %1328 = vrot.lane.b32.xlu0 %v1053, 127
      %v1329 = vpop.permute.xlu0 %1328
      %1330 = vrot.lane.b32.xlu0 %v1056, 127
      %v1331 = vpop.permute.xlu0 %1330
      %1332 = vrot.lane.b32.xlu0 %v1058, 127
      %v1333 = vpop.permute.xlu0 %1332
      %1334 = vrot.lane.b32.xlu0 %v1061, 127
      %v1335 = vpop.permute.xlu0 %1334
      %1336 = vrot.lane.b32.xlu0 %v1063, 127
      %v1337 = vpop.permute.xlu0 %1336
      %1338 = vrot.lane.b32.xlu0 %v1066, 127
      %v1339 = vpop.permute.xlu0 %1338
      %1340 = vrot.lane.b32.xlu0 %v1068, 127
      %v1341 = vpop.permute.xlu0 %1340
      %1342 = vrot.lane.b32.xlu0 %v1071, 127
      %v1343 = vpop.permute.xlu0 %1342
      %1344 = vrot.lane.b32.xlu0 %v1046, 1
      %v1345 = vpop.permute.xlu0 %1344
      %1346 = vrot.lane.b32.xlu0 %v1048, 1
      %v1347 = vpop.permute.xlu0 %1346
      %1348 = vrot.lane.b32.xlu0 %v1051, 1
      %v1349 = vpop.permute.xlu0 %1348
      %1350 = vrot.lane.b32.xlu0 %v1053, 1
      %v1351 = vpop.permute.xlu0 %1350
      %1352 = vrot.lane.b32.xlu0 %v1056, 1
      %v1353 = vpop.permute.xlu0 %1352
      %1354 = vrot.lane.b32.xlu0 %v1058, 1
      %v1355 = vpop.permute.xlu0 %1354
      %1356 = vrot.lane.b32.xlu0 %v1061, 1
      %v1357 = vpop.permute.xlu0 %1356
      %1358 = vrot.lane.b32.xlu0 %v1063, 1
      %v1359 = vpop.permute.xlu0 %1358
      %1360 = vrot.lane.b32.xlu0 %v1066, 1
      %v1361 = vpop.permute.xlu0 %1360
      %1362 = vrot.lane.b32.xlu0 %v1068, 1
      %v1363 = vpop.permute.xlu0 %1362
      %1364 = vrot.lane.b32.xlu0 %v1071, 1
      %v1365 = vpop.permute.xlu0 %1364
      %v1366 = vmul.f32 %v1046, %v1289
      %v1367 = vmul.f32 %v1048, %v1290
      %v1368 = vmul.f32 %v1051, %v1291
      %v1369 = vmul.f32 %v1053, %v1292
      %v1370 = vmul.f32 %v1056, %v1293
      %v1371 = vmul.f32 %v1058, %v1294
      %v1372 = vmul.f32 %v1061, %v1295
      %v1373 = vmul.f32 %v1063, %v1296
      %v1374 = vmul.f32 %v1066, %v1297
      %v1375 = vmul.f32 %v1068, %v1298
      %v1376 = vmul.f32 %v1071, %v1299
      %v1377 = vmul.f32 %v1323, %v1300
      %v1378 = vmul.f32 %v1325, %v1301
      %v1379 = vmul.f32 %v1327, %v1302
      %v1380 = vmul.f32 %v1329, %v1303
      %v1381 = vmul.f32 %v1331, %v1304
      %v1382 = vmul.f32 %v1333, %v1305
      %v1383 = vmul.f32 %v1335, %v1306
      %v1384 = vmul.f32 %v1337, %v1307
      %v1385 = vmul.f32 %v1339, %v1308
      %v1386 = vmul.f32 %v1341, %v1309
      %v1387 = vmul.f32 %v1343, %v1310
      %v1388 = vadd.f32 %v1366, %v1377
      %v1389 = vadd.f32 %v1367, %v1378
      %v1390 = vadd.f32 %v1368, %v1379
      %v1391 = vadd.f32 %v1369, %v1380
      %v1392 = vadd.f32 %v1370, %v1381
      %v1393 = vadd.f32 %v1371, %v1382
      %v1394 = vadd.f32 %v1372, %v1383
      %v1395 = vadd.f32 %v1373, %v1384
      %v1396 = vadd.f32 %v1374, %v1385
      %v1397 = vadd.f32 %v1375, %v1386
      %v1398 = vadd.f32 %v1376, %v1387
      %v1399 = vmul.f32 %v1345, %v1311
      %v1400 = vmul.f32 %v1347, %v1312
      %v1401 = vmul.f32 %v1349, %v1313
      %v1402 = vmul.f32 %v1351, %v1314
      %v1403 = vmul.f32 %v1353, %v1315
      %v1404 = vmul.f32 %v1355, %v1316
      %v1405 = vmul.f32 %v1357, %v1317
      %v1406 = vmul.f32 %v1359, %v1318
      %v1407 = vmul.f32 %v1361, %v1319
      %v1408 = vmul.f32 %v1363, %v1320
      %v1409 = vmul.f32 %v1365, %v1321
      %v1410 = vadd.f32 %v1388, %v1399
      %v1411 = vadd.f32 %v1389, %v1400
      %v1412 = vadd.f32 %v1390, %v1401
      %v1413 = vadd.f32 %v1391, %v1402
      %v1414 = vadd.f32 %v1392, %v1403
      %v1415 = vadd.f32 %v1393, %v1404
      %v1416 = vadd.f32 %v1394, %v1405
      %v1417 = vadd.f32 %v1395, %v1406
      %v1418 = vadd.f32 %v1396, %v1407
      %v1419 = vadd.f32 %v1397, %v1408
      %v1420 = vadd.f32 %v1398, %v1409
      %v1421 = vmul.f32 %v1410, 0.17677669
      %v1422 = vmul.f32 %v1411, 0.17677669
      %v1423 = vmul.f32 %v1412, 0.17677669
      %v1424 = vmul.f32 %v1413, 0.17677669
      %v1425 = vmul.f32 %v1414, 0.17677669
      %v1426 = vmul.f32 %v1415, 0.17677669
      %v1427 = vmul.f32 %v1416, 0.17677669
      %v1428 = vmul.f32 %v1417, 0.17677669
      %v1429 = vmul.f32 %v1418, 0.17677669
      %v1430 = vmul.f32 %v1419, 0.17677669
      %v1431 = vmul.f32 %v1420, 0.17677669
      %v1432 = vpack.c.bf16 %v1421, %v1421
      %v1433 = vpack.c.bf16 %v1422, %v1422
      %v1434 = vpack.c.bf16 %v1423, %v1423
      %v1435 = vpack.c.bf16 %v1424, %v1424
      %v1436 = vpack.c.bf16 %v1425, %v1425
      %v1437 = vpack.c.bf16 %v1426, %v1426
      %v1438 = vpack.c.bf16 %v1427, %v1427
      %v1439 = vpack.c.bf16 %v1428, %v1428
      %v1440 = vpack.c.bf16 %v1429, %v1429
      %v1441 = vpack.c.bf16 %v1430, %v1430
      %v1442 = vpack.c.bf16 %v1431, %v1431
      %1443 = vrot.lane.b32.xlu0 %v1148, 127
      %v1444 = vpop.permute.xlu0 %1443
      %1445 = vrot.lane.b32.xlu0 %v1150, 127
      %v1446 = vpop.permute.xlu0 %1445
      %1447 = vrot.lane.b32.xlu0 %v1153, 127
      %v1448 = vpop.permute.xlu0 %1447
      %1449 = vrot.lane.b32.xlu0 %v1155, 127
      %v1450 = vpop.permute.xlu0 %1449
      %1451 = vrot.lane.b32.xlu0 %v1158, 127
      %v1452 = vpop.permute.xlu0 %1451
      %1453 = vrot.lane.b32.xlu0 %v1160, 127
      %v1454 = vpop.permute.xlu0 %1453
      %1455 = vrot.lane.b32.xlu0 %v1163, 127
      %v1456 = vpop.permute.xlu0 %1455
      %1457 = vrot.lane.b32.xlu0 %v1165, 127
      %v1458 = vpop.permute.xlu0 %1457
      %1459 = vrot.lane.b32.xlu0 %v1168, 127
      %v1460 = vpop.permute.xlu0 %1459
      %1461 = vrot.lane.b32.xlu0 %v1170, 127
      %v1462 = vpop.permute.xlu0 %1461
      %1463 = vrot.lane.b32.xlu0 %v1173, 127
      %v1464 = vpop.permute.xlu0 %1463
      %1465 = vrot.lane.b32.xlu0 %v1148, 1
      %v1466 = vpop.permute.xlu0 %1465
      %1467 = vrot.lane.b32.xlu0 %v1150, 1
      %v1468 = vpop.permute.xlu0 %1467
      %1469 = vrot.lane.b32.xlu0 %v1153, 1
      %v1470 = vpop.permute.xlu0 %1469
      %1471 = vrot.lane.b32.xlu0 %v1155, 1
      %v1472 = vpop.permute.xlu0 %1471
      %1473 = vrot.lane.b32.xlu0 %v1158, 1
      %v1474 = vpop.permute.xlu0 %1473
      %1475 = vrot.lane.b32.xlu0 %v1160, 1
      %v1476 = vpop.permute.xlu0 %1475
      %1477 = vrot.lane.b32.xlu0 %v1163, 1
      %v1478 = vpop.permute.xlu0 %1477
      %1479 = vrot.lane.b32.xlu0 %v1165, 1
      %v1480 = vpop.permute.xlu0 %1479
      %1481 = vrot.lane.b32.xlu0 %v1168, 1
      %v1482 = vpop.permute.xlu0 %1481
      %1483 = vrot.lane.b32.xlu0 %v1170, 1
      %v1484 = vpop.permute.xlu0 %1483
      %1485 = vrot.lane.b32.xlu0 %v1173, 1
      %v1486 = vpop.permute.xlu0 %1485
      %v1487 = vmul.f32 %v1148, %v1289
      %v1488 = vmul.f32 %v1150, %v1290
      %v1489 = vmul.f32 %v1153, %v1291
      %v1490 = vmul.f32 %v1155, %v1292
      %v1491 = vmul.f32 %v1158, %v1293
      %v1492 = vmul.f32 %v1160, %v1294
      %v1493 = vmul.f32 %v1163, %v1295
      %v1494 = vmul.f32 %v1165, %v1296
      %v1495 = vmul.f32 %v1168, %v1297
      %v1496 = vmul.f32 %v1170, %v1298
      %v1497 = vmul.f32 %v1173, %v1299
      %v1498 = vmul.f32 %v1444, %v1300
      %v1499 = vmul.f32 %v1446, %v1301
      %v1500 = vmul.f32 %v1448, %v1302
      %v1501 = vmul.f32 %v1450, %v1303
      %v1502 = vmul.f32 %v1452, %v1304
      %v1503 = vmul.f32 %v1454, %v1305
      %v1504 = vmul.f32 %v1456, %v1306
      %v1505 = vmul.f32 %v1458, %v1307
      %v1506 = vmul.f32 %v1460, %v1308
      %v1507 = vmul.f32 %v1462, %v1309
      %v1508 = vmul.f32 %v1464, %v1310
      %v1509 = vadd.f32 %v1487, %v1498
      %v1510 = vadd.f32 %v1488, %v1499
      %v1511 = vadd.f32 %v1489, %v1500
      %v1512 = vadd.f32 %v1490, %v1501
      %v1513 = vadd.f32 %v1491, %v1502
      %v1514 = vadd.f32 %v1492, %v1503
      %v1515 = vadd.f32 %v1493, %v1504
      %v1516 = vadd.f32 %v1494, %v1505
      %v1517 = vadd.f32 %v1495, %v1506
      %v1518 = vadd.f32 %v1496, %v1507
      %v1519 = vadd.f32 %v1497, %v1508
      %v1520 = vmul.f32 %v1466, %v1311
      %v1521 = vmul.f32 %v1468, %v1312
      %v1522 = vmul.f32 %v1470, %v1313
      %v1523 = vmul.f32 %v1472, %v1314
      %v1524 = vmul.f32 %v1474, %v1315
      %v1525 = vmul.f32 %v1476, %v1316
      %v1526 = vmul.f32 %v1478, %v1317
      %v1527 = vmul.f32 %v1480, %v1318
      %v1528 = vmul.f32 %v1482, %v1319
      %v1529 = vmul.f32 %v1484, %v1320
      %v1530 = vmul.f32 %v1486, %v1321
      %v1531 = vadd.f32 %v1509, %v1520
      %v1532 = vadd.f32 %v1510, %v1521
      %v1533 = vadd.f32 %v1511, %v1522
      %v1534 = vadd.f32 %v1512, %v1523
      %v1535 = vadd.f32 %v1513, %v1524
      %v1536 = vadd.f32 %v1514, %v1525
      %v1537 = vadd.f32 %v1515, %v1526
      %v1538 = vadd.f32 %v1516, %v1527
      %v1539 = vadd.f32 %v1517, %v1528
      %v1540 = vadd.f32 %v1518, %v1529
      %v1541 = vadd.f32 %v1519, %v1530
      %v1542 = vpack.c.bf16 %v1531, %v1531
      %v1543 = vpack.c.bf16 %v1532, %v1532
      %v1544 = vpack.c.bf16 %v1533, %v1533
      %v1545 = vpack.c.bf16 %v1534, %v1534
      %v1546 = vpack.c.bf16 %v1535, %v1535
      %v1547 = vpack.c.bf16 %v1536, %v1536
      %v1548 = vpack.c.bf16 %v1537, %v1537
      %v1549 = vpack.c.bf16 %v1538, %v1538
      %v1550 = vpack.c.bf16 %v1539, %v1539
      %v1551 = vpack.c.bf16 %v1540, %v1540
      %v1552 = vpack.c.bf16 %v1541, %v1541
      %v1553 = vlaneseq
      %v1554 = vshrl.u32 %v1553, 7
      %v1555 = vadd.s32 %v1554, 8
      %v1556 = vadd.s32 %v1554, 16
      %v1557 = vadd.s32 %v1554, 24
      %v1558 = vadd.s32 %v1554, 32
      %v1559 = vadd.s32 %v1554, 40
      %v1560 = vadd.s32 %v1554, 48
      %v1561 = vadd.s32 %v1554, 56
      %v1562 = vadd.s32 %v1554, 64
      %v1563 = vadd.s32 %v1554, 72
      %v1564 = vadd.s32 %v1554, 80
      %v1565 = vlaneseq
      %v1566 = vand.u32 %v1565, 127
      %vm1567 = vcmp.le.s32.totalorder %v1566, %v1554
      %vm1568 = vcmp.le.s32.totalorder %v1566, %v1555
      %vm1569 = vcmp.le.s32.totalorder %v1566, %v1556
      %vm1570 = vcmp.le.s32.totalorder %v1566, %v1557
      %vm1571 = vcmp.le.s32.totalorder %v1566, %v1558
      %vm1572 = vcmp.le.s32.totalorder %v1566, %v1559
      %vm1573 = vcmp.le.s32.totalorder %v1566, %v1560
      %vm1574 = vcmp.le.s32.totalorder %v1566, %v1561
      %vm1575 = vcmp.le.s32.totalorder %v1566, %v1562
      %vm1576 = vcmp.le.s32.totalorder %v1566, %v1563
      %vm1577 = vcmp.le.s32.totalorder %v1566, %v1564
      %v1589 = vunpack.c.l.b16 %v1432
      %v1590 = vunpack.c.l.b16 %v1433
      %v1591 = vunpack.c.l.b16 %v1434
      %v1592 = vunpack.c.l.b16 %v1435
      %v1593 = vunpack.c.l.b16 %v1436
      %v1594 = vunpack.c.l.b16 %v1437
      %v1595 = vunpack.c.l.b16 %v1438
      %v1596 = vunpack.c.l.b16 %v1439
      %v1597 = vunpack.c.l.b16 %v1440
      %v1598 = vunpack.c.l.b16 %v1441
      %v1599 = vunpack.c.l.b16 %v1442
      %v1600 = vpack.c.b16 %v1590, %v1589
      %v1601 = vpack.c.b16 %v1592, %v1591
      %v1602 = vpack.c.b16 %v1594, %v1593
      %v1603 = vpack.c.b16 %v1596, %v1595
      %v1604 = vpack.c.b16 %v1598, %v1597
      %v1605 = vpack.c.b16 %v1599, %v1599
      %v1617 = vunpack.c.l.b16 %v1542
      %v1618 = vunpack.c.l.b16 %v1543
      %v1619 = vunpack.c.l.b16 %v1544
      %v1620 = vunpack.c.l.b16 %v1545
      %v1621 = vunpack.c.l.b16 %v1546
      %v1622 = vunpack.c.l.b16 %v1547
      %v1623 = vunpack.c.l.b16 %v1548
      %v1624 = vunpack.c.l.b16 %v1549
      %v1625 = vunpack.c.l.b16 %v1550
      %v1626 = vunpack.c.l.b16 %v1551
      %v1627 = vunpack.c.l.b16 %v1552
      %v1628 = vpack.c.b16 %v1618, %v1617
      %v1629 = vpack.c.b16 %v1620, %v1619
      %v1630 = vpack.c.b16 %v1622, %v1621
      %v1631 = vpack.c.b16 %v1624, %v1623
      %v1632 = vpack.c.b16 %v1626, %v1625
      %v1633 = vpack.c.b16 %v1627, %v1627
      %vm1634 = vcmask 261120
      %v1636 = vsel %vm1634, %v1600, 0
      %v1639 = vsel %vm1634, %v1601, 0
      %v1642 = vsel %vm1634, %v1602, 0
      %v1645 = vsel %vm1634, %v1603, 0
      %v1648 = vsel %vm1634, %v1604, 0
      %v1651 = vsel %vm1634, %v1605, 0
      %v1654 = vsel %vm1634, %v1628, 0
      %v1657 = vsel %vm1634, %v1629, 0
      %v1660 = vsel %vm1634, %v1630, 0
      %v1663 = vsel %vm1634, %v1631, 0
      %v1666 = vsel %vm1634, %v1632, 0
      %v1669 = vsel %vm1634, %v1633, 0
      %1671 = vmatpush.bf16.xpose.msra.mxu0 0
      %1672 = vmatpush.bf16.xpose.msra.mxu0 0
      %1673 = vmatpush.bf16.xpose.msra.mxu0 %v1669
      %1674 = vmatpush.bf16.xpose.msra.mxu0 %v1666
      %1675 = vmatpush.bf16.xpose.msra.mxu0 %v1663
      %1676 = vmatpush.bf16.xpose.msra.mxu0 %v1660
      %1677 = vmatpush.bf16.xpose.msra.mxu0 %v1657
      %1678 = vmatpush.bf16.xpose.msra.mxu0 %v1654
      %1679 = vmatmul.bf16.gmra.mxu0 %v1636
      %v1680 = vpop.f32.mrf.mxu0
      %v1681 = vadd.f32 0.0, %v1680
      %v1682 = vpop.f32.mrf.mxu0
      %v1683 = vadd.f32 0.0, %v1682
      %1684 = vmatmul.bf16.gmra.mxu0 %v1639
      %v1685 = vpop.f32.mrf.mxu0
      %v1686 = vadd.f32 0.0, %v1685
      %v1687 = vpop.f32.mrf.mxu0
      %v1688 = vadd.f32 0.0, %v1687
      %1689 = vmatmul.bf16.gmra.mxu0 %v1642
      %v1690 = vpop.f32.mrf.mxu0
      %v1691 = vadd.f32 0.0, %v1690
      %v1692 = vpop.f32.mrf.mxu0
      %v1693 = vadd.f32 0.0, %v1692
      %1694 = vmatmul.bf16.gmra.mxu0 %v1645
      %v1695 = vpop.f32.mrf.mxu0
      %v1696 = vadd.f32 0.0, %v1695
      %v1697 = vpop.f32.mrf.mxu0
      %v1698 = vadd.f32 0.0, %v1697
      %1699 = vmatmul.bf16.gmra.mxu0 %v1648
      %v1700 = vpop.f32.mrf.mxu0
      %v1701 = vadd.f32 0.0, %v1700
      %v1702 = vpop.f32.mrf.mxu0
      %v1703 = vadd.f32 0.0, %v1702
      %1704 = vmatmul.bf16.gmra.mxu0 %v1651
      %v1705 = vpop.f32.mrf.mxu0
      %v1706 = vadd.f32 0.0, %v1705
      %v1707 = vpop.f32.mrf.mxu0
      %1708 = vdwg.mxu0
      %v1709 = vsel %vm1567, %v1681, -1e+30
      %v1710 = vsel %vm1568, %v1683, -1e+30
      %v1711 = vsel %vm1569, %v1686, -1e+30
      %v1712 = vsel %vm1570, %v1688, -1e+30
      %v1713 = vsel %vm1571, %v1691, -1e+30
      %v1714 = vsel %vm1572, %v1693, -1e+30
      %v1715 = vsel %vm1573, %v1696, -1e+30
      %v1716 = vsel %vm1574, %v1698, -1e+30
      %v1717 = vsel %vm1575, %v1701, -1e+30
      %v1718 = vsel %vm1576, %v1703, -1e+30
      %v1719 = vsel %vm1577, %v1706, -1e+30
      %vm1720 = vcmask 719872
      %v1721 = vsel %vm1720, %v1709, -inf
      %1722 = vmax.xlane.f32.xlu0 %v1721
      %v1723 = vpop.xlane.xlu0 %1722
      %v1724 = vsel %vm1720, %v1710, -inf
      %1725 = vmax.xlane.f32.xlu0 %v1724
      %v1726 = vpop.xlane.xlu0 %1725
      %v1727 = vsel %vm1720, %v1711, -inf
      %1728 = vmax.xlane.f32.xlu0 %v1727
      %v1729 = vpop.xlane.xlu0 %1728
      %v1730 = vsel %vm1720, %v1712, -inf
      %1731 = vmax.xlane.f32.xlu0 %v1730
      %v1732 = vpop.xlane.xlu0 %1731
      %v1733 = vsel %vm1720, %v1713, -inf
      %1734 = vmax.xlane.f32.xlu0 %v1733
      %v1735 = vpop.xlane.xlu0 %1734
      %v1736 = vsel %vm1720, %v1714, -inf
      %1737 = vmax.xlane.f32.xlu0 %v1736
      %v1738 = vpop.xlane.xlu0 %1737
      %v1739 = vsel %vm1720, %v1715, -inf
      %1740 = vmax.xlane.f32.xlu0 %v1739
      %v1741 = vpop.xlane.xlu0 %1740
      %v1742 = vsel %vm1720, %v1716, -inf
      %1743 = vmax.xlane.f32.xlu0 %v1742
      %v1744 = vpop.xlane.xlu0 %1743
      %v1745 = vsel %vm1720, %v1717, -inf
      %1746 = vmax.xlane.f32.xlu0 %v1745
      %v1747 = vpop.xlane.xlu0 %1746
      %v1748 = vsel %vm1720, %v1718, -inf
      %1749 = vmax.xlane.f32.xlu0 %v1748
      %v1750 = vpop.xlane.xlu0 %1749
      %v1751 = vsel %vm1720, %v1719, -inf
      %1752 = vmax.xlane.f32.xlu0 %v1751
      %v1753 = vpop.xlane.xlu0 %1752
      %v1754 = vsub.f32 %v1709, %v1723
      %v1755 = vsub.f32 %v1710, %v1726
      %v1756 = vsub.f32 %v1711, %v1729
      %v1757 = vsub.f32 %v1712, %v1732
      %v1758 = vsub.f32 %v1713, %v1735
      %v1759 = vsub.f32 %v1714, %v1738
      %v1760 = vsub.f32 %v1715, %v1741
      %v1761 = vsub.f32 %v1716, %v1744
      %v1762 = vsub.f32 %v1717, %v1747
      %v1763 = vsub.f32 %v1718, %v1750
      %v1764 = vsub.f32 %v1719, %v1753
      %v1765 = vmul.f32 %v1754, 1.442695
      %v1766 = vpow.pop %v1765
      %v1767 = vmul.f32 %v1755, 1.442695
      %v1768 = vpow.pop %v1767
      %v1769 = vmul.f32 %v1756, 1.442695
      %v1770 = vpow.pop %v1769
      %v1771 = vmul.f32 %v1757, 1.442695
      %v1772 = vpow.pop %v1771
      %v1773 = vmul.f32 %v1758, 1.442695
      %v1774 = vpow.pop %v1773
      %v1775 = vmul.f32 %v1759, 1.442695
      %v1776 = vpow.pop %v1775
      %v1777 = vmul.f32 %v1760, 1.442695
      %v1778 = vpow.pop %v1777
      %v1779 = vmul.f32 %v1761, 1.442695
      %v1780 = vpow.pop %v1779
      %v1781 = vmul.f32 %v1762, 1.442695
      %v1782 = vpow.pop %v1781
      %v1783 = vmul.f32 %v1763, 1.442695
      %v1784 = vpow.pop %v1783
      %v1785 = vmul.f32 %v1764, 1.442695
      %v1786 = vpow.pop %v1785
      %v1787 = vsel %vm1720, %v1766, 0.0
      %1788 = vadd.xlane.f32.xlu0 %v1787
      %v1789 = vpop.xlane.xlu0 %1788
      %v1790 = vsel %vm1720, %v1768, 0.0
      %1791 = vadd.xlane.f32.xlu0 %v1790
      %v1792 = vpop.xlane.xlu0 %1791
      %v1793 = vsel %vm1720, %v1770, 0.0
      %1794 = vadd.xlane.f32.xlu0 %v1793
      %v1795 = vpop.xlane.xlu0 %1794
      %v1796 = vsel %vm1720, %v1772, 0.0
      %1797 = vadd.xlane.f32.xlu0 %v1796
      %v1798 = vpop.xlane.xlu0 %1797
      %v1799 = vsel %vm1720, %v1774, 0.0
      %1800 = vadd.xlane.f32.xlu0 %v1799
      %v1801 = vpop.xlane.xlu0 %1800
      %v1802 = vsel %vm1720, %v1776, 0.0
      %1803 = vadd.xlane.f32.xlu0 %v1802
      %v1804 = vpop.xlane.xlu0 %1803
      %v1805 = vsel %vm1720, %v1778, 0.0
      %1806 = vadd.xlane.f32.xlu0 %v1805
      %v1807 = vpop.xlane.xlu0 %1806
      %v1808 = vsel %vm1720, %v1780, 0.0
      %1809 = vadd.xlane.f32.xlu0 %v1808
      %v1810 = vpop.xlane.xlu0 %1809
      %v1811 = vsel %vm1720, %v1782, 0.0
      %1812 = vadd.xlane.f32.xlu0 %v1811
      %v1813 = vpop.xlane.xlu0 %1812
      %v1814 = vsel %vm1720, %v1784, 0.0
      %1815 = vadd.xlane.f32.xlu0 %v1814
      %v1816 = vpop.xlane.xlu0 %1815
      %v1817 = vsel %vm1720, %v1786, 0.0
      %1818 = vadd.xlane.f32.xlu0 %v1817
      %v1819 = vpop.xlane.xlu0 %1818
      %v1820 = vrcp.pop %v1789
      %v1821 = vrcp.pop %v1792
      %v1822 = vrcp.pop %v1795
      %v1823 = vrcp.pop %v1798
      %v1824 = vrcp.pop %v1801
      %v1825 = vrcp.pop %v1804
      %v1826 = vrcp.pop %v1807
      %v1827 = vrcp.pop %v1810
      %v1828 = vrcp.pop %v1813
      %v1829 = vrcp.pop %v1816
      %v1830 = vrcp.pop %v1819
      %v1831 = vmul.f32 %v1766, %v1820
      %v1832 = vmul.f32 %v1768, %v1821
      %v1833 = vmul.f32 %v1770, %v1822
      %v1834 = vmul.f32 %v1772, %v1823
      %v1835 = vmul.f32 %v1774, %v1824
      %v1836 = vmul.f32 %v1776, %v1825
      %v1837 = vmul.f32 %v1778, %v1826
      %v1838 = vmul.f32 %v1780, %v1827
      %v1839 = vmul.f32 %v1782, %v1828
      %v1840 = vmul.f32 %v1784, %v1829
      %v1841 = vmul.f32 %v1786, %v1830
      %v1842 = vpack.c.bf16 %v1832, %v1831
      %v1843 = vpack.c.bf16 %v1834, %v1833
      %v1844 = vpack.c.bf16 %v1836, %v1835
      %v1845 = vpack.c.bf16 %v1838, %v1837
      %v1846 = vpack.c.bf16 %v1840, %v1839
      %v1847 = vpack.c.bf16 %v1841, %v1841
      %v1859 = vunpack.c.l.b16 %v1278
      %v1860 = vunpack.c.l.b16 %v1279
      %v1861 = vunpack.c.l.b16 %v1280
      %v1862 = vunpack.c.l.b16 %v1281
      %v1863 = vunpack.c.l.b16 %v1282
      %v1864 = vunpack.c.l.b16 %v1283
      %v1865 = vunpack.c.l.b16 %v1284
      %v1866 = vunpack.c.l.b16 %v1285
      %v1867 = vunpack.c.l.b16 %v1286
      %v1868 = vunpack.c.l.b16 %v1287
      %v1869 = vunpack.c.l.b16 %v1288
      %v1870 = vpack.c.b16 %v1860, %v1859
      %v1871 = vpack.c.b16 %v1862, %v1861
      %v1872 = vpack.c.b16 %v1864, %v1863
      %v1873 = vpack.c.b16 %v1866, %v1865
      %v1874 = vpack.c.b16 %v1868, %v1867
      %v1875 = vpack.c.b16 %v1869, %v1869
      %v1882 = vsel %vm1720, %v1842, 0
      %v1885 = vsel %vm1720, %v1843, 0
      %v1888 = vsel %vm1720, %v1844, 0
      %v1891 = vsel %vm1720, %v1845, 0
      %v1894 = vsel %vm1720, %v1846, 0
      %v1897 = vsel %vm1720, %v1847, 0
      %vm1899 = vcmask 1043456
      %v1901 = vsel %vm1899, %v1875, 0
      %1903 = vmatpush.bf16.msra.mxu0 0
      %1904 = vmatpush.bf16.msra.mxu0 0
      %1905 = vmatpush.bf16.msra.mxu0 %v1901
      %1906 = vmatpush.bf16.msra.mxu0 %v1874
      %1907 = vmatpush.bf16.msra.mxu0 %v1873
      %1908 = vmatpush.bf16.msra.mxu0 %v1872
      %1909 = vmatpush.bf16.msra.mxu0 %v1871
      %1910 = vmatpush.bf16.msra.mxu0 %v1870
      %1911 = vmatmul.bf16.gmra.mxu0 %v1882
      %v1912 = vpop.f32.mrf.mxu0
      %v1913 = vadd.f32 0.0, %v1912
      %v1914 = vpop.f32.mrf.mxu0
      %v1915 = vadd.f32 0.0, %v1914
      %1916 = vmatmul.bf16.gmra.mxu0 %v1885
      %v1917 = vpop.f32.mrf.mxu0
      %v1918 = vadd.f32 0.0, %v1917
      %v1919 = vpop.f32.mrf.mxu0
      %v1920 = vadd.f32 0.0, %v1919
      %1921 = vmatmul.bf16.gmra.mxu0 %v1888
      %v1922 = vpop.f32.mrf.mxu0
      %v1923 = vadd.f32 0.0, %v1922
      %v1924 = vpop.f32.mrf.mxu0
      %v1925 = vadd.f32 0.0, %v1924
      %1926 = vmatmul.bf16.gmra.mxu0 %v1891
      %v1927 = vpop.f32.mrf.mxu0
      %v1928 = vadd.f32 0.0, %v1927
      %v1929 = vpop.f32.mrf.mxu0
      %v1930 = vadd.f32 0.0, %v1929
      %1931 = vmatmul.bf16.gmra.mxu0 %v1894
      %v1932 = vpop.f32.mrf.mxu0
      %v1933 = vadd.f32 0.0, %v1932
      %v1934 = vpop.f32.mrf.mxu0
      %v1935 = vadd.f32 0.0, %v1934
      %1936 = vmatmul.bf16.gmra.mxu0 %v1897
      %v1937 = vpop.f32.mrf.mxu0
      %v1938 = vadd.f32 0.0, %v1937
      %v1939 = vpop.f32.mrf.mxu0
      %1940 = vdwg.mxu0
      %v1941 = vpack.c.bf16 %v1915, %v1913
      %v1942 = vpack.c.bf16 %v1920, %v1918
      %v1943 = vpack.c.bf16 %v1925, %v1923
      %v1944 = vpack.c.bf16 %v1930, %v1928
      %v1945 = vpack.c.bf16 %v1935, %v1933
      %v1946 = vpack.c.bf16 %v1938, %v1938
      %v1947 = vld [vmem:[%s649] sm:$0xf]
      %v1948 = vld [vmem:[%s649 + $0x4] sm:$0xf]
      %v1949 = vld [vmem:[%s649 + $0x8] sm:$0xf]
      %v1950 = vld [vmem:[%s649 + $0xc] sm:$0xf]
      %1951 = vrot.lane.b32.xlu0 %v1600, 96
      %v1952 = vpop.permute.xlu0 %1951
      %1953 = vrot.lane.b32.xlu0 %v1601, 96
      %v1954 = vpop.permute.xlu0 %1953
      %1955 = vrot.lane.b32.xlu0 %v1602, 96
      %v1956 = vpop.permute.xlu0 %1955
      %1957 = vrot.lane.b32.xlu0 %v1603, 96
      %v1958 = vpop.permute.xlu0 %1957
      %1959 = vrot.lane.b32.xlu0 %v1604, 96
      %v1960 = vpop.permute.xlu0 %1959
      %1961 = vrot.lane.b32.xlu0 %v1605, 96
      %v1962 = vpop.permute.xlu0 %1961
      %1963 = vrot.lane.b32.xlu0 %v1628, 96
      %v1964 = vpop.permute.xlu0 %1963
      %1965 = vrot.lane.b32.xlu0 %v1629, 96
      %v1966 = vpop.permute.xlu0 %1965
      %1967 = vrot.lane.b32.xlu0 %v1630, 96
      %v1968 = vpop.permute.xlu0 %1967
      %1969 = vrot.lane.b32.xlu0 %v1631, 96
      %v1970 = vpop.permute.xlu0 %1969
      %1971 = vrot.lane.b32.xlu0 %v1632, 96
      %v1972 = vpop.permute.xlu0 %1971
      %1973 = vrot.lane.b32.xlu0 %v1633, 96
      %v1974 = vpop.permute.xlu0 %1973
      %v1976 = vsel %vm1634, %v1952, 0
      %v1979 = vsel %vm1634, %v1954, 0
      %v1982 = vsel %vm1634, %v1956, 0
      %v1985 = vsel %vm1634, %v1958, 0
      %v1988 = vsel %vm1634, %v1960, 0
      %v1991 = vsel %vm1634, %v1962, 0
      %v1994 = vsel %vm1634, %v1964, 0
      %v1997 = vsel %vm1634, %v1966, 0
      %v2000 = vsel %vm1634, %v1968, 0
      %v2003 = vsel %vm1634, %v1970, 0
      %v2006 = vsel %vm1634, %v1972, 0
      %v2009 = vsel %vm1634, %v1974, 0
      %2011 = vmatpush.bf16.xpose.msra.mxu0 0
      %2012 = vmatpush.bf16.xpose.msra.mxu0 0
      %2013 = vmatpush.bf16.xpose.msra.mxu0 %v2009
      %2014 = vmatpush.bf16.xpose.msra.mxu0 %v2006
      %2015 = vmatpush.bf16.xpose.msra.mxu0 %v2003
      %2016 = vmatpush.bf16.xpose.msra.mxu0 %v2000
      %2017 = vmatpush.bf16.xpose.msra.mxu0 %v1997
      %2018 = vmatpush.bf16.xpose.msra.mxu0 %v1994
      %2019 = vmatmul.bf16.gmra.mxu0 %v1976
      %v2020 = vpop.f32.mrf.mxu0
      %v2021 = vadd.f32 0.0, %v2020
      %v2022 = vpop.f32.mrf.mxu0
      %v2023 = vadd.f32 0.0, %v2022
      %2024 = vmatmul.bf16.gmra.mxu0 %v1979
      %v2025 = vpop.f32.mrf.mxu0
      %v2026 = vadd.f32 0.0, %v2025
      %v2027 = vpop.f32.mrf.mxu0
      %v2028 = vadd.f32 0.0, %v2027
      %2029 = vmatmul.bf16.gmra.mxu0 %v1982
      %v2030 = vpop.f32.mrf.mxu0
      %v2031 = vadd.f32 0.0, %v2030
      %v2032 = vpop.f32.mrf.mxu0
      %v2033 = vadd.f32 0.0, %v2032
      %2034 = vmatmul.bf16.gmra.mxu0 %v1985
      %v2035 = vpop.f32.mrf.mxu0
      %v2036 = vadd.f32 0.0, %v2035
      %v2037 = vpop.f32.mrf.mxu0
      %v2038 = vadd.f32 0.0, %v2037
      %2039 = vmatmul.bf16.gmra.mxu0 %v1988
      %v2040 = vpop.f32.mrf.mxu0
      %v2041 = vadd.f32 0.0, %v2040
      %v2042 = vpop.f32.mrf.mxu0
      %v2043 = vadd.f32 0.0, %v2042
      %2044 = vmatmul.bf16.gmra.mxu0 %v1991
      %v2045 = vpop.f32.mrf.mxu0
      %v2046 = vadd.f32 0.0, %v2045
      %v2047 = vpop.f32.mrf.mxu0
      %2048 = vdwg.mxu0
      %v2049 = vsel %vm1567, %v2021, -1e+30
      %v2050 = vsel %vm1568, %v2023, -1e+30
      %v2051 = vsel %vm1569, %v2026, -1e+30
      %v2052 = vsel %vm1570, %v2028, -1e+30
      %v2053 = vsel %vm1571, %v2031, -1e+30
      %v2054 = vsel %vm1572, %v2033, -1e+30
      %v2055 = vsel %vm1573, %v2036, -1e+30
      %v2056 = vsel %vm1574, %v2038, -1e+30
      %v2057 = vsel %vm1575, %v2041, -1e+30
      %v2058 = vsel %vm1576, %v2043, -1e+30
      %v2059 = vsel %vm1577, %v2046, -1e+30
      %v2060 = vsel %vm1720, %v2049, -inf
      %2061 = vmax.xlane.f32.xlu0 %v2060
      %v2062 = vpop.xlane.xlu0 %2061
      %v2063 = vsel %vm1720, %v2050, -inf
      %2064 = vmax.xlane.f32.xlu0 %v2063
      %v2065 = vpop.xlane.xlu0 %2064
      %v2066 = vsel %vm1720, %v2051, -inf
      %2067 = vmax.xlane.f32.xlu0 %v2066
      %v2068 = vpop.xlane.xlu0 %2067
      %v2069 = vsel %vm1720, %v2052, -inf
      %2070 = vmax.xlane.f32.xlu0 %v2069
      %v2071 = vpop.xlane.xlu0 %2070
      %v2072 = vsel %vm1720, %v2053, -inf
      %2073 = vmax.xlane.f32.xlu0 %v2072
      %v2074 = vpop.xlane.xlu0 %2073
      %v2075 = vsel %vm1720, %v2054, -inf
      %2076 = vmax.xlane.f32.xlu0 %v2075
      %v2077 = vpop.xlane.xlu0 %2076
      %v2078 = vsel %vm1720, %v2055, -inf
      %2079 = vmax.xlane.f32.xlu0 %v2078
      %v2080 = vpop.xlane.xlu0 %2079
      %v2081 = vsel %vm1720, %v2056, -inf
      %2082 = vmax.xlane.f32.xlu0 %v2081
      %v2083 = vpop.xlane.xlu0 %2082
      %v2084 = vsel %vm1720, %v2057, -inf
      %2085 = vmax.xlane.f32.xlu0 %v2084
      %v2086 = vpop.xlane.xlu0 %2085
      %v2087 = vsel %vm1720, %v2058, -inf
      %2088 = vmax.xlane.f32.xlu0 %v2087
      %v2089 = vpop.xlane.xlu0 %2088
      %v2090 = vsel %vm1720, %v2059, -inf
      %2091 = vmax.xlane.f32.xlu0 %v2090
      %v2092 = vpop.xlane.xlu0 %2091
      %v2093 = vsub.f32 %v2049, %v2062
      %v2094 = vsub.f32 %v2050, %v2065
      %v2095 = vsub.f32 %v2051, %v2068
      %v2096 = vsub.f32 %v2052, %v2071
      %v2097 = vsub.f32 %v2053, %v2074
      %v2098 = vsub.f32 %v2054, %v2077
      %v2099 = vsub.f32 %v2055, %v2080
      %v2100 = vsub.f32 %v2056, %v2083
      %v2101 = vsub.f32 %v2057, %v2086
      %v2102 = vsub.f32 %v2058, %v2089
      %v2103 = vsub.f32 %v2059, %v2092
      %v2104 = vmul.f32 %v2093, 1.442695
      %v2105 = vpow.pop %v2104
      %v2106 = vmul.f32 %v2094, 1.442695
      %v2107 = vpow.pop %v2106
      %v2108 = vmul.f32 %v2095, 1.442695
      %v2109 = vpow.pop %v2108
      %v2110 = vmul.f32 %v2096, 1.442695
      %v2111 = vpow.pop %v2110
      %v2112 = vmul.f32 %v2097, 1.442695
      %v2113 = vpow.pop %v2112
      %v2114 = vmul.f32 %v2098, 1.442695
      %v2115 = vpow.pop %v2114
      %v2116 = vmul.f32 %v2099, 1.442695
      %v2117 = vpow.pop %v2116
      %v2118 = vmul.f32 %v2100, 1.442695
      %v2119 = vpow.pop %v2118
      %v2120 = vmul.f32 %v2101, 1.442695
      %v2121 = vpow.pop %v2120
      %v2122 = vmul.f32 %v2102, 1.442695
      %v2123 = vpow.pop %v2122
      %v2124 = vmul.f32 %v2103, 1.442695
      %v2125 = vpow.pop %v2124
      %v2126 = vsel %vm1720, %v2105, 0.0
      %2127 = vadd.xlane.f32.xlu0 %v2126
      %v2128 = vpop.xlane.xlu0 %2127
      %v2129 = vsel %vm1720, %v2107, 0.0
      %2130 = vadd.xlane.f32.xlu0 %v2129
      %v2131 = vpop.xlane.xlu0 %2130
      %v2132 = vsel %vm1720, %v2109, 0.0
      %2133 = vadd.xlane.f32.xlu0 %v2132
      %v2134 = vpop.xlane.xlu0 %2133
      %v2135 = vsel %vm1720, %v2111, 0.0
      %2136 = vadd.xlane.f32.xlu0 %v2135
      %v2137 = vpop.xlane.xlu0 %2136
      %v2138 = vsel %vm1720, %v2113, 0.0
      %2139 = vadd.xlane.f32.xlu0 %v2138
      %v2140 = vpop.xlane.xlu0 %2139
      %v2141 = vsel %vm1720, %v2115, 0.0
      %2142 = vadd.xlane.f32.xlu0 %v2141
      %v2143 = vpop.xlane.xlu0 %2142
      %v2144 = vsel %vm1720, %v2117, 0.0
      %2145 = vadd.xlane.f32.xlu0 %v2144
      %v2146 = vpop.xlane.xlu0 %2145
      %v2147 = vsel %vm1720, %v2119, 0.0
      %2148 = vadd.xlane.f32.xlu0 %v2147
      %v2149 = vpop.xlane.xlu0 %2148
      %v2150 = vsel %vm1720, %v2121, 0.0
      %2151 = vadd.xlane.f32.xlu0 %v2150
      %v2152 = vpop.xlane.xlu0 %2151
      %v2153 = vsel %vm1720, %v2123, 0.0
      %2154 = vadd.xlane.f32.xlu0 %v2153
      %v2155 = vpop.xlane.xlu0 %2154
      %v2156 = vsel %vm1720, %v2125, 0.0
      %2157 = vadd.xlane.f32.xlu0 %v2156
      %v2158 = vpop.xlane.xlu0 %2157
      %v2159 = vrcp.pop %v2128
      %v2160 = vrcp.pop %v2131
      %v2161 = vrcp.pop %v2134
      %v2162 = vrcp.pop %v2137
      %v2163 = vrcp.pop %v2140
      %v2164 = vrcp.pop %v2143
      %v2165 = vrcp.pop %v2146
      %v2166 = vrcp.pop %v2149
      %v2167 = vrcp.pop %v2152
      %v2168 = vrcp.pop %v2155
      %v2169 = vrcp.pop %v2158
      %v2170 = vmul.f32 %v2105, %v2159
      %v2171 = vmul.f32 %v2107, %v2160
      %v2172 = vmul.f32 %v2109, %v2161
      %v2173 = vmul.f32 %v2111, %v2162
      %v2174 = vmul.f32 %v2113, %v2163
      %v2175 = vmul.f32 %v2115, %v2164
      %v2176 = vmul.f32 %v2117, %v2165
      %v2177 = vmul.f32 %v2119, %v2166
      %v2178 = vmul.f32 %v2121, %v2167
      %v2179 = vmul.f32 %v2123, %v2168
      %v2180 = vmul.f32 %v2125, %v2169
      %v2181 = vpack.c.bf16 %v2171, %v2170
      %v2182 = vpack.c.bf16 %v2173, %v2172
      %v2183 = vpack.c.bf16 %v2175, %v2174
      %v2184 = vpack.c.bf16 %v2177, %v2176
      %v2185 = vpack.c.bf16 %v2179, %v2178
      %v2186 = vpack.c.bf16 %v2180, %v2180
      %2187 = vrot.lane.b32.xlu0 %v1870, 96
      %v2188 = vpop.permute.xlu0 %2187
      %2189 = vrot.lane.b32.xlu0 %v1871, 96
      %v2190 = vpop.permute.xlu0 %2189
      %2191 = vrot.lane.b32.xlu0 %v1872, 96
      %v2192 = vpop.permute.xlu0 %2191
      %2193 = vrot.lane.b32.xlu0 %v1873, 96
      %v2194 = vpop.permute.xlu0 %2193
      %2195 = vrot.lane.b32.xlu0 %v1874, 96
      %v2196 = vpop.permute.xlu0 %2195
      %2197 = vrot.lane.b32.xlu0 %v1875, 96
      %v2198 = vpop.permute.xlu0 %2197
      %v2205 = vsel %vm1720, %v2181, 0
      %v2208 = vsel %vm1720, %v2182, 0
      %v2211 = vsel %vm1720, %v2183, 0
      %v2214 = vsel %vm1720, %v2184, 0
      %v2217 = vsel %vm1720, %v2185, 0
      %v2220 = vsel %vm1720, %v2186, 0
      %v2223 = vsel %vm1899, %v2198, 0
      %2225 = vmatpush.bf16.msra.mxu0 0
      %2226 = vmatpush.bf16.msra.mxu0 0
      %2227 = vmatpush.bf16.msra.mxu0 %v2223
      %2228 = vmatpush.bf16.msra.mxu0 %v2196
      %2229 = vmatpush.bf16.msra.mxu0 %v2194
      %2230 = vmatpush.bf16.msra.mxu0 %v2192
      %2231 = vmatpush.bf16.msra.mxu0 %v2190
      %2232 = vmatpush.bf16.msra.mxu0 %v2188
      %2233 = vmatmul.bf16.gmra.mxu0 %v2205
      %v2234 = vpop.f32.mrf.mxu0
      %v2235 = vadd.f32 0.0, %v2234
      %v2236 = vpop.f32.mrf.mxu0
      %v2237 = vadd.f32 0.0, %v2236
      %2238 = vmatmul.bf16.gmra.mxu0 %v2208
      %v2239 = vpop.f32.mrf.mxu0
      %v2240 = vadd.f32 0.0, %v2239
      %v2241 = vpop.f32.mrf.mxu0
      %v2242 = vadd.f32 0.0, %v2241
      %2243 = vmatmul.bf16.gmra.mxu0 %v2211
      %v2244 = vpop.f32.mrf.mxu0
      %v2245 = vadd.f32 0.0, %v2244
      %v2246 = vpop.f32.mrf.mxu0
      %v2247 = vadd.f32 0.0, %v2246
      %2248 = vmatmul.bf16.gmra.mxu0 %v2214
      %v2249 = vpop.f32.mrf.mxu0
      %v2250 = vadd.f32 0.0, %v2249
      %v2251 = vpop.f32.mrf.mxu0
      %v2252 = vadd.f32 0.0, %v2251
      %2253 = vmatmul.bf16.gmra.mxu0 %v2217
      %v2254 = vpop.f32.mrf.mxu0
      %v2255 = vadd.f32 0.0, %v2254
      %v2256 = vpop.f32.mrf.mxu0
      %v2257 = vadd.f32 0.0, %v2256
      %2258 = vmatmul.bf16.gmra.mxu0 %v2220
      %v2259 = vpop.f32.mrf.mxu0
      %v2260 = vadd.f32 0.0, %v2259
      %v2261 = vpop.f32.mrf.mxu0
      %2262 = vdwg.mxu0
      %v2263 = vpack.c.bf16 %v2237, %v2235
      %v2264 = vpack.c.bf16 %v2242, %v2240
      %v2265 = vpack.c.bf16 %v2247, %v2245
      %v2266 = vpack.c.bf16 %v2252, %v2250
      %v2267 = vpack.c.bf16 %v2257, %v2255
      %v2268 = vpack.c.bf16 %v2260, %v2260
      %v2269 = vld [vmem:[%s649 + $0x10] sm:$0xf]
      %v2270 = vld [vmem:[%s649 + $0x14] sm:$0xf]
      %v2271 = vld [vmem:[%s649 + $0x18] sm:$0xf]
      %v2272 = vld [vmem:[%s649 + $0x1c] sm:$0xf]
      %v2277 = vunpack.c.l.b16 %v2269
      %v2278 = vunpack.c.l.b16 %v2270
      %v2279 = vunpack.c.l.b16 %v2271
      %v2280 = vunpack.c.l.b16 %v2272
      %v2281 = vpack.c.b16 %v2278, %v2277
      %v2282 = vpack.c.b16 %v2280, %v2279
      %v2286 = vsel %vm1634, %v2263, 0
      %v2289 = vsel %vm1634, %v2264, 0
      %v2292 = vsel %vm1634, %v2265, 0
      %v2295 = vsel %vm1634, %v2266, 0
      %v2298 = vsel %vm1634, %v2267, 0
      %v2301 = vsel %vm1634, %v2268, 0
      %2303 = vmatpush.bf16.msra.mxu0 0
      %2304 = vmatpush.bf16.msra.mxu0 0
      %2305 = vmatpush.bf16.msra.mxu0 0
      %2306 = vmatpush.bf16.msra.mxu0 0
      %2307 = vmatpush.bf16.msra.mxu0 0
      %2308 = vmatpush.bf16.msra.mxu0 0
      %2309 = vmatpush.bf16.msra.mxu0 %v2282
      %2310 = vmatpush.bf16.msra.mxu0 %v2281
      %2311 = vmatmul.bf16.gmra.mxu0 %v2286
      %v2312 = vpop.f32.mrf.mxu0
      %v2313 = vadd.f32 0.0, %v2312
      %v2314 = vpop.f32.mrf.mxu0
      %v2315 = vadd.f32 0.0, %v2314
      %2316 = vmatmul.bf16.gmra.mxu0 %v2289
      %v2317 = vpop.f32.mrf.mxu0
      %v2318 = vadd.f32 0.0, %v2317
      %v2319 = vpop.f32.mrf.mxu0
      %v2320 = vadd.f32 0.0, %v2319
      %2321 = vmatmul.bf16.gmra.mxu0 %v2292
      %v2322 = vpop.f32.mrf.mxu0
      %v2323 = vadd.f32 0.0, %v2322
      %v2324 = vpop.f32.mrf.mxu0
      %v2325 = vadd.f32 0.0, %v2324
      %2326 = vmatmul.bf16.gmra.mxu0 %v2295
      %v2327 = vpop.f32.mrf.mxu0
      %v2328 = vadd.f32 0.0, %v2327
      %v2329 = vpop.f32.mrf.mxu0
      %v2330 = vadd.f32 0.0, %v2329
      %2331 = vmatmul.bf16.gmra.mxu0 %v2298
      %v2332 = vpop.f32.mrf.mxu0
      %v2333 = vadd.f32 0.0, %v2332
      %v2334 = vpop.f32.mrf.mxu0
      %v2335 = vadd.f32 0.0, %v2334
      %2336 = vmatmul.bf16.gmra.mxu0 %v2301
      %v2337 = vpop.f32.mrf.mxu0
      %v2338 = vadd.f32 0.0, %v2337
      %v2339 = vpop.f32.mrf.mxu0
      %2340 = vdwg.mxu0
      %v2345 = vunpack.c.l.b16 %v1947
      %v2346 = vunpack.c.l.b16 %v1948
      %v2347 = vunpack.c.l.b16 %v1949
      %v2348 = vunpack.c.l.b16 %v1950
      %v2349 = vpack.c.b16 %v2346, %v2345
      %v2350 = vpack.c.b16 %v2348, %v2347
      %v2354 = vsel %vm1634, %v1941, 0
      %v2357 = vsel %vm1634, %v1942, 0
      %v2360 = vsel %vm1634, %v1943, 0
      %v2363 = vsel %vm1634, %v1944, 0
      %v2366 = vsel %vm1634, %v1945, 0
      %v2369 = vsel %vm1634, %v1946, 0
      %2371 = vmatpush.bf16.msra.mxu0 0
      %2372 = vmatpush.bf16.msra.mxu0 0
      %2373 = vmatpush.bf16.msra.mxu0 0
      %2374 = vmatpush.bf16.msra.mxu0 0
      %2375 = vmatpush.bf16.msra.mxu0 0
      %2376 = vmatpush.bf16.msra.mxu0 0
      %2377 = vmatpush.bf16.msra.mxu0 %v2350
      %2378 = vmatpush.bf16.msra.mxu0 %v2349
      %2379 = vmatmul.bf16.gmra.mxu0 %v2354
      %v2380 = vpop.f32.mrf.mxu0
      %v2381 = vadd.f32 %v2313, %v2380
      %v2382 = vpop.f32.mrf.mxu0
      %v2383 = vadd.f32 %v2315, %v2382
      %2384 = vmatmul.bf16.gmra.mxu0 %v2357
      %v2385 = vpop.f32.mrf.mxu0
      %v2386 = vadd.f32 %v2318, %v2385
      %v2387 = vpop.f32.mrf.mxu0
      %v2388 = vadd.f32 %v2320, %v2387
      %2389 = vmatmul.bf16.gmra.mxu0 %v2360
      %v2390 = vpop.f32.mrf.mxu0
      %v2391 = vadd.f32 %v2323, %v2390
      %v2392 = vpop.f32.mrf.mxu0
      %v2393 = vadd.f32 %v2325, %v2392
      %2394 = vmatmul.bf16.gmra.mxu0 %v2363
      %v2395 = vpop.f32.mrf.mxu0
      %v2396 = vadd.f32 %v2328, %v2395
      %v2397 = vpop.f32.mrf.mxu0
      %v2398 = vadd.f32 %v2330, %v2397
      %2399 = vmatmul.bf16.gmra.mxu0 %v2366
      %v2400 = vpop.f32.mrf.mxu0
      %v2401 = vadd.f32 %v2333, %v2400
      %v2402 = vpop.f32.mrf.mxu0
      %v2403 = vadd.f32 %v2335, %v2402
      %2404 = vmatmul.bf16.gmra.mxu0 %v2369
      %v2405 = vpop.f32.mrf.mxu0
      %v2406 = vadd.f32 %v2338, %v2405
      %v2407 = vpop.f32.mrf.mxu0
      %2408 = vdwg.mxu0
      %2409 = vrot.lane.b32.xlu0 %v1600, 64
      %v2410 = vpop.permute.xlu0 %2409
      %2411 = vrot.lane.b32.xlu0 %v1601, 64
      %v2412 = vpop.permute.xlu0 %2411
      %2413 = vrot.lane.b32.xlu0 %v1602, 64
      %v2414 = vpop.permute.xlu0 %2413
      %2415 = vrot.lane.b32.xlu0 %v1603, 64
      %v2416 = vpop.permute.xlu0 %2415
      %2417 = vrot.lane.b32.xlu0 %v1604, 64
      %v2418 = vpop.permute.xlu0 %2417
      %2419 = vrot.lane.b32.xlu0 %v1605, 64
      %v2420 = vpop.permute.xlu0 %2419
      %2421 = vrot.lane.b32.xlu0 %v1628, 64
      %v2422 = vpop.permute.xlu0 %2421
      %2423 = vrot.lane.b32.xlu0 %v1629, 64
      %v2424 = vpop.permute.xlu0 %2423
      %2425 = vrot.lane.b32.xlu0 %v1630, 64
      %v2426 = vpop.permute.xlu0 %2425
      %2427 = vrot.lane.b32.xlu0 %v1631, 64
      %v2428 = vpop.permute.xlu0 %2427
      %2429 = vrot.lane.b32.xlu0 %v1632, 64
      %v2430 = vpop.permute.xlu0 %2429
      %2431 = vrot.lane.b32.xlu0 %v1633, 64
      %v2432 = vpop.permute.xlu0 %2431
      %v2434 = vsel %vm1634, %v2410, 0
      %v2437 = vsel %vm1634, %v2412, 0
      %v2440 = vsel %vm1634, %v2414, 0
      %v2443 = vsel %vm1634, %v2416, 0
      %v2446 = vsel %vm1634, %v2418, 0
      %v2449 = vsel %vm1634, %v2420, 0
      %v2452 = vsel %vm1634, %v2422, 0
      %v2455 = vsel %vm1634, %v2424, 0
      %v2458 = vsel %vm1634, %v2426, 0
      %v2461 = vsel %vm1634, %v2428, 0
      %v2464 = vsel %vm1634, %v2430, 0
      %v2467 = vsel %vm1634, %v2432, 0
      %2469 = vmatpush.bf16.xpose.msra.mxu0 0
      %2470 = vmatpush.bf16.xpose.msra.mxu0 0
      %2471 = vmatpush.bf16.xpose.msra.mxu0 %v2467
      %2472 = vmatpush.bf16.xpose.msra.mxu0 %v2464
      %2473 = vmatpush.bf16.xpose.msra.mxu0 %v2461
      %2474 = vmatpush.bf16.xpose.msra.mxu0 %v2458
      %2475 = vmatpush.bf16.xpose.msra.mxu0 %v2455
      %2476 = vmatpush.bf16.xpose.msra.mxu0 %v2452
      %2477 = vmatmul.bf16.gmra.mxu0 %v2434
      %v2478 = vpop.f32.mrf.mxu0
      %v2479 = vadd.f32 0.0, %v2478
      %v2480 = vpop.f32.mrf.mxu0
      %v2481 = vadd.f32 0.0, %v2480
      %2482 = vmatmul.bf16.gmra.mxu0 %v2437
      %v2483 = vpop.f32.mrf.mxu0
      %v2484 = vadd.f32 0.0, %v2483
      %v2485 = vpop.f32.mrf.mxu0
      %v2486 = vadd.f32 0.0, %v2485
      %2487 = vmatmul.bf16.gmra.mxu0 %v2440
      %v2488 = vpop.f32.mrf.mxu0
      %v2489 = vadd.f32 0.0, %v2488
      %v2490 = vpop.f32.mrf.mxu0
      %v2491 = vadd.f32 0.0, %v2490
      %2492 = vmatmul.bf16.gmra.mxu0 %v2443
      %v2493 = vpop.f32.mrf.mxu0
      %v2494 = vadd.f32 0.0, %v2493
      %v2495 = vpop.f32.mrf.mxu0
      %v2496 = vadd.f32 0.0, %v2495
      %2497 = vmatmul.bf16.gmra.mxu0 %v2446
      %v2498 = vpop.f32.mrf.mxu0
      %v2499 = vadd.f32 0.0, %v2498
      %v2500 = vpop.f32.mrf.mxu0
      %v2501 = vadd.f32 0.0, %v2500
      %2502 = vmatmul.bf16.gmra.mxu0 %v2449
      %v2503 = vpop.f32.mrf.mxu0
      %v2504 = vadd.f32 0.0, %v2503
      %v2505 = vpop.f32.mrf.mxu0
      %2506 = vdwg.mxu0
      %v2507 = vsel %vm1567, %v2479, -1e+30
      %v2508 = vsel %vm1568, %v2481, -1e+30
      %v2509 = vsel %vm1569, %v2484, -1e+30
      %v2510 = vsel %vm1570, %v2486, -1e+30
      %v2511 = vsel %vm1571, %v2489, -1e+30
      %v2512 = vsel %vm1572, %v2491, -1e+30
      %v2513 = vsel %vm1573, %v2494, -1e+30
      %v2514 = vsel %vm1574, %v2496, -1e+30
      %v2515 = vsel %vm1575, %v2499, -1e+30
      %v2516 = vsel %vm1576, %v2501, -1e+30
      %v2517 = vsel %vm1577, %v2504, -1e+30
      %v2518 = vsel %vm1720, %v2507, -inf
      %2519 = vmax.xlane.f32.xlu0 %v2518
      %v2520 = vpop.xlane.xlu0 %2519
      %v2521 = vsel %vm1720, %v2508, -inf
      %2522 = vmax.xlane.f32.xlu0 %v2521
      %v2523 = vpop.xlane.xlu0 %2522
      %v2524 = vsel %vm1720, %v2509, -inf
      %2525 = vmax.xlane.f32.xlu0 %v2524
      %v2526 = vpop.xlane.xlu0 %2525
      %v2527 = vsel %vm1720, %v2510, -inf
      %2528 = vmax.xlane.f32.xlu0 %v2527
      %v2529 = vpop.xlane.xlu0 %2528
      %v2530 = vsel %vm1720, %v2511, -inf
      %2531 = vmax.xlane.f32.xlu0 %v2530
      %v2532 = vpop.xlane.xlu0 %2531
      %v2533 = vsel %vm1720, %v2512, -inf
      %2534 = vmax.xlane.f32.xlu0 %v2533
      %v2535 = vpop.xlane.xlu0 %2534
      %v2536 = vsel %vm1720, %v2513, -inf
      %2537 = vmax.xlane.f32.xlu0 %v2536
      %v2538 = vpop.xlane.xlu0 %2537
      %v2539 = vsel %vm1720, %v2514, -inf
      %2540 = vmax.xlane.f32.xlu0 %v2539
      %v2541 = vpop.xlane.xlu0 %2540
      %v2542 = vsel %vm1720, %v2515, -inf
      %2543 = vmax.xlane.f32.xlu0 %v2542
      %v2544 = vpop.xlane.xlu0 %2543
      %v2545 = vsel %vm1720, %v2516, -inf
      %2546 = vmax.xlane.f32.xlu0 %v2545
      %v2547 = vpop.xlane.xlu0 %2546
      %v2548 = vsel %vm1720, %v2517, -inf
      %2549 = vmax.xlane.f32.xlu0 %v2548
      %v2550 = vpop.xlane.xlu0 %2549
      %v2551 = vsub.f32 %v2507, %v2520
      %v2552 = vsub.f32 %v2508, %v2523
      %v2553 = vsub.f32 %v2509, %v2526
      %v2554 = vsub.f32 %v2510, %v2529
      %v2555 = vsub.f32 %v2511, %v2532
      %v2556 = vsub.f32 %v2512, %v2535
      %v2557 = vsub.f32 %v2513, %v2538
      %v2558 = vsub.f32 %v2514, %v2541
      %v2559 = vsub.f32 %v2515, %v2544
      %v2560 = vsub.f32 %v2516, %v2547
      %v2561 = vsub.f32 %v2517, %v2550
      %v2562 = vmul.f32 %v2551, 1.442695
      %v2563 = vpow.pop %v2562
      %v2564 = vmul.f32 %v2552, 1.442695
      %v2565 = vpow.pop %v2564
      %v2566 = vmul.f32 %v2553, 1.442695
      %v2567 = vpow.pop %v2566
      %v2568 = vmul.f32 %v2554, 1.442695
      %v2569 = vpow.pop %v2568
      %v2570 = vmul.f32 %v2555, 1.442695
      %v2571 = vpow.pop %v2570
      %v2572 = vmul.f32 %v2556, 1.442695
      %v2573 = vpow.pop %v2572
      %v2574 = vmul.f32 %v2557, 1.442695
      %v2575 = vpow.pop %v2574
      %v2576 = vmul.f32 %v2558, 1.442695
      %v2577 = vpow.pop %v2576
      %v2578 = vmul.f32 %v2559, 1.442695
      %v2579 = vpow.pop %v2578
      %v2580 = vmul.f32 %v2560, 1.442695
      %v2581 = vpow.pop %v2580
      %v2582 = vmul.f32 %v2561, 1.442695
      %v2583 = vpow.pop %v2582
      %v2584 = vsel %vm1720, %v2563, 0.0
      %2585 = vadd.xlane.f32.xlu0 %v2584
      %v2586 = vpop.xlane.xlu0 %2585
      %v2587 = vsel %vm1720, %v2565, 0.0
      %2588 = vadd.xlane.f32.xlu0 %v2587
      %v2589 = vpop.xlane.xlu0 %2588
      %v2590 = vsel %vm1720, %v2567, 0.0
      %2591 = vadd.xlane.f32.xlu0 %v2590
      %v2592 = vpop.xlane.xlu0 %2591
      %v2593 = vsel %vm1720, %v2569, 0.0
      %2594 = vadd.xlane.f32.xlu0 %v2593
      %v2595 = vpop.xlane.xlu0 %2594
      %v2596 = vsel %vm1720, %v2571, 0.0
      %2597 = vadd.xlane.f32.xlu0 %v2596
      %v2598 = vpop.xlane.xlu0 %2597
      %v2599 = vsel %vm1720, %v2573, 0.0
      %2600 = vadd.xlane.f32.xlu0 %v2599
      %v2601 = vpop.xlane.xlu0 %2600
      %v2602 = vsel %vm1720, %v2575, 0.0
      %2603 = vadd.xlane.f32.xlu0 %v2602
      %v2604 = vpop.xlane.xlu0 %2603
      %v2605 = vsel %vm1720, %v2577, 0.0
      %2606 = vadd.xlane.f32.xlu0 %v2605
      %v2607 = vpop.xlane.xlu0 %2606
      %v2608 = vsel %vm1720, %v2579, 0.0
      %2609 = vadd.xlane.f32.xlu0 %v2608
      %v2610 = vpop.xlane.xlu0 %2609
      %v2611 = vsel %vm1720, %v2581, 0.0
      %2612 = vadd.xlane.f32.xlu0 %v2611
      %v2613 = vpop.xlane.xlu0 %2612
      %v2614 = vsel %vm1720, %v2583, 0.0
      %2615 = vadd.xlane.f32.xlu0 %v2614
      %v2616 = vpop.xlane.xlu0 %2615
      %v2617 = vrcp.pop %v2586
      %v2618 = vrcp.pop %v2589
      %v2619 = vrcp.pop %v2592
      %v2620 = vrcp.pop %v2595
      %v2621 = vrcp.pop %v2598
      %v2622 = vrcp.pop %v2601
      %v2623 = vrcp.pop %v2604
      %v2624 = vrcp.pop %v2607
      %v2625 = vrcp.pop %v2610
      %v2626 = vrcp.pop %v2613
      %v2627 = vrcp.pop %v2616
      %v2628 = vmul.f32 %v2563, %v2617
      %v2629 = vmul.f32 %v2565, %v2618
      %v2630 = vmul.f32 %v2567, %v2619
      %v2631 = vmul.f32 %v2569, %v2620
      %v2632 = vmul.f32 %v2571, %v2621
      %v2633 = vmul.f32 %v2573, %v2622
      %v2634 = vmul.f32 %v2575, %v2623
      %v2635 = vmul.f32 %v2577, %v2624
      %v2636 = vmul.f32 %v2579, %v2625
      %v2637 = vmul.f32 %v2581, %v2626
      %v2638 = vmul.f32 %v2583, %v2627
      %v2639 = vpack.c.bf16 %v2629, %v2628
      %v2640 = vpack.c.bf16 %v2631, %v2630
      %v2641 = vpack.c.bf16 %v2633, %v2632
      %v2642 = vpack.c.bf16 %v2635, %v2634
      %v2643 = vpack.c.bf16 %v2637, %v2636
      %v2644 = vpack.c.bf16 %v2638, %v2638
      %2645 = vrot.lane.b32.xlu0 %v1870, 64
      %v2646 = vpop.permute.xlu0 %2645
      %2647 = vrot.lane.b32.xlu0 %v1871, 64
      %v2648 = vpop.permute.xlu0 %2647
      %2649 = vrot.lane.b32.xlu0 %v1872, 64
      %v2650 = vpop.permute.xlu0 %2649
      %2651 = vrot.lane.b32.xlu0 %v1873, 64
      %v2652 = vpop.permute.xlu0 %2651
      %2653 = vrot.lane.b32.xlu0 %v1874, 64
      %v2654 = vpop.permute.xlu0 %2653
      %2655 = vrot.lane.b32.xlu0 %v1875, 64
      %v2656 = vpop.permute.xlu0 %2655
      %v2663 = vsel %vm1720, %v2639, 0
      %v2666 = vsel %vm1720, %v2640, 0
      %v2669 = vsel %vm1720, %v2641, 0
      %v2672 = vsel %vm1720, %v2642, 0
      %v2675 = vsel %vm1720, %v2643, 0
      %v2678 = vsel %vm1720, %v2644, 0
      %v2681 = vsel %vm1899, %v2656, 0
      %2683 = vmatpush.bf16.msra.mxu0 0
      %2684 = vmatpush.bf16.msra.mxu0 0
      %2685 = vmatpush.bf16.msra.mxu0 %v2681
      %2686 = vmatpush.bf16.msra.mxu0 %v2654
      %2687 = vmatpush.bf16.msra.mxu0 %v2652
      %2688 = vmatpush.bf16.msra.mxu0 %v2650
      %2689 = vmatpush.bf16.msra.mxu0 %v2648
      %2690 = vmatpush.bf16.msra.mxu0 %v2646
      %2691 = vmatmul.bf16.gmra.mxu0 %v2663
      %v2692 = vpop.f32.mrf.mxu0
      %v2693 = vadd.f32 0.0, %v2692
      %v2694 = vpop.f32.mrf.mxu0
      %v2695 = vadd.f32 0.0, %v2694
      %2696 = vmatmul.bf16.gmra.mxu0 %v2666
      %v2697 = vpop.f32.mrf.mxu0
      %v2698 = vadd.f32 0.0, %v2697
      %v2699 = vpop.f32.mrf.mxu0
      %v2700 = vadd.f32 0.0, %v2699
      %2701 = vmatmul.bf16.gmra.mxu0 %v2669
      %v2702 = vpop.f32.mrf.mxu0
      %v2703 = vadd.f32 0.0, %v2702
      %v2704 = vpop.f32.mrf.mxu0
      %v2705 = vadd.f32 0.0, %v2704
      %2706 = vmatmul.bf16.gmra.mxu0 %v2672
      %v2707 = vpop.f32.mrf.mxu0
      %v2708 = vadd.f32 0.0, %v2707
      %v2709 = vpop.f32.mrf.mxu0
      %v2710 = vadd.f32 0.0, %v2709
      %2711 = vmatmul.bf16.gmra.mxu0 %v2675
      %v2712 = vpop.f32.mrf.mxu0
      %v2713 = vadd.f32 0.0, %v2712
      %v2714 = vpop.f32.mrf.mxu0
      %v2715 = vadd.f32 0.0, %v2714
      %2716 = vmatmul.bf16.gmra.mxu0 %v2678
      %v2717 = vpop.f32.mrf.mxu0
      %v2718 = vadd.f32 0.0, %v2717
      %v2719 = vpop.f32.mrf.mxu0
      %2720 = vdwg.mxu0
      %v2721 = vpack.c.bf16 %v2695, %v2693
      %v2722 = vpack.c.bf16 %v2700, %v2698
      %v2723 = vpack.c.bf16 %v2705, %v2703
      %v2724 = vpack.c.bf16 %v2710, %v2708
      %v2725 = vpack.c.bf16 %v2715, %v2713
      %v2726 = vpack.c.bf16 %v2718, %v2718
      %v2727 = vld [vmem:[%s649 + $0x20] sm:$0xf]
      %v2728 = vld [vmem:[%s649 + $0x24] sm:$0xf]
      %v2729 = vld [vmem:[%s649 + $0x28] sm:$0xf]
      %v2730 = vld [vmem:[%s649 + $0x2c] sm:$0xf]
      %v2735 = vunpack.c.l.b16 %v2727
      %v2736 = vunpack.c.l.b16 %v2728
      %v2737 = vunpack.c.l.b16 %v2729
      %v2738 = vunpack.c.l.b16 %v2730
      %v2739 = vpack.c.b16 %v2736, %v2735
      %v2740 = vpack.c.b16 %v2738, %v2737
      %v2744 = vsel %vm1634, %v2721, 0
      %v2747 = vsel %vm1634, %v2722, 0
      %v2750 = vsel %vm1634, %v2723, 0
      %v2753 = vsel %vm1634, %v2724, 0
      %v2756 = vsel %vm1634, %v2725, 0
      %v2759 = vsel %vm1634, %v2726, 0
      %2761 = vmatpush.bf16.msra.mxu0 0
      %2762 = vmatpush.bf16.msra.mxu0 0
      %2763 = vmatpush.bf16.msra.mxu0 0
      %2764 = vmatpush.bf16.msra.mxu0 0
      %2765 = vmatpush.bf16.msra.mxu0 0
      %2766 = vmatpush.bf16.msra.mxu0 0
      %2767 = vmatpush.bf16.msra.mxu0 %v2740
      %2768 = vmatpush.bf16.msra.mxu0 %v2739
      %2769 = vmatmul.bf16.gmra.mxu0 %v2744
      %v2770 = vpop.f32.mrf.mxu0
      %v2771 = vadd.f32 0.0, %v2770
      %v2772 = vpop.f32.mrf.mxu0
      %v2773 = vadd.f32 0.0, %v2772
      %2774 = vmatmul.bf16.gmra.mxu0 %v2747
      %v2775 = vpop.f32.mrf.mxu0
      %v2776 = vadd.f32 0.0, %v2775
      %v2777 = vpop.f32.mrf.mxu0
      %v2778 = vadd.f32 0.0, %v2777
      %2779 = vmatmul.bf16.gmra.mxu0 %v2750
      %v2780 = vpop.f32.mrf.mxu0
      %v2781 = vadd.f32 0.0, %v2780
      %v2782 = vpop.f32.mrf.mxu0
      %v2783 = vadd.f32 0.0, %v2782
      %2784 = vmatmul.bf16.gmra.mxu0 %v2753
      %v2785 = vpop.f32.mrf.mxu0
      %v2786 = vadd.f32 0.0, %v2785
      %v2787 = vpop.f32.mrf.mxu0
      %v2788 = vadd.f32 0.0, %v2787
      %2789 = vmatmul.bf16.gmra.mxu0 %v2756
      %v2790 = vpop.f32.mrf.mxu0
      %v2791 = vadd.f32 0.0, %v2790
      %v2792 = vpop.f32.mrf.mxu0
      %v2793 = vadd.f32 0.0, %v2792
      %2794 = vmatmul.bf16.gmra.mxu0 %v2759
      %v2795 = vpop.f32.mrf.mxu0
      %v2796 = vadd.f32 0.0, %v2795
      %v2797 = vpop.f32.mrf.mxu0
      %2798 = vdwg.mxu0
      %v2799 = vadd.f32 %v2381, %v2771
      %v2800 = vadd.f32 %v2383, %v2773
      %v2801 = vadd.f32 %v2386, %v2776
      %v2802 = vadd.f32 %v2388, %v2778
      %v2803 = vadd.f32 %v2391, %v2781
      %v2804 = vadd.f32 %v2393, %v2783
      %v2805 = vadd.f32 %v2396, %v2786
      %v2806 = vadd.f32 %v2398, %v2788
      %v2807 = vadd.f32 %v2401, %v2791
      %v2808 = vadd.f32 %v2403, %v2793
      %v2809 = vadd.f32 %v2406, %v2796
      %2810 = vrot.lane.b32.xlu0 %v1600, 32
      %v2811 = vpop.permute.xlu0 %2810
      %2812 = vrot.lane.b32.xlu0 %v1601, 32
      %v2813 = vpop.permute.xlu0 %2812
      %2814 = vrot.lane.b32.xlu0 %v1602, 32
      %v2815 = vpop.permute.xlu0 %2814
      %2816 = vrot.lane.b32.xlu0 %v1603, 32
      %v2817 = vpop.permute.xlu0 %2816
      %2818 = vrot.lane.b32.xlu0 %v1604, 32
      %v2819 = vpop.permute.xlu0 %2818
      %2820 = vrot.lane.b32.xlu0 %v1605, 32
      %v2821 = vpop.permute.xlu0 %2820
      %2822 = vrot.lane.b32.xlu0 %v1628, 32
      %v2823 = vpop.permute.xlu0 %2822
      %2824 = vrot.lane.b32.xlu0 %v1629, 32
      %v2825 = vpop.permute.xlu0 %2824
      %2826 = vrot.lane.b32.xlu0 %v1630, 32
      %v2827 = vpop.permute.xlu0 %2826
      %2828 = vrot.lane.b32.xlu0 %v1631, 32
      %v2829 = vpop.permute.xlu0 %2828
      %2830 = vrot.lane.b32.xlu0 %v1632, 32
      %v2831 = vpop.permute.xlu0 %2830
      %2832 = vrot.lane.b32.xlu0 %v1633, 32
      %v2833 = vpop.permute.xlu0 %2832
      %v2835 = vsel %vm1634, %v2811, 0
      %v2838 = vsel %vm1634, %v2813, 0
      %v2841 = vsel %vm1634, %v2815, 0
      %v2844 = vsel %vm1634, %v2817, 0
      %v2847 = vsel %vm1634, %v2819, 0
      %v2850 = vsel %vm1634, %v2821, 0
      %v2853 = vsel %vm1634, %v2823, 0
      %v2856 = vsel %vm1634, %v2825, 0
      %v2859 = vsel %vm1634, %v2827, 0
      %v2862 = vsel %vm1634, %v2829, 0
      %v2865 = vsel %vm1634, %v2831, 0
      %v2868 = vsel %vm1634, %v2833, 0
      %2870 = vmatpush.bf16.xpose.msra.mxu0 0
      %2871 = vmatpush.bf16.xpose.msra.mxu0 0
      %2872 = vmatpush.bf16.xpose.msra.mxu0 %v2868
      %2873 = vmatpush.bf16.xpose.msra.mxu0 %v2865
      %2874 = vmatpush.bf16.xpose.msra.mxu0 %v2862
      %2875 = vmatpush.bf16.xpose.msra.mxu0 %v2859
      %2876 = vmatpush.bf16.xpose.msra.mxu0 %v2856
      %2877 = vmatpush.bf16.xpose.msra.mxu0 %v2853
      %2878 = vmatmul.bf16.gmra.mxu0 %v2835
      %v2879 = vpop.f32.mrf.mxu0
      %v2880 = vadd.f32 0.0, %v2879
      %v2881 = vpop.f32.mrf.mxu0
      %v2882 = vadd.f32 0.0, %v2881
      %2883 = vmatmul.bf16.gmra.mxu0 %v2838
      %v2884 = vpop.f32.mrf.mxu0
      %v2885 = vadd.f32 0.0, %v2884
      %v2886 = vpop.f32.mrf.mxu0
      %v2887 = vadd.f32 0.0, %v2886
      %2888 = vmatmul.bf16.gmra.mxu0 %v2841
      %v2889 = vpop.f32.mrf.mxu0
      %v2890 = vadd.f32 0.0, %v2889
      %v2891 = vpop.f32.mrf.mxu0
      %v2892 = vadd.f32 0.0, %v2891
      %2893 = vmatmul.bf16.gmra.mxu0 %v2844
      %v2894 = vpop.f32.mrf.mxu0
      %v2895 = vadd.f32 0.0, %v2894
      %v2896 = vpop.f32.mrf.mxu0
      %v2897 = vadd.f32 0.0, %v2896
      %2898 = vmatmul.bf16.gmra.mxu0 %v2847
      %v2899 = vpop.f32.mrf.mxu0
      %v2900 = vadd.f32 0.0, %v2899
      %v2901 = vpop.f32.mrf.mxu0
      %v2902 = vadd.f32 0.0, %v2901
      %2903 = vmatmul.bf16.gmra.mxu0 %v2850
      %v2904 = vpop.f32.mrf.mxu0
      %v2905 = vadd.f32 0.0, %v2904
      %v2906 = vpop.f32.mrf.mxu0
      %2907 = vdwg.mxu0
      %v2908 = vsel %vm1567, %v2880, -1e+30
      %v2909 = vsel %vm1568, %v2882, -1e+30
      %v2910 = vsel %vm1569, %v2885, -1e+30
      %v2911 = vsel %vm1570, %v2887, -1e+30
      %v2912 = vsel %vm1571, %v2890, -1e+30
      %v2913 = vsel %vm1572, %v2892, -1e+30
      %v2914 = vsel %vm1573, %v2895, -1e+30
      %v2915 = vsel %vm1574, %v2897, -1e+30
      %v2916 = vsel %vm1575, %v2900, -1e+30
      %v2917 = vsel %vm1576, %v2902, -1e+30
      %v2918 = vsel %vm1577, %v2905, -1e+30
      %v2919 = vsel %vm1720, %v2908, -inf
      %2920 = vmax.xlane.f32.xlu0 %v2919
      %v2921 = vpop.xlane.xlu0 %2920
      %v2922 = vsel %vm1720, %v2909, -inf
      %2923 = vmax.xlane.f32.xlu0 %v2922
      %v2924 = vpop.xlane.xlu0 %2923
      %v2925 = vsel %vm1720, %v2910, -inf
      %2926 = vmax.xlane.f32.xlu0 %v2925
      %v2927 = vpop.xlane.xlu0 %2926
      %v2928 = vsel %vm1720, %v2911, -inf
      %2929 = vmax.xlane.f32.xlu0 %v2928
      %v2930 = vpop.xlane.xlu0 %2929
      %v2931 = vsel %vm1720, %v2912, -inf
      %2932 = vmax.xlane.f32.xlu0 %v2931
      %v2933 = vpop.xlane.xlu0 %2932
      %v2934 = vsel %vm1720, %v2913, -inf
      %2935 = vmax.xlane.f32.xlu0 %v2934
      %v2936 = vpop.xlane.xlu0 %2935
      %v2937 = vsel %vm1720, %v2914, -inf
      %2938 = vmax.xlane.f32.xlu0 %v2937
      %v2939 = vpop.xlane.xlu0 %2938
      %v2940 = vsel %vm1720, %v2915, -inf
      %2941 = vmax.xlane.f32.xlu0 %v2940
      %v2942 = vpop.xlane.xlu0 %2941
      %v2943 = vsel %vm1720, %v2916, -inf
      %2944 = vmax.xlane.f32.xlu0 %v2943
      %v2945 = vpop.xlane.xlu0 %2944
      %v2946 = vsel %vm1720, %v2917, -inf
      %2947 = vmax.xlane.f32.xlu0 %v2946
      %v2948 = vpop.xlane.xlu0 %2947
      %v2949 = vsel %vm1720, %v2918, -inf
      %2950 = vmax.xlane.f32.xlu0 %v2949
      %v2951 = vpop.xlane.xlu0 %2950
      %v2952 = vsub.f32 %v2908, %v2921
      %v2953 = vsub.f32 %v2909, %v2924
      %v2954 = vsub.f32 %v2910, %v2927
      %v2955 = vsub.f32 %v2911, %v2930
      %v2956 = vsub.f32 %v2912, %v2933
      %v2957 = vsub.f32 %v2913, %v2936
      %v2958 = vsub.f32 %v2914, %v2939
      %v2959 = vsub.f32 %v2915, %v2942
      %v2960 = vsub.f32 %v2916, %v2945
      %v2961 = vsub.f32 %v2917, %v2948
      %v2962 = vsub.f32 %v2918, %v2951
      %v2963 = vmul.f32 %v2952, 1.442695
      %v2964 = vpow.pop %v2963
      %v2965 = vmul.f32 %v2953, 1.442695
      %v2966 = vpow.pop %v2965
      %v2967 = vmul.f32 %v2954, 1.442695
      %v2968 = vpow.pop %v2967
      %v2969 = vmul.f32 %v2955, 1.442695
      %v2970 = vpow.pop %v2969
      %v2971 = vmul.f32 %v2956, 1.442695
      %v2972 = vpow.pop %v2971
      %v2973 = vmul.f32 %v2957, 1.442695
      %v2974 = vpow.pop %v2973
      %v2975 = vmul.f32 %v2958, 1.442695
      %v2976 = vpow.pop %v2975
      %v2977 = vmul.f32 %v2959, 1.442695
      %v2978 = vpow.pop %v2977
      %v2979 = vmul.f32 %v2960, 1.442695
      %v2980 = vpow.pop %v2979
      %v2981 = vmul.f32 %v2961, 1.442695
      %v2982 = vpow.pop %v2981
      %v2983 = vmul.f32 %v2962, 1.442695
      %v2984 = vpow.pop %v2983
      %v2985 = vsel %vm1720, %v2964, 0.0
      %2986 = vadd.xlane.f32.xlu0 %v2985
      %v2987 = vpop.xlane.xlu0 %2986
      %v2988 = vsel %vm1720, %v2966, 0.0
      %2989 = vadd.xlane.f32.xlu0 %v2988
      %v2990 = vpop.xlane.xlu0 %2989
      %v2991 = vsel %vm1720, %v2968, 0.0
      %2992 = vadd.xlane.f32.xlu0 %v2991
      %v2993 = vpop.xlane.xlu0 %2992
      %v2994 = vsel %vm1720, %v2970, 0.0
      %2995 = vadd.xlane.f32.xlu0 %v2994
      %v2996 = vpop.xlane.xlu0 %2995
      %v2997 = vsel %vm1720, %v2972, 0.0
      %2998 = vadd.xlane.f32.xlu0 %v2997
      %v2999 = vpop.xlane.xlu0 %2998
      %v3000 = vsel %vm1720, %v2974, 0.0
      %3001 = vadd.xlane.f32.xlu0 %v3000
      %v3002 = vpop.xlane.xlu0 %3001
      %v3003 = vsel %vm1720, %v2976, 0.0
      %3004 = vadd.xlane.f32.xlu0 %v3003
      %v3005 = vpop.xlane.xlu0 %3004
      %v3006 = vsel %vm1720, %v2978, 0.0
      %3007 = vadd.xlane.f32.xlu0 %v3006
      %v3008 = vpop.xlane.xlu0 %3007
      %v3009 = vsel %vm1720, %v2980, 0.0
      %3010 = vadd.xlane.f32.xlu0 %v3009
      %v3011 = vpop.xlane.xlu0 %3010
      %v3012 = vsel %vm1720, %v2982, 0.0
      %3013 = vadd.xlane.f32.xlu0 %v3012
      %v3014 = vpop.xlane.xlu0 %3013
      %v3015 = vsel %vm1720, %v2984, 0.0
      %3016 = vadd.xlane.f32.xlu0 %v3015
      %v3017 = vpop.xlane.xlu0 %3016
      %v3018 = vrcp.pop %v2987
      %v3019 = vrcp.pop %v2990
      %v3020 = vrcp.pop %v2993
      %v3021 = vrcp.pop %v2996
      %v3022 = vrcp.pop %v2999
      %v3023 = vrcp.pop %v3002
      %v3024 = vrcp.pop %v3005
      %v3025 = vrcp.pop %v3008
      %v3026 = vrcp.pop %v3011
      %v3027 = vrcp.pop %v3014
      %v3028 = vrcp.pop %v3017
      %v3029 = vmul.f32 %v2964, %v3018
      %v3030 = vmul.f32 %v2966, %v3019
      %v3031 = vmul.f32 %v2968, %v3020
      %v3032 = vmul.f32 %v2970, %v3021
      %v3033 = vmul.f32 %v2972, %v3022
      %v3034 = vmul.f32 %v2974, %v3023
      %v3035 = vmul.f32 %v2976, %v3024
      %v3036 = vmul.f32 %v2978, %v3025
      %v3037 = vmul.f32 %v2980, %v3026
      %v3038 = vmul.f32 %v2982, %v3027
      %v3039 = vmul.f32 %v2984, %v3028
      %v3040 = vpack.c.bf16 %v3030, %v3029
      %v3041 = vpack.c.bf16 %v3032, %v3031
      %v3042 = vpack.c.bf16 %v3034, %v3033
      %v3043 = vpack.c.bf16 %v3036, %v3035
      %v3044 = vpack.c.bf16 %v3038, %v3037
      %v3045 = vpack.c.bf16 %v3039, %v3039
      %3046 = vrot.lane.b32.xlu0 %v1870, 32
      %v3047 = vpop.permute.xlu0 %3046
      %3048 = vrot.lane.b32.xlu0 %v1871, 32
      %v3049 = vpop.permute.xlu0 %3048
      %3050 = vrot.lane.b32.xlu0 %v1872, 32
      %v3051 = vpop.permute.xlu0 %3050
      %3052 = vrot.lane.b32.xlu0 %v1873, 32
      %v3053 = vpop.permute.xlu0 %3052
      %3054 = vrot.lane.b32.xlu0 %v1874, 32
      %v3055 = vpop.permute.xlu0 %3054
      %3056 = vrot.lane.b32.xlu0 %v1875, 32
      %v3057 = vpop.permute.xlu0 %3056
      %v3064 = vsel %vm1720, %v3040, 0
      %v3067 = vsel %vm1720, %v3041, 0
      %v3070 = vsel %vm1720, %v3042, 0
      %v3073 = vsel %vm1720, %v3043, 0
      %v3076 = vsel %vm1720, %v3044, 0
      %v3079 = vsel %vm1720, %v3045, 0
      %v3082 = vsel %vm1899, %v3057, 0
      %3084 = vmatpush.bf16.msra.mxu0 0
      %3085 = vmatpush.bf16.msra.mxu0 0
      %3086 = vmatpush.bf16.msra.mxu0 %v3082
      %3087 = vmatpush.bf16.msra.mxu0 %v3055
      %3088 = vmatpush.bf16.msra.mxu0 %v3053
      %3089 = vmatpush.bf16.msra.mxu0 %v3051
      %3090 = vmatpush.bf16.msra.mxu0 %v3049
      %3091 = vmatpush.bf16.msra.mxu0 %v3047
      %3092 = vmatmul.bf16.gmra.mxu0 %v3064
      %v3093 = vpop.f32.mrf.mxu0
      %v3094 = vadd.f32 0.0, %v3093
      %v3095 = vpop.f32.mrf.mxu0
      %v3096 = vadd.f32 0.0, %v3095
      %3097 = vmatmul.bf16.gmra.mxu0 %v3067
      %v3098 = vpop.f32.mrf.mxu0
      %v3099 = vadd.f32 0.0, %v3098
      %v3100 = vpop.f32.mrf.mxu0
      %v3101 = vadd.f32 0.0, %v3100
      %3102 = vmatmul.bf16.gmra.mxu0 %v3070
      %v3103 = vpop.f32.mrf.mxu0
      %v3104 = vadd.f32 0.0, %v3103
      %v3105 = vpop.f32.mrf.mxu0
      %v3106 = vadd.f32 0.0, %v3105
      %3107 = vmatmul.bf16.gmra.mxu0 %v3073
      %v3108 = vpop.f32.mrf.mxu0
      %v3109 = vadd.f32 0.0, %v3108
      %v3110 = vpop.f32.mrf.mxu0
      %v3111 = vadd.f32 0.0, %v3110
      %3112 = vmatmul.bf16.gmra.mxu0 %v3076
      %v3113 = vpop.f32.mrf.mxu0
      %v3114 = vadd.f32 0.0, %v3113
      %v3115 = vpop.f32.mrf.mxu0
      %v3116 = vadd.f32 0.0, %v3115
      %3117 = vmatmul.bf16.gmra.mxu0 %v3079
      %v3118 = vpop.f32.mrf.mxu0
      %v3119 = vadd.f32 0.0, %v3118
      %v3120 = vpop.f32.mrf.mxu0
      %3121 = vdwg.mxu0
      %v3122 = vpack.c.bf16 %v3096, %v3094
      %v3123 = vpack.c.bf16 %v3101, %v3099
      %v3124 = vpack.c.bf16 %v3106, %v3104
      %v3125 = vpack.c.bf16 %v3111, %v3109
      %v3126 = vpack.c.bf16 %v3116, %v3114
      %v3127 = vpack.c.bf16 %v3119, %v3119
      %v3128 = vld [vmem:[%s649 + $0x30] sm:$0xf]
      %v3129 = vld [vmem:[%s649 + $0x34] sm:$0xf]
      %v3130 = vld [vmem:[%s649 + $0x38] sm:$0xf]
      %v3131 = vld [vmem:[%s649 + $0x3c] sm:$0xf]
      %v3136 = vunpack.c.l.b16 %v3128
      %v3137 = vunpack.c.l.b16 %v3129
      %v3138 = vunpack.c.l.b16 %v3130
      %v3139 = vunpack.c.l.b16 %v3131
      %v3140 = vpack.c.b16 %v3137, %v3136
      %v3141 = vpack.c.b16 %v3139, %v3138
      %v3145 = vsel %vm1634, %v3122, 0
      %v3148 = vsel %vm1634, %v3123, 0
      %v3151 = vsel %vm1634, %v3124, 0
      %v3154 = vsel %vm1634, %v3125, 0
      %v3157 = vsel %vm1634, %v3126, 0
      %v3160 = vsel %vm1634, %v3127, 0
      %3162 = vmatpush.bf16.msra.mxu0 0
      %3163 = vmatpush.bf16.msra.mxu0 0
      %3164 = vmatpush.bf16.msra.mxu0 0
      %3165 = vmatpush.bf16.msra.mxu0 0
      %3166 = vmatpush.bf16.msra.mxu0 0
      %3167 = vmatpush.bf16.msra.mxu0 0
      %3168 = vmatpush.bf16.msra.mxu0 %v3141
      %3169 = vmatpush.bf16.msra.mxu0 %v3140
      %3170 = vmatmul.bf16.gmra.mxu0 %v3145
      %v3171 = vpop.f32.mrf.mxu0
      %v3172 = vadd.f32 0.0, %v3171
      %v3173 = vpop.f32.mrf.mxu0
      %v3174 = vadd.f32 0.0, %v3173
      %3175 = vmatmul.bf16.gmra.mxu0 %v3148
      %v3176 = vpop.f32.mrf.mxu0
      %v3177 = vadd.f32 0.0, %v3176
      %v3178 = vpop.f32.mrf.mxu0
      %v3179 = vadd.f32 0.0, %v3178
      %3180 = vmatmul.bf16.gmra.mxu0 %v3151
      %v3181 = vpop.f32.mrf.mxu0
      %v3182 = vadd.f32 0.0, %v3181
      %v3183 = vpop.f32.mrf.mxu0
      %v3184 = vadd.f32 0.0, %v3183
      %3185 = vmatmul.bf16.gmra.mxu0 %v3154
      %v3186 = vpop.f32.mrf.mxu0
      %v3187 = vadd.f32 0.0, %v3186
      %v3188 = vpop.f32.mrf.mxu0
      %v3189 = vadd.f32 0.0, %v3188
      %3190 = vmatmul.bf16.gmra.mxu0 %v3157
      %v3191 = vpop.f32.mrf.mxu0
      %v3192 = vadd.f32 0.0, %v3191
      %v3193 = vpop.f32.mrf.mxu0
      %v3194 = vadd.f32 0.0, %v3193
      %3195 = vmatmul.bf16.gmra.mxu0 %v3160
      %v3196 = vpop.f32.mrf.mxu0
      %v3197 = vadd.f32 0.0, %v3196
      %v3198 = vpop.f32.mrf.mxu0
      %3199 = vdwg.mxu0
      %v3200 = vadd.f32 %v2799, %v3172
      %v3201 = vadd.f32 %v2800, %v3174
      %v3202 = vadd.f32 %v2801, %v3177
      %v3203 = vadd.f32 %v2802, %v3179
      %v3204 = vadd.f32 %v2803, %v3182
      %v3205 = vadd.f32 %v2804, %v3184
      %v3206 = vadd.f32 %v2805, %v3187
      %v3207 = vadd.f32 %v2806, %v3189
      %v3208 = vadd.f32 %v2807, %v3192
      %v3209 = vadd.f32 %v2808, %v3194
      %v3210 = vadd.f32 %v2809, %v3197
      %v3211 = vld [vmem:[%s654] sm:$0xff]
      %v3212 = vld [vmem:[%s654 + $0x8] sm:$0xff]
      %v3213 = vld [vmem:[%s654 + $0x10] sm:$0xff]
      %v3214 = vld [vmem:[%s654 + $0x18] sm:$0xff]
      %v3215 = vld [vmem:[%s654 + $0x20] sm:$0xff]
      %v3216 = vld [vmem:[%s654 + $0x28] sm:$0xff]
      %v3217 = vld [vmem:[%s654 + $0x30] sm:$0xff]
      %v3218 = vld [vmem:[%s654 + $0x38] sm:$0xff]
      %v3219 = vld [vmem:[%s654 + $0x40] sm:$0xff]
      %v3220 = vld [vmem:[%s654 + $0x48] sm:$0xff]
      %v3221 = vld [vmem:[%s654 + $0x50] sm:$0xff]
      %v3222 = vld [vmem:[%s654 + $0x58] sm:$0xff]
      %v3223 = vld [vmem:[%s654 + $0x60] sm:$0xff]
      %v3224 = vld [vmem:[%s654 + $0x68] sm:$0xff]
      %v3225 = vld [vmem:[%s654 + $0x70] sm:$0xff]
      %v3226 = vld [vmem:[%s654 + $0x78] sm:$0xff]
      %v3227 = vld [vmem:[%s654 + $0x80] sm:$0xff]
      %v3228 = vld [vmem:[%s654 + $0x88] sm:$0xff]
      %v3229 = vld [vmem:[%s654 + $0x90] sm:$0xff]
      %v3230 = vld [vmem:[%s654 + $0x98] sm:$0xff]
      %v3231 = vld [vmem:[%s654 + $0xa0] sm:$0xff]
      %v3232 = vld [vmem:[%s654 + $0xa8] sm:$0xff]
      %v3233 = vld [vmem:[%s654 + $0xb0] sm:$0xff]
      %v3234 = vld [vmem:[%s654 + $0xb8] sm:$0xff]
      %v3235 = vld [vmem:[%s654 + $0xc0] sm:$0xff]
      %v3236 = vld [vmem:[%s654 + $0xc8] sm:$0xff]
      %v3237 = vld [vmem:[%s654 + $0xd0] sm:$0xff]
      %v3238 = vld [vmem:[%s654 + $0xd8] sm:$0xff]
      %v3239 = vld [vmem:[%s654 + $0xe0] sm:$0xff]
      %v3240 = vld [vmem:[%s654 + $0xe8] sm:$0xff]
      %v3241 = vld [vmem:[%s654 + $0xf0] sm:$0xff]
      %v3242 = vld [vmem:[%s654 + $0xf8] sm:$0xff]
      %v3243 = vld [vmem:[%s658] sm:$0xf]
      %v3245 = vperm.slane %v3243, 0
      %v3246 = vperm.slane %v3243, 1
      %v3247 = vperm.slane %v3243, 2
      %v3248 = vperm.slane %v3243, 3
      %v3285 = vunpack.c.l.b16 %v3211
      %v3286 = vunpack.c.h.b16 %v3211
      %v3287 = vunpack.c.l.b16 %v3212
      %v3288 = vunpack.c.h.b16 %v3212
      %v3289 = vunpack.c.l.b16 %v3213
      %v3290 = vunpack.c.h.b16 %v3213
      %v3291 = vunpack.c.l.b16 %v3214
      %v3292 = vunpack.c.h.b16 %v3214
      %v3293 = vunpack.c.l.b16 %v3215
      %v3294 = vunpack.c.h.b16 %v3215
      %v3295 = vunpack.c.l.b16 %v3216
      %v3296 = vunpack.c.h.b16 %v3216
      %v3297 = vunpack.c.l.b16 %v3217
      %v3298 = vunpack.c.h.b16 %v3217
      %v3299 = vunpack.c.l.b16 %v3218
      %v3300 = vunpack.c.h.b16 %v3218
      %v3301 = vunpack.c.l.b16 %v3219
      %v3302 = vunpack.c.h.b16 %v3219
      %v3303 = vunpack.c.l.b16 %v3220
      %v3304 = vunpack.c.h.b16 %v3220
      %v3305 = vunpack.c.l.b16 %v3221
      %v3306 = vunpack.c.h.b16 %v3221
      %v3307 = vunpack.c.l.b16 %v3222
      %v3308 = vunpack.c.h.b16 %v3222
      %v3309 = vunpack.c.l.b16 %v3223
      %v3310 = vunpack.c.h.b16 %v3223
      %v3311 = vunpack.c.l.b16 %v3224
      %v3312 = vunpack.c.h.b16 %v3224
      %v3313 = vunpack.c.l.b16 %v3225
      %v3314 = vunpack.c.h.b16 %v3225
      %v3315 = vunpack.c.l.b16 %v3226
      %v3316 = vunpack.c.h.b16 %v3226
      %v3317 = vunpack.c.l.b16 %v3227
      %v3318 = vunpack.c.h.b16 %v3227
      %v3319 = vunpack.c.l.b16 %v3228
      %v3320 = vunpack.c.h.b16 %v3228
      %v3321 = vunpack.c.l.b16 %v3229
      %v3322 = vunpack.c.h.b16 %v3229
      %v3323 = vunpack.c.l.b16 %v3230
      %v3324 = vunpack.c.h.b16 %v3230
      %v3325 = vunpack.c.l.b16 %v3231
      %v3326 = vunpack.c.h.b16 %v3231
      %v3327 = vunpack.c.l.b16 %v3232
      %v3328 = vunpack.c.h.b16 %v3232
      %v3329 = vunpack.c.l.b16 %v3233
      %v3330 = vunpack.c.h.b16 %v3233
      %v3331 = vunpack.c.l.b16 %v3234
      %v3332 = vunpack.c.h.b16 %v3234
      %v3333 = vunpack.c.l.b16 %v3235
      %v3334 = vunpack.c.h.b16 %v3235
      %v3335 = vunpack.c.l.b16 %v3236
      %v3336 = vunpack.c.h.b16 %v3236
      %v3337 = vunpack.c.l.b16 %v3237
      %v3338 = vunpack.c.h.b16 %v3237
      %v3339 = vunpack.c.l.b16 %v3238
      %v3340 = vunpack.c.h.b16 %v3238
      %v3341 = vunpack.c.l.b16 %v3239
      %v3342 = vunpack.c.h.b16 %v3239
      %v3343 = vunpack.c.l.b16 %v3240
      %v3344 = vunpack.c.h.b16 %v3240
      %v3345 = vunpack.c.l.b16 %v3241
      %v3346 = vunpack.c.h.b16 %v3241
      %v3347 = vunpack.c.l.b16 %v3242
      %v3348 = vunpack.c.h.b16 %v3242
      %v3349 = vpack.c.b16 %v3289, %v3285
      %v3350 = vpack.c.b16 %v3290, %v3286
      %v3351 = vpack.c.b16 %v3291, %v3287
      %v3352 = vpack.c.b16 %v3292, %v3288
      %v3353 = vpack.c.b16 %v3297, %v3293
      %v3354 = vpack.c.b16 %v3298, %v3294
      %v3355 = vpack.c.b16 %v3299, %v3295
      %v3356 = vpack.c.b16 %v3300, %v3296
      %v3357 = vpack.c.b16 %v3305, %v3301
      %v3358 = vpack.c.b16 %v3306, %v3302
      %v3359 = vpack.c.b16 %v3307, %v3303
      %v3360 = vpack.c.b16 %v3308, %v3304
      %v3361 = vpack.c.b16 %v3313, %v3309
      %v3362 = vpack.c.b16 %v3314, %v3310
      %v3363 = vpack.c.b16 %v3315, %v3311
      %v3364 = vpack.c.b16 %v3316, %v3312
      %v3365 = vpack.c.b16 %v3321, %v3317
      %v3366 = vpack.c.b16 %v3322, %v3318
      %v3367 = vpack.c.b16 %v3323, %v3319
      %v3368 = vpack.c.b16 %v3324, %v3320
      %v3369 = vpack.c.b16 %v3329, %v3325
      %v3370 = vpack.c.b16 %v3330, %v3326
      %v3371 = vpack.c.b16 %v3331, %v3327
      %v3372 = vpack.c.b16 %v3332, %v3328
      %v3373 = vpack.c.b16 %v3337, %v3333
      %v3374 = vpack.c.b16 %v3338, %v3334
      %v3375 = vpack.c.b16 %v3339, %v3335
      %v3376 = vpack.c.b16 %v3340, %v3336
      %v3377 = vpack.c.b16 %v3345, %v3341
      %v3378 = vpack.c.b16 %v3346, %v3342
      %v3379 = vpack.c.b16 %v3347, %v3343
      %v3380 = vpack.c.b16 %v3348, %v3344
      %3413 = vmatpush.bf16.msra.mxu0 %v3377
      %3414 = vmatpush.bf16.msra.mxu0 %v3373
      %3415 = vmatpush.bf16.msra.mxu0 %v3369
      %3416 = vmatpush.bf16.msra.mxu0 %v3365
      %3417 = vmatpush.bf16.msra.mxu0 %v3361
      %3418 = vmatpush.bf16.msra.mxu0 %v3357
      %3419 = vmatpush.bf16.msra.mxu0 %v3353
      %3420 = vmatpush.bf16.msra.mxu0 %v3349
      %3421 = vmatmul.bf16.gmra.mxu0 %v966
      %v3422 = vpop.f32.mrf.mxu0
      %v3423 = vadd.f32 %v3245, %v3422
      %v3424 = vpop.f32.mrf.mxu0
      %v3425 = vadd.f32 %v3245, %v3424
      %3426 = vmatmul.bf16.gmra.mxu0 %v967
      %v3427 = vpop.f32.mrf.mxu0
      %v3428 = vadd.f32 %v3245, %v3427
      %v3429 = vpop.f32.mrf.mxu0
      %v3430 = vadd.f32 %v3245, %v3429
      %3431 = vmatmul.bf16.gmra.mxu0 %v968
      %v3432 = vpop.f32.mrf.mxu0
      %v3433 = vadd.f32 %v3245, %v3432
      %v3434 = vpop.f32.mrf.mxu0
      %v3435 = vadd.f32 %v3245, %v3434
      %3436 = vmatmul.bf16.gmra.mxu0 %v969
      %v3437 = vpop.f32.mrf.mxu0
      %v3438 = vadd.f32 %v3245, %v3437
      %v3439 = vpop.f32.mrf.mxu0
      %v3440 = vadd.f32 %v3245, %v3439
      %3441 = vmatmul.bf16.gmra.mxu0 %v970
      %v3442 = vpop.f32.mrf.mxu0
      %v3443 = vadd.f32 %v3245, %v3442
      %v3444 = vpop.f32.mrf.mxu0
      %v3445 = vadd.f32 %v3245, %v3444
      %3446 = vmatmul.bf16.gmra.mxu0 %v971
      %v3447 = vpop.f32.mrf.mxu0
      %v3448 = vadd.f32 %v3245, %v3447
      %v3449 = vpop.f32.mrf.mxu0
      %3450 = vdwg.mxu0
      %3451 = vmatpush.bf16.msra.mxu0 %v3378
      %3452 = vmatpush.bf16.msra.mxu0 %v3374
      %3453 = vmatpush.bf16.msra.mxu0 %v3370
      %3454 = vmatpush.bf16.msra.mxu0 %v3366
      %3455 = vmatpush.bf16.msra.mxu0 %v3362
      %3456 = vmatpush.bf16.msra.mxu0 %v3358
      %3457 = vmatpush.bf16.msra.mxu0 %v3354
      %3458 = vmatpush.bf16.msra.mxu0 %v3350
      %3459 = vmatmul.bf16.gmra.mxu0 %v966
      %v3460 = vpop.f32.mrf.mxu0
      %v3461 = vadd.f32 %v3246, %v3460
      %v3462 = vpop.f32.mrf.mxu0
      %v3463 = vadd.f32 %v3246, %v3462
      %3464 = vmatmul.bf16.gmra.mxu0 %v967
      %v3465 = vpop.f32.mrf.mxu0
      %v3466 = vadd.f32 %v3246, %v3465
      %v3467 = vpop.f32.mrf.mxu0
      %v3468 = vadd.f32 %v3246, %v3467
      %3469 = vmatmul.bf16.gmra.mxu0 %v968
      %v3470 = vpop.f32.mrf.mxu0
      %v3471 = vadd.f32 %v3246, %v3470
      %v3472 = vpop.f32.mrf.mxu0
      %v3473 = vadd.f32 %v3246, %v3472
      %3474 = vmatmul.bf16.gmra.mxu0 %v969
      %v3475 = vpop.f32.mrf.mxu0
      %v3476 = vadd.f32 %v3246, %v3475
      %v3477 = vpop.f32.mrf.mxu0
      %v3478 = vadd.f32 %v3246, %v3477
      %3479 = vmatmul.bf16.gmra.mxu0 %v970
      %v3480 = vpop.f32.mrf.mxu0
      %v3481 = vadd.f32 %v3246, %v3480
      %v3482 = vpop.f32.mrf.mxu0
      %v3483 = vadd.f32 %v3246, %v3482
      %3484 = vmatmul.bf16.gmra.mxu0 %v971
      %v3485 = vpop.f32.mrf.mxu0
      %v3486 = vadd.f32 %v3246, %v3485
      %v3487 = vpop.f32.mrf.mxu0
      %3488 = vdwg.mxu0
      %3489 = vmatpush.bf16.msra.mxu0 %v3379
      %3490 = vmatpush.bf16.msra.mxu0 %v3375
      %3491 = vmatpush.bf16.msra.mxu0 %v3371
      %3492 = vmatpush.bf16.msra.mxu0 %v3367
      %3493 = vmatpush.bf16.msra.mxu0 %v3363
      %3494 = vmatpush.bf16.msra.mxu0 %v3359
      %3495 = vmatpush.bf16.msra.mxu0 %v3355
      %3496 = vmatpush.bf16.msra.mxu0 %v3351
      %3497 = vmatmul.bf16.gmra.mxu0 %v966
      %v3498 = vpop.f32.mrf.mxu0
      %v3499 = vadd.f32 %v3247, %v3498
      %v3500 = vpop.f32.mrf.mxu0
      %v3501 = vadd.f32 %v3247, %v3500
      %3502 = vmatmul.bf16.gmra.mxu0 %v967
      %v3503 = vpop.f32.mrf.mxu0
      %v3504 = vadd.f32 %v3247, %v3503
      %v3505 = vpop.f32.mrf.mxu0
      %v3506 = vadd.f32 %v3247, %v3505
      %3507 = vmatmul.bf16.gmra.mxu0 %v968
      %v3508 = vpop.f32.mrf.mxu0
      %v3509 = vadd.f32 %v3247, %v3508
      %v3510 = vpop.f32.mrf.mxu0
      %v3511 = vadd.f32 %v3247, %v3510
      %3512 = vmatmul.bf16.gmra.mxu0 %v969
      %v3513 = vpop.f32.mrf.mxu0
      %v3514 = vadd.f32 %v3247, %v3513
      %v3515 = vpop.f32.mrf.mxu0
      %v3516 = vadd.f32 %v3247, %v3515
      %3517 = vmatmul.bf16.gmra.mxu0 %v970
      %v3518 = vpop.f32.mrf.mxu0
      %v3519 = vadd.f32 %v3247, %v3518
      %v3520 = vpop.f32.mrf.mxu0
      %v3521 = vadd.f32 %v3247, %v3520
      %3522 = vmatmul.bf16.gmra.mxu0 %v971
      %v3523 = vpop.f32.mrf.mxu0
      %v3524 = vadd.f32 %v3247, %v3523
      %v3525 = vpop.f32.mrf.mxu0
      %3526 = vdwg.mxu0
      %3527 = vmatpush.bf16.msra.mxu0 %v3380
      %3528 = vmatpush.bf16.msra.mxu0 %v3376
      %3529 = vmatpush.bf16.msra.mxu0 %v3372
      %3530 = vmatpush.bf16.msra.mxu0 %v3368
      %3531 = vmatpush.bf16.msra.mxu0 %v3364
      %3532 = vmatpush.bf16.msra.mxu0 %v3360
      %3533 = vmatpush.bf16.msra.mxu0 %v3356
      %3534 = vmatpush.bf16.msra.mxu0 %v3352
      %3535 = vmatmul.bf16.gmra.mxu0 %v966
      %v3536 = vpop.f32.mrf.mxu0
      %v3537 = vadd.f32 %v3248, %v3536
      %v3538 = vpop.f32.mrf.mxu0
      %v3539 = vadd.f32 %v3248, %v3538
      %3540 = vmatmul.bf16.gmra.mxu0 %v967
      %v3541 = vpop.f32.mrf.mxu0
      %v3542 = vadd.f32 %v3248, %v3541
      %v3543 = vpop.f32.mrf.mxu0
      %v3544 = vadd.f32 %v3248, %v3543
      %3545 = vmatmul.bf16.gmra.mxu0 %v968
      %v3546 = vpop.f32.mrf.mxu0
      %v3547 = vadd.f32 %v3248, %v3546
      %v3548 = vpop.f32.mrf.mxu0
      %v3549 = vadd.f32 %v3248, %v3548
      %3550 = vmatmul.bf16.gmra.mxu0 %v969
      %v3551 = vpop.f32.mrf.mxu0
      %v3552 = vadd.f32 %v3248, %v3551
      %v3553 = vpop.f32.mrf.mxu0
      %v3554 = vadd.f32 %v3248, %v3553
      %3555 = vmatmul.bf16.gmra.mxu0 %v970
      %v3556 = vpop.f32.mrf.mxu0
      %v3557 = vadd.f32 %v3248, %v3556
      %v3558 = vpop.f32.mrf.mxu0
      %v3559 = vadd.f32 %v3248, %v3558
      %3560 = vmatmul.bf16.gmra.mxu0 %v971
      %v3561 = vpop.f32.mrf.mxu0
      %v3562 = vadd.f32 %v3248, %v3561
      %v3563 = vpop.f32.mrf.mxu0
      %3564 = vdwg.mxu0
      %v3565 = vpack.c.bf16 %v3461, %v3423
      %v3566 = vpack.c.bf16 %v3537, %v3499
      %v3567 = vpack.c.bf16 %v3463, %v3425
      %v3568 = vpack.c.bf16 %v3539, %v3501
      %v3569 = vpack.c.bf16 %v3466, %v3428
      %v3570 = vpack.c.bf16 %v3542, %v3504
      %v3571 = vpack.c.bf16 %v3468, %v3430
      %v3572 = vpack.c.bf16 %v3544, %v3506
      %v3573 = vpack.c.bf16 %v3471, %v3433
      %v3574 = vpack.c.bf16 %v3547, %v3509
      %v3575 = vpack.c.bf16 %v3473, %v3435
      %v3576 = vpack.c.bf16 %v3549, %v3511
      %v3577 = vpack.c.bf16 %v3476, %v3438
      %v3578 = vpack.c.bf16 %v3552, %v3514
      %v3579 = vpack.c.bf16 %v3478, %v3440
      %v3580 = vpack.c.bf16 %v3554, %v3516
      %v3581 = vpack.c.bf16 %v3481, %v3443
      %v3582 = vpack.c.bf16 %v3557, %v3519
      %v3583 = vpack.c.bf16 %v3483, %v3445
      %v3584 = vpack.c.bf16 %v3559, %v3521
      %v3585 = vpack.c.bf16 %v3486, %v3448
      %v3586 = vpack.c.bf16 %v3562, %v3524
      %v3587 = vunpack.c.l.bf16 %v3565
      %v3588 = vunpack.c.h.bf16 %v3565
      %v3589 = vunpack.c.l.bf16 %v3566
      %v3590 = vunpack.c.h.bf16 %v3566
      %v3591 = vunpack.c.l.bf16 %v3567
      %v3592 = vunpack.c.h.bf16 %v3567
      %v3593 = vunpack.c.l.bf16 %v3568
      %v3594 = vunpack.c.h.bf16 %v3568
      %v3595 = vunpack.c.l.bf16 %v3569
      %v3596 = vunpack.c.h.bf16 %v3569
      %v3597 = vunpack.c.l.bf16 %v3570
      %v3598 = vunpack.c.h.bf16 %v3570
      %v3599 = vunpack.c.l.bf16 %v3571
      %v3600 = vunpack.c.h.bf16 %v3571
      %v3601 = vunpack.c.l.bf16 %v3572
      %v3602 = vunpack.c.h.bf16 %v3572
      %v3603 = vunpack.c.l.bf16 %v3573
      %v3604 = vunpack.c.h.bf16 %v3573
      %v3605 = vunpack.c.l.bf16 %v3574
      %v3606 = vunpack.c.h.bf16 %v3574
      %v3607 = vunpack.c.l.bf16 %v3575
      %v3608 = vunpack.c.h.bf16 %v3575
      %v3609 = vunpack.c.l.bf16 %v3576
      %v3610 = vunpack.c.h.bf16 %v3576
      %v3611 = vunpack.c.l.bf16 %v3577
      %v3612 = vunpack.c.h.bf16 %v3577
      %v3613 = vunpack.c.l.bf16 %v3578
      %v3614 = vunpack.c.h.bf16 %v3578
      %v3615 = vunpack.c.l.bf16 %v3579
      %v3616 = vunpack.c.h.bf16 %v3579
      %v3617 = vunpack.c.l.bf16 %v3580
      %v3618 = vunpack.c.h.bf16 %v3580
      %v3619 = vunpack.c.l.bf16 %v3581
      %v3620 = vunpack.c.h.bf16 %v3581
      %v3621 = vunpack.c.l.bf16 %v3582
      %v3622 = vunpack.c.h.bf16 %v3582
      %v3623 = vunpack.c.l.bf16 %v3583
      %v3624 = vunpack.c.h.bf16 %v3583
      %v3625 = vunpack.c.l.bf16 %v3584
      %v3626 = vunpack.c.h.bf16 %v3584
      %v3627 = vunpack.c.l.bf16 %v3585
      %v3628 = vunpack.c.h.bf16 %v3585
      %v3629 = vunpack.c.l.bf16 %v3586
      %v3630 = vunpack.c.h.bf16 %v3586
      %v3631 = vmul.f32 %v3587, 0.5
      %v3632 = vmul.f32 %v3588, 0.5
      %v3633 = vmul.f32 %v3589, 0.5
      %v3634 = vmul.f32 %v3590, 0.5
      %v3635 = vmul.f32 %v3591, 0.5
      %v3636 = vmul.f32 %v3592, 0.5
      %v3637 = vmul.f32 %v3593, 0.5
      %v3638 = vmul.f32 %v3594, 0.5
      %v3639 = vmul.f32 %v3595, 0.5
      %v3640 = vmul.f32 %v3596, 0.5
      %v3641 = vmul.f32 %v3597, 0.5
      %v3642 = vmul.f32 %v3598, 0.5
      %v3643 = vmul.f32 %v3599, 0.5
      %v3644 = vmul.f32 %v3600, 0.5
      %v3645 = vmul.f32 %v3601, 0.5
      %v3646 = vmul.f32 %v3602, 0.5
      %v3647 = vmul.f32 %v3603, 0.5
      %v3648 = vmul.f32 %v3604, 0.5
      %v3649 = vmul.f32 %v3605, 0.5
      %v3650 = vmul.f32 %v3606, 0.5
      %v3651 = vmul.f32 %v3607, 0.5
      %v3652 = vmul.f32 %v3608, 0.5
      %v3653 = vmul.f32 %v3609, 0.5
      %v3654 = vmul.f32 %v3610, 0.5
      %v3655 = vmul.f32 %v3611, 0.5
      %v3656 = vmul.f32 %v3612, 0.5
      %v3657 = vmul.f32 %v3613, 0.5
      %v3658 = vmul.f32 %v3614, 0.5
      %v3659 = vmul.f32 %v3615, 0.5
      %v3660 = vmul.f32 %v3616, 0.5
      %v3661 = vmul.f32 %v3617, 0.5
      %v3662 = vmul.f32 %v3618, 0.5
      %v3663 = vmul.f32 %v3619, 0.5
      %v3664 = vmul.f32 %v3620, 0.5
      %v3665 = vmul.f32 %v3621, 0.5
      %v3666 = vmul.f32 %v3622, 0.5
      %v3667 = vmul.f32 %v3623, 0.5
      %v3668 = vmul.f32 %v3624, 0.5
      %v3669 = vmul.f32 %v3625, 0.5
      %v3670 = vmul.f32 %v3626, 0.5
      %v3671 = vmul.f32 %v3627, 0.5
      %v3672 = vmul.f32 %v3628, 0.5
      %v3673 = vmul.f32 %v3629, 0.5
      %v3674 = vmul.f32 %v3630, 0.5
      %v3675 = vpack.c.bf16 %v3632, %v3631
      %v3676 = vpack.c.bf16 %v3634, %v3633
      %v3677 = vpack.c.bf16 %v3636, %v3635
      %v3678 = vpack.c.bf16 %v3638, %v3637
      %v3679 = vpack.c.bf16 %v3640, %v3639
      %v3680 = vpack.c.bf16 %v3642, %v3641
      %v3681 = vpack.c.bf16 %v3644, %v3643
      %v3682 = vpack.c.bf16 %v3646, %v3645
      %v3683 = vpack.c.bf16 %v3648, %v3647
      %v3684 = vpack.c.bf16 %v3650, %v3649
      %v3685 = vpack.c.bf16 %v3652, %v3651
      %v3686 = vpack.c.bf16 %v3654, %v3653
      %v3687 = vpack.c.bf16 %v3656, %v3655
      %v3688 = vpack.c.bf16 %v3658, %v3657
      %v3689 = vpack.c.bf16 %v3660, %v3659
      %v3690 = vpack.c.bf16 %v3662, %v3661
      %v3691 = vpack.c.bf16 %v3664, %v3663
      %v3692 = vpack.c.bf16 %v3666, %v3665
      %v3693 = vpack.c.bf16 %v3668, %v3667
      %v3694 = vpack.c.bf16 %v3670, %v3669
      %v3695 = vpack.c.bf16 %v3672, %v3671
      %v3696 = vpack.c.bf16 %v3674, %v3673
      %v3697 = vmul.f32 %v3587, %v3587
      %v3698 = vmul.f32 %v3588, %v3588
      %v3699 = vmul.f32 %v3589, %v3589
      %v3700 = vmul.f32 %v3590, %v3590
      %v3701 = vmul.f32 %v3591, %v3591
      %v3702 = vmul.f32 %v3592, %v3592
      %v3703 = vmul.f32 %v3593, %v3593
      %v3704 = vmul.f32 %v3594, %v3594
      %v3705 = vmul.f32 %v3595, %v3595
      %v3706 = vmul.f32 %v3596, %v3596
      %v3707 = vmul.f32 %v3597, %v3597
      %v3708 = vmul.f32 %v3598, %v3598
      %v3709 = vmul.f32 %v3599, %v3599
      %v3710 = vmul.f32 %v3600, %v3600
      %v3711 = vmul.f32 %v3601, %v3601
      %v3712 = vmul.f32 %v3602, %v3602
      %v3713 = vmul.f32 %v3603, %v3603
      %v3714 = vmul.f32 %v3604, %v3604
      %v3715 = vmul.f32 %v3605, %v3605
      %v3716 = vmul.f32 %v3606, %v3606
      %v3717 = vmul.f32 %v3607, %v3607
      %v3718 = vmul.f32 %v3608, %v3608
      %v3719 = vmul.f32 %v3609, %v3609
      %v3720 = vmul.f32 %v3610, %v3610
      %v3721 = vmul.f32 %v3611, %v3611
      %v3722 = vmul.f32 %v3612, %v3612
      %v3723 = vmul.f32 %v3613, %v3613
      %v3724 = vmul.f32 %v3614, %v3614
      %v3725 = vmul.f32 %v3615, %v3615
      %v3726 = vmul.f32 %v3616, %v3616
      %v3727 = vmul.f32 %v3617, %v3617
      %v3728 = vmul.f32 %v3618, %v3618
      %v3729 = vmul.f32 %v3619, %v3619
      %v3730 = vmul.f32 %v3620, %v3620
      %v3731 = vmul.f32 %v3621, %v3621
      %v3732 = vmul.f32 %v3622, %v3622
      %v3733 = vmul.f32 %v3623, %v3623
      %v3734 = vmul.f32 %v3624, %v3624
      %v3735 = vmul.f32 %v3625, %v3625
      %v3736 = vmul.f32 %v3626, %v3626
      %v3737 = vmul.f32 %v3627, %v3627
      %v3738 = vmul.f32 %v3628, %v3628
      %v3739 = vmul.f32 %v3629, %v3629
      %v3740 = vmul.f32 %v3630, %v3630
      %v3741 = vpack.c.bf16 %v3698, %v3697
      %v3742 = vpack.c.bf16 %v3700, %v3699
      %v3743 = vpack.c.bf16 %v3702, %v3701
      %v3744 = vpack.c.bf16 %v3704, %v3703
      %v3745 = vpack.c.bf16 %v3706, %v3705
      %v3746 = vpack.c.bf16 %v3708, %v3707
      %v3747 = vpack.c.bf16 %v3710, %v3709
      %v3748 = vpack.c.bf16 %v3712, %v3711
      %v3749 = vpack.c.bf16 %v3714, %v3713
      %v3750 = vpack.c.bf16 %v3716, %v3715
      %v3751 = vpack.c.bf16 %v3718, %v3717
      %v3752 = vpack.c.bf16 %v3720, %v3719
      %v3753 = vpack.c.bf16 %v3722, %v3721
      %v3754 = vpack.c.bf16 %v3724, %v3723
      %v3755 = vpack.c.bf16 %v3726, %v3725
      %v3756 = vpack.c.bf16 %v3728, %v3727
      %v3757 = vpack.c.bf16 %v3730, %v3729
      %v3758 = vpack.c.bf16 %v3732, %v3731
      %v3759 = vpack.c.bf16 %v3734, %v3733
      %v3760 = vpack.c.bf16 %v3736, %v3735
      %v3761 = vpack.c.bf16 %v3738, %v3737
      %v3762 = vpack.c.bf16 %v3740, %v3739
      %v3763 = vunpack.c.l.bf16 %v3741
      %v3764 = vunpack.c.h.bf16 %v3741
      %v3765 = vunpack.c.l.bf16 %v3742
      %v3766 = vunpack.c.h.bf16 %v3742
      %v3767 = vunpack.c.l.bf16 %v3743
      %v3768 = vunpack.c.h.bf16 %v3743
      %v3769 = vunpack.c.l.bf16 %v3744
      %v3770 = vunpack.c.h.bf16 %v3744
      %v3771 = vunpack.c.l.bf16 %v3745
      %v3772 = vunpack.c.h.bf16 %v3745
      %v3773 = vunpack.c.l.bf16 %v3746
      %v3774 = vunpack.c.h.bf16 %v3746
      %v3775 = vunpack.c.l.bf16 %v3747
      %v3776 = vunpack.c.h.bf16 %v3747
      %v3777 = vunpack.c.l.bf16 %v3748
      %v3778 = vunpack.c.h.bf16 %v3748
      %v3779 = vunpack.c.l.bf16 %v3749
      %v3780 = vunpack.c.h.bf16 %v3749
      %v3781 = vunpack.c.l.bf16 %v3750
      %v3782 = vunpack.c.h.bf16 %v3750
      %v3783 = vunpack.c.l.bf16 %v3751
      %v3784 = vunpack.c.h.bf16 %v3751
      %v3785 = vunpack.c.l.bf16 %v3752
      %v3786 = vunpack.c.h.bf16 %v3752
      %v3787 = vunpack.c.l.bf16 %v3753
      %v3788 = vunpack.c.h.bf16 %v3753
      %v3789 = vunpack.c.l.bf16 %v3754
      %v3790 = vunpack.c.h.bf16 %v3754
      %v3791 = vunpack.c.l.bf16 %v3755
      %v3792 = vunpack.c.h.bf16 %v3755
      %v3793 = vunpack.c.l.bf16 %v3756
      %v3794 = vunpack.c.h.bf16 %v3756
      %v3795 = vunpack.c.l.bf16 %v3757
      %v3796 = vunpack.c.h.bf16 %v3757
      %v3797 = vunpack.c.l.bf16 %v3758
      %v3798 = vunpack.c.h.bf16 %v3758
      %v3799 = vunpack.c.l.bf16 %v3759
      %v3800 = vunpack.c.h.bf16 %v3759
      %v3801 = vunpack.c.l.bf16 %v3760
      %v3802 = vunpack.c.h.bf16 %v3760
      %v3803 = vunpack.c.l.bf16 %v3761
      %v3804 = vunpack.c.h.bf16 %v3761
      %v3805 = vunpack.c.l.bf16 %v3762
      %v3806 = vunpack.c.h.bf16 %v3762
      %v3807 = vmul.f32 %v3763, %v3587
      %v3808 = vmul.f32 %v3764, %v3588
      %v3809 = vmul.f32 %v3765, %v3589
      %v3810 = vmul.f32 %v3766, %v3590
      %v3811 = vmul.f32 %v3767, %v3591
      %v3812 = vmul.f32 %v3768, %v3592
      %v3813 = vmul.f32 %v3769, %v3593
      %v3814 = vmul.f32 %v3770, %v3594
      %v3815 = vmul.f32 %v3771, %v3595
      %v3816 = vmul.f32 %v3772, %v3596
      %v3817 = vmul.f32 %v3773, %v3597
      %v3818 = vmul.f32 %v3774, %v3598
      %v3819 = vmul.f32 %v3775, %v3599
      %v3820 = vmul.f32 %v3776, %v3600
      %v3821 = vmul.f32 %v3777, %v3601
      %v3822 = vmul.f32 %v3778, %v3602
      %v3823 = vmul.f32 %v3779, %v3603
      %v3824 = vmul.f32 %v3780, %v3604
      %v3825 = vmul.f32 %v3781, %v3605
      %v3826 = vmul.f32 %v3782, %v3606
      %v3827 = vmul.f32 %v3783, %v3607
      %v3828 = vmul.f32 %v3784, %v3608
      %v3829 = vmul.f32 %v3785, %v3609
      %v3830 = vmul.f32 %v3786, %v3610
      %v3831 = vmul.f32 %v3787, %v3611
      %v3832 = vmul.f32 %v3788, %v3612
      %v3833 = vmul.f32 %v3789, %v3613
      %v3834 = vmul.f32 %v3790, %v3614
      %v3835 = vmul.f32 %v3791, %v3615
      %v3836 = vmul.f32 %v3792, %v3616
      %v3837 = vmul.f32 %v3793, %v3617
      %v3838 = vmul.f32 %v3794, %v3618
      %v3839 = vmul.f32 %v3795, %v3619
      %v3840 = vmul.f32 %v3796, %v3620
      %v3841 = vmul.f32 %v3797, %v3621
      %v3842 = vmul.f32 %v3798, %v3622
      %v3843 = vmul.f32 %v3799, %v3623
      %v3844 = vmul.f32 %v3800, %v3624
      %v3845 = vmul.f32 %v3801, %v3625
      %v3846 = vmul.f32 %v3802, %v3626
      %v3847 = vmul.f32 %v3803, %v3627
      %v3848 = vmul.f32 %v3804, %v3628
      %v3849 = vmul.f32 %v3805, %v3629
      %v3850 = vmul.f32 %v3806, %v3630
      %v3851 = vpack.c.bf16 %v3808, %v3807
      %v3852 = vpack.c.bf16 %v3810, %v3809
      %v3853 = vpack.c.bf16 %v3812, %v3811
      %v3854 = vpack.c.bf16 %v3814, %v3813
      %v3855 = vpack.c.bf16 %v3816, %v3815
      %v3856 = vpack.c.bf16 %v3818, %v3817
      %v3857 = vpack.c.bf16 %v3820, %v3819
      %v3858 = vpack.c.bf16 %v3822, %v3821
      %v3859 = vpack.c.bf16 %v3824, %v3823
      %v3860 = vpack.c.bf16 %v3826, %v3825
      %v3861 = vpack.c.bf16 %v3828, %v3827
      %v3862 = vpack.c.bf16 %v3830, %v3829
      %v3863 = vpack.c.bf16 %v3832, %v3831
      %v3864 = vpack.c.bf16 %v3834, %v3833
      %v3865 = vpack.c.bf16 %v3836, %v3835
      %v3866 = vpack.c.bf16 %v3838, %v3837
      %v3867 = vpack.c.bf16 %v3840, %v3839
      %v3868 = vpack.c.bf16 %v3842, %v3841
      %v3869 = vpack.c.bf16 %v3844, %v3843
      %v3870 = vpack.c.bf16 %v3846, %v3845
      %v3871 = vpack.c.bf16 %v3848, %v3847
      %v3872 = vpack.c.bf16 %v3850, %v3849
      %v3873 = vunpack.c.l.bf16 %v3851
      %v3874 = vunpack.c.h.bf16 %v3851
      %v3875 = vunpack.c.l.bf16 %v3852
      %v3876 = vunpack.c.h.bf16 %v3852
      %v3877 = vunpack.c.l.bf16 %v3853
      %v3878 = vunpack.c.h.bf16 %v3853
      %v3879 = vunpack.c.l.bf16 %v3854
      %v3880 = vunpack.c.h.bf16 %v3854
      %v3881 = vunpack.c.l.bf16 %v3855
      %v3882 = vunpack.c.h.bf16 %v3855
      %v3883 = vunpack.c.l.bf16 %v3856
      %v3884 = vunpack.c.h.bf16 %v3856
      %v3885 = vunpack.c.l.bf16 %v3857
      %v3886 = vunpack.c.h.bf16 %v3857
      %v3887 = vunpack.c.l.bf16 %v3858
      %v3888 = vunpack.c.h.bf16 %v3858
      %v3889 = vunpack.c.l.bf16 %v3859
      %v3890 = vunpack.c.h.bf16 %v3859
      %v3891 = vunpack.c.l.bf16 %v3860
      %v3892 = vunpack.c.h.bf16 %v3860
      %v3893 = vunpack.c.l.bf16 %v3861
      %v3894 = vunpack.c.h.bf16 %v3861
      %v3895 = vunpack.c.l.bf16 %v3862
      %v3896 = vunpack.c.h.bf16 %v3862
      %v3897 = vunpack.c.l.bf16 %v3863
      %v3898 = vunpack.c.h.bf16 %v3863
      %v3899 = vunpack.c.l.bf16 %v3864
      %v3900 = vunpack.c.h.bf16 %v3864
      %v3901 = vunpack.c.l.bf16 %v3865
      %v3902 = vunpack.c.h.bf16 %v3865
      %v3903 = vunpack.c.l.bf16 %v3866
      %v3904 = vunpack.c.h.bf16 %v3866
      %v3905 = vunpack.c.l.bf16 %v3867
      %v3906 = vunpack.c.h.bf16 %v3867
      %v3907 = vunpack.c.l.bf16 %v3868
      %v3908 = vunpack.c.h.bf16 %v3868
      %v3909 = vunpack.c.l.bf16 %v3869
      %v3910 = vunpack.c.h.bf16 %v3869
      %v3911 = vunpack.c.l.bf16 %v3870
      %v3912 = vunpack.c.h.bf16 %v3870
      %v3913 = vunpack.c.l.bf16 %v3871
      %v3914 = vunpack.c.h.bf16 %v3871
      %v3915 = vunpack.c.l.bf16 %v3872
      %v3916 = vunpack.c.h.bf16 %v3872
      %v3917 = vmul.f32 %v3873, 0.044677734
      %v3918 = vmul.f32 %v3874, 0.044677734
      %v3919 = vmul.f32 %v3875, 0.044677734
      %v3920 = vmul.f32 %v3876, 0.044677734
      %v3921 = vmul.f32 %v3877, 0.044677734
      %v3922 = vmul.f32 %v3878, 0.044677734
      %v3923 = vmul.f32 %v3879, 0.044677734
      %v3924 = vmul.f32 %v3880, 0.044677734
      %v3925 = vmul.f32 %v3881, 0.044677734
      %v3926 = vmul.f32 %v3882, 0.044677734
      %v3927 = vmul.f32 %v3883, 0.044677734
      %v3928 = vmul.f32 %v3884, 0.044677734
      %v3929 = vmul.f32 %v3885, 0.044677734
      %v3930 = vmul.f32 %v3886, 0.044677734
      %v3931 = vmul.f32 %v3887, 0.044677734
      %v3932 = vmul.f32 %v3888, 0.044677734
      %v3933 = vmul.f32 %v3889, 0.044677734
      %v3934 = vmul.f32 %v3890, 0.044677734
      %v3935 = vmul.f32 %v3891, 0.044677734
      %v3936 = vmul.f32 %v3892, 0.044677734
      %v3937 = vmul.f32 %v3893, 0.044677734
      %v3938 = vmul.f32 %v3894, 0.044677734
      %v3939 = vmul.f32 %v3895, 0.044677734
      %v3940 = vmul.f32 %v3896, 0.044677734
      %v3941 = vmul.f32 %v3897, 0.044677734
      %v3942 = vmul.f32 %v3898, 0.044677734
      %v3943 = vmul.f32 %v3899, 0.044677734
      %v3944 = vmul.f32 %v3900, 0.044677734
      %v3945 = vmul.f32 %v3901, 0.044677734
      %v3946 = vmul.f32 %v3902, 0.044677734
      %v3947 = vmul.f32 %v3903, 0.044677734
      %v3948 = vmul.f32 %v3904, 0.044677734
      %v3949 = vmul.f32 %v3905, 0.044677734
      %v3950 = vmul.f32 %v3906, 0.044677734
      %v3951 = vmul.f32 %v3907, 0.044677734
      %v3952 = vmul.f32 %v3908, 0.044677734
      %v3953 = vmul.f32 %v3909, 0.044677734
      %v3954 = vmul.f32 %v3910, 0.044677734
      %v3955 = vmul.f32 %v3911, 0.044677734
      %v3956 = vmul.f32 %v3912, 0.044677734
      %v3957 = vmul.f32 %v3913, 0.044677734
      %v3958 = vmul.f32 %v3914, 0.044677734
      %v3959 = vmul.f32 %v3915, 0.044677734
      %v3960 = vmul.f32 %v3916, 0.044677734
      %v3961 = vpack.c.bf16 %v3918, %v3917
      %v3962 = vpack.c.bf16 %v3920, %v3919
      %v3963 = vpack.c.bf16 %v3922, %v3921
      %v3964 = vpack.c.bf16 %v3924, %v3923
      %v3965 = vpack.c.bf16 %v3926, %v3925
      %v3966 = vpack.c.bf16 %v3928, %v3927
      %v3967 = vpack.c.bf16 %v3930, %v3929
      %v3968 = vpack.c.bf16 %v3932, %v3931
      %v3969 = vpack.c.bf16 %v3934, %v3933
      %v3970 = vpack.c.bf16 %v3936, %v3935
      %v3971 = vpack.c.bf16 %v3938, %v3937
      %v3972 = vpack.c.bf16 %v3940, %v3939
      %v3973 = vpack.c.bf16 %v3942, %v3941
      %v3974 = vpack.c.bf16 %v3944, %v3943
      %v3975 = vpack.c.bf16 %v3946, %v3945
      %v3976 = vpack.c.bf16 %v3948, %v3947
      %v3977 = vpack.c.bf16 %v3950, %v3949
      %v3978 = vpack.c.bf16 %v3952, %v3951
      %v3979 = vpack.c.bf16 %v3954, %v3953
      %v3980 = vpack.c.bf16 %v3956, %v3955
      %v3981 = vpack.c.bf16 %v3958, %v3957
      %v3982 = vpack.c.bf16 %v3960, %v3959
      %v3983 = vunpack.c.l.bf16 %v3961
      %v3984 = vunpack.c.h.bf16 %v3961
      %v3985 = vunpack.c.l.bf16 %v3962
      %v3986 = vunpack.c.h.bf16 %v3962
      %v3987 = vunpack.c.l.bf16 %v3963
      %v3988 = vunpack.c.h.bf16 %v3963
      %v3989 = vunpack.c.l.bf16 %v3964
      %v3990 = vunpack.c.h.bf16 %v3964
      %v3991 = vunpack.c.l.bf16 %v3965
      %v3992 = vunpack.c.h.bf16 %v3965
      %v3993 = vunpack.c.l.bf16 %v3966
      %v3994 = vunpack.c.h.bf16 %v3966
      %v3995 = vunpack.c.l.bf16 %v3967
      %v3996 = vunpack.c.h.bf16 %v3967
      %v3997 = vunpack.c.l.bf16 %v3968
      %v3998 = vunpack.c.h.bf16 %v3968
      %v3999 = vunpack.c.l.bf16 %v3969
      %v4000 = vunpack.c.h.bf16 %v3969
      %v4001 = vunpack.c.l.bf16 %v3970
      %v4002 = vunpack.c.h.bf16 %v3970
      %v4003 = vunpack.c.l.bf16 %v3971
      %v4004 = vunpack.c.h.bf16 %v3971
      %v4005 = vunpack.c.l.bf16 %v3972
      %v4006 = vunpack.c.h.bf16 %v3972
      %v4007 = vunpack.c.l.bf16 %v3973
      %v4008 = vunpack.c.h.bf16 %v3973
      %v4009 = vunpack.c.l.bf16 %v3974
      %v4010 = vunpack.c.h.bf16 %v3974
      %v4011 = vunpack.c.l.bf16 %v3975
      %v4012 = vunpack.c.h.bf16 %v3975
      %v4013 = vunpack.c.l.bf16 %v3976
      %v4014 = vunpack.c.h.bf16 %v3976
      %v4015 = vunpack.c.l.bf16 %v3977
      %v4016 = vunpack.c.h.bf16 %v3977
      %v4017 = vunpack.c.l.bf16 %v3978
      %v4018 = vunpack.c.h.bf16 %v3978
      %v4019 = vunpack.c.l.bf16 %v3979
      %v4020 = vunpack.c.h.bf16 %v3979
      %v4021 = vunpack.c.l.bf16 %v3980
      %v4022 = vunpack.c.h.bf16 %v3980
      %v4023 = vunpack.c.l.bf16 %v3981
      %v4024 = vunpack.c.h.bf16 %v3981
      %v4025 = vunpack.c.l.bf16 %v3982
      %v4026 = vunpack.c.h.bf16 %v3982
      %v4027 = vadd.f32 %v3587, %v3983
      %v4028 = vadd.f32 %v3588, %v3984
      %v4029 = vadd.f32 %v3589, %v3985
      %v4030 = vadd.f32 %v3590, %v3986
      %v4031 = vadd.f32 %v3591, %v3987
      %v4032 = vadd.f32 %v3592, %v3988
      %v4033 = vadd.f32 %v3593, %v3989
      %v4034 = vadd.f32 %v3594, %v3990
      %v4035 = vadd.f32 %v3595, %v3991
      %v4036 = vadd.f32 %v3596, %v3992
      %v4037 = vadd.f32 %v3597, %v3993
      %v4038 = vadd.f32 %v3598, %v3994
      %v4039 = vadd.f32 %v3599, %v3995
      %v4040 = vadd.f32 %v3600, %v3996
      %v4041 = vadd.f32 %v3601, %v3997
      %v4042 = vadd.f32 %v3602, %v3998
      %v4043 = vadd.f32 %v3603, %v3999
      %v4044 = vadd.f32 %v3604, %v4000
      %v4045 = vadd.f32 %v3605, %v4001
      %v4046 = vadd.f32 %v3606, %v4002
      %v4047 = vadd.f32 %v3607, %v4003
      %v4048 = vadd.f32 %v3608, %v4004
      %v4049 = vadd.f32 %v3609, %v4005
      %v4050 = vadd.f32 %v3610, %v4006
      %v4051 = vadd.f32 %v3611, %v4007
      %v4052 = vadd.f32 %v3612, %v4008
      %v4053 = vadd.f32 %v3613, %v4009
      %v4054 = vadd.f32 %v3614, %v4010
      %v4055 = vadd.f32 %v3615, %v4011
      %v4056 = vadd.f32 %v3616, %v4012
      %v4057 = vadd.f32 %v3617, %v4013
      %v4058 = vadd.f32 %v3618, %v4014
      %v4059 = vadd.f32 %v3619, %v4015
      %v4060 = vadd.f32 %v3620, %v4016
      %v4061 = vadd.f32 %v3621, %v4017
      %v4062 = vadd.f32 %v3622, %v4018
      %v4063 = vadd.f32 %v3623, %v4019
      %v4064 = vadd.f32 %v3624, %v4020
      %v4065 = vadd.f32 %v3625, %v4021
      %v4066 = vadd.f32 %v3626, %v4022
      %v4067 = vadd.f32 %v3627, %v4023
      %v4068 = vadd.f32 %v3628, %v4024
      %v4069 = vadd.f32 %v3629, %v4025
      %v4070 = vadd.f32 %v3630, %v4026
      %v4071 = vpack.c.bf16 %v4028, %v4027
      %v4072 = vpack.c.bf16 %v4030, %v4029
      %v4073 = vpack.c.bf16 %v4032, %v4031
      %v4074 = vpack.c.bf16 %v4034, %v4033
      %v4075 = vpack.c.bf16 %v4036, %v4035
      %v4076 = vpack.c.bf16 %v4038, %v4037
      %v4077 = vpack.c.bf16 %v4040, %v4039
      %v4078 = vpack.c.bf16 %v4042, %v4041
      %v4079 = vpack.c.bf16 %v4044, %v4043
      %v4080 = vpack.c.bf16 %v4046, %v4045
      %v4081 = vpack.c.bf16 %v4048, %v4047
      %v4082 = vpack.c.bf16 %v4050, %v4049
      %v4083 = vpack.c.bf16 %v4052, %v4051
      %v4084 = vpack.c.bf16 %v4054, %v4053
      %v4085 = vpack.c.bf16 %v4056, %v4055
      %v4086 = vpack.c.bf16 %v4058, %v4057
      %v4087 = vpack.c.bf16 %v4060, %v4059
      %v4088 = vpack.c.bf16 %v4062, %v4061
      %v4089 = vpack.c.bf16 %v4064, %v4063
      %v4090 = vpack.c.bf16 %v4066, %v4065
      %v4091 = vpack.c.bf16 %v4068, %v4067
      %v4092 = vpack.c.bf16 %v4070, %v4069
      %v4093 = vunpack.c.l.bf16 %v4071
      %v4094 = vunpack.c.h.bf16 %v4071
      %v4095 = vunpack.c.l.bf16 %v4072
      %v4096 = vunpack.c.h.bf16 %v4072
      %v4097 = vunpack.c.l.bf16 %v4073
      %v4098 = vunpack.c.h.bf16 %v4073
      %v4099 = vunpack.c.l.bf16 %v4074
      %v4100 = vunpack.c.h.bf16 %v4074
      %v4101 = vunpack.c.l.bf16 %v4075
      %v4102 = vunpack.c.h.bf16 %v4075
      %v4103 = vunpack.c.l.bf16 %v4076
      %v4104 = vunpack.c.h.bf16 %v4076
      %v4105 = vunpack.c.l.bf16 %v4077
      %v4106 = vunpack.c.h.bf16 %v4077
      %v4107 = vunpack.c.l.bf16 %v4078
      %v4108 = vunpack.c.h.bf16 %v4078
      %v4109 = vunpack.c.l.bf16 %v4079
      %v4110 = vunpack.c.h.bf16 %v4079
      %v4111 = vunpack.c.l.bf16 %v4080
      %v4112 = vunpack.c.h.bf16 %v4080
      %v4113 = vunpack.c.l.bf16 %v4081
      %v4114 = vunpack.c.h.bf16 %v4081
      %v4115 = vunpack.c.l.bf16 %v4082
      %v4116 = vunpack.c.h.bf16 %v4082
      %v4117 = vunpack.c.l.bf16 %v4083
      %v4118 = vunpack.c.h.bf16 %v4083
      %v4119 = vunpack.c.l.bf16 %v4084
      %v4120 = vunpack.c.h.bf16 %v4084
      %v4121 = vunpack.c.l.bf16 %v4085
      %v4122 = vunpack.c.h.bf16 %v4085
      %v4123 = vunpack.c.l.bf16 %v4086
      %v4124 = vunpack.c.h.bf16 %v4086
      %v4125 = vunpack.c.l.bf16 %v4087
      %v4126 = vunpack.c.h.bf16 %v4087
      %v4127 = vunpack.c.l.bf16 %v4088
      %v4128 = vunpack.c.h.bf16 %v4088
      %v4129 = vunpack.c.l.bf16 %v4089
      %v4130 = vunpack.c.h.bf16 %v4089
      %v4131 = vunpack.c.l.bf16 %v4090
      %v4132 = vunpack.c.h.bf16 %v4090
      %v4133 = vunpack.c.l.bf16 %v4091
      %v4134 = vunpack.c.h.bf16 %v4091
      %v4135 = vunpack.c.l.bf16 %v4092
      %v4136 = vunpack.c.h.bf16 %v4092
      %v4137 = vmul.f32 %v4093, 0.796875
      %v4138 = vmul.f32 %v4094, 0.796875
      %v4139 = vmul.f32 %v4095, 0.796875
      %v4140 = vmul.f32 %v4096, 0.796875
      %v4141 = vmul.f32 %v4097, 0.796875
      %v4142 = vmul.f32 %v4098, 0.796875
      %v4143 = vmul.f32 %v4099, 0.796875
      %v4144 = vmul.f32 %v4100, 0.796875
      %v4145 = vmul.f32 %v4101, 0.796875
      %v4146 = vmul.f32 %v4102, 0.796875
      %v4147 = vmul.f32 %v4103, 0.796875
      %v4148 = vmul.f32 %v4104, 0.796875
      %v4149 = vmul.f32 %v4105, 0.796875
      %v4150 = vmul.f32 %v4106, 0.796875
      %v4151 = vmul.f32 %v4107, 0.796875
      %v4152 = vmul.f32 %v4108, 0.796875
      %v4153 = vmul.f32 %v4109, 0.796875
      %v4154 = vmul.f32 %v4110, 0.796875
      %v4155 = vmul.f32 %v4111, 0.796875
      %v4156 = vmul.f32 %v4112, 0.796875
      %v4157 = vmul.f32 %v4113, 0.796875
      %v4158 = vmul.f32 %v4114, 0.796875
      %v4159 = vmul.f32 %v4115, 0.796875
      %v4160 = vmul.f32 %v4116, 0.796875
      %v4161 = vmul.f32 %v4117, 0.796875
      %v4162 = vmul.f32 %v4118, 0.796875
      %v4163 = vmul.f32 %v4119, 0.796875
      %v4164 = vmul.f32 %v4120, 0.796875
      %v4165 = vmul.f32 %v4121, 0.796875
      %v4166 = vmul.f32 %v4122, 0.796875
      %v4167 = vmul.f32 %v4123, 0.796875
      %v4168 = vmul.f32 %v4124, 0.796875
      %v4169 = vmul.f32 %v4125, 0.796875
      %v4170 = vmul.f32 %v4126, 0.796875
      %v4171 = vmul.f32 %v4127, 0.796875
      %v4172 = vmul.f32 %v4128, 0.796875
      %v4173 = vmul.f32 %v4129, 0.796875
      %v4174 = vmul.f32 %v4130, 0.796875
      %v4175 = vmul.f32 %v4131, 0.796875
      %v4176 = vmul.f32 %v4132, 0.796875
      %v4177 = vmul.f32 %v4133, 0.796875
      %v4178 = vmul.f32 %v4134, 0.796875
      %v4179 = vmul.f32 %v4135, 0.796875
      %v4180 = vmul.f32 %v4136, 0.796875
      %v4181 = vpack.c.bf16 %v4138, %v4137
      %v4182 = vpack.c.bf16 %v4140, %v4139
      %v4183 = vpack.c.bf16 %v4142, %v4141
      %v4184 = vpack.c.bf16 %v4144, %v4143
      %v4185 = vpack.c.bf16 %v4146, %v4145
      %v4186 = vpack.c.bf16 %v4148, %v4147
      %v4187 = vpack.c.bf16 %v4150, %v4149
      %v4188 = vpack.c.bf16 %v4152, %v4151
      %v4189 = vpack.c.bf16 %v4154, %v4153
      %v4190 = vpack.c.bf16 %v4156, %v4155
      %v4191 = vpack.c.bf16 %v4158, %v4157
      %v4192 = vpack.c.bf16 %v4160, %v4159
      %v4193 = vpack.c.bf16 %v4162, %v4161
      %v4194 = vpack.c.bf16 %v4164, %v4163
      %v4195 = vpack.c.bf16 %v4166, %v4165
      %v4196 = vpack.c.bf16 %v4168, %v4167
      %v4197 = vpack.c.bf16 %v4170, %v4169
      %v4198 = vpack.c.bf16 %v4172, %v4171
      %v4199 = vpack.c.bf16 %v4174, %v4173
      %v4200 = vpack.c.bf16 %v4176, %v4175
      %v4201 = vpack.c.bf16 %v4178, %v4177
      %v4202 = vpack.c.bf16 %v4180, %v4179
      %v4203 = vunpack.c.l.bf16 %v4181
      %v4204 = vunpack.c.h.bf16 %v4181
      %v4205 = vunpack.c.l.bf16 %v4182
      %v4206 = vunpack.c.h.bf16 %v4182
      %v4207 = vunpack.c.l.bf16 %v4183
      %v4208 = vunpack.c.h.bf16 %v4183
      %v4209 = vunpack.c.l.bf16 %v4184
      %v4210 = vunpack.c.h.bf16 %v4184
      %v4211 = vunpack.c.l.bf16 %v4185
      %v4212 = vunpack.c.h.bf16 %v4185
      %v4213 = vunpack.c.l.bf16 %v4186
      %v4214 = vunpack.c.h.bf16 %v4186
      %v4215 = vunpack.c.l.bf16 %v4187
      %v4216 = vunpack.c.h.bf16 %v4187
      %v4217 = vunpack.c.l.bf16 %v4188
      %v4218 = vunpack.c.h.bf16 %v4188
      %v4219 = vunpack.c.l.bf16 %v4189
      %v4220 = vunpack.c.h.bf16 %v4189
      %v4221 = vunpack.c.l.bf16 %v4190
      %v4222 = vunpack.c.h.bf16 %v4190
      %v4223 = vunpack.c.l.bf16 %v4191
      %v4224 = vunpack.c.h.bf16 %v4191
      %v4225 = vunpack.c.l.bf16 %v4192
      %v4226 = vunpack.c.h.bf16 %v4192
      %v4227 = vunpack.c.l.bf16 %v4193
      %v4228 = vunpack.c.h.bf16 %v4193
      %v4229 = vunpack.c.l.bf16 %v4194
      %v4230 = vunpack.c.h.bf16 %v4194
      %v4231 = vunpack.c.l.bf16 %v4195
      %v4232 = vunpack.c.h.bf16 %v4195
      %v4233 = vunpack.c.l.bf16 %v4196
      %v4234 = vunpack.c.h.bf16 %v4196
      %v4235 = vunpack.c.l.bf16 %v4197
      %v4236 = vunpack.c.h.bf16 %v4197
      %v4237 = vunpack.c.l.bf16 %v4198
      %v4238 = vunpack.c.h.bf16 %v4198
      %v4239 = vunpack.c.l.bf16 %v4199
      %v4240 = vunpack.c.h.bf16 %v4199
      %v4241 = vunpack.c.l.bf16 %v4200
      %v4242 = vunpack.c.h.bf16 %v4200
      %v4243 = vunpack.c.l.bf16 %v4201
      %v4244 = vunpack.c.h.bf16 %v4201
      %v4245 = vunpack.c.l.bf16 %v4202
      %v4246 = vunpack.c.h.bf16 %v4202
      %v4247 = vtanh.pop %v4203
      %v4248 = vtanh.pop %v4204
      %v4249 = vtanh.pop %v4205
      %v4250 = vtanh.pop %v4206
      %v4251 = vtanh.pop %v4207
      %v4252 = vtanh.pop %v4208
      %v4253 = vtanh.pop %v4209
      %v4254 = vtanh.pop %v4210
      %v4255 = vtanh.pop %v4211
      %v4256 = vtanh.pop %v4212
      %v4257 = vtanh.pop %v4213
      %v4258 = vtanh.pop %v4214
      %v4259 = vtanh.pop %v4215
      %v4260 = vtanh.pop %v4216
      %v4261 = vtanh.pop %v4217
      %v4262 = vtanh.pop %v4218
      %v4263 = vtanh.pop %v4219
      %v4264 = vtanh.pop %v4220
      %v4265 = vtanh.pop %v4221
      %v4266 = vtanh.pop %v4222
      %v4267 = vtanh.pop %v4223
      %v4268 = vtanh.pop %v4224
      %v4269 = vtanh.pop %v4225
      %v4270 = vtanh.pop %v4226
      %v4271 = vtanh.pop %v4227
      %v4272 = vtanh.pop %v4228
      %v4273 = vtanh.pop %v4229
      %v4274 = vtanh.pop %v4230
      %v4275 = vtanh.pop %v4231
      %v4276 = vtanh.pop %v4232
      %v4277 = vtanh.pop %v4233
      %v4278 = vtanh.pop %v4234
      %v4279 = vtanh.pop %v4235
      %v4280 = vtanh.pop %v4236
      %v4281 = vtanh.pop %v4237
      %v4282 = vtanh.pop %v4238
      %v4283 = vtanh.pop %v4239
      %v4284 = vtanh.pop %v4240
      %v4285 = vtanh.pop %v4241
      %v4286 = vtanh.pop %v4242
      %v4287 = vtanh.pop %v4243
      %v4288 = vtanh.pop %v4244
      %v4289 = vtanh.pop %v4245
      %v4290 = vtanh.pop %v4246
      %v4291 = vpack.c.bf16 %v4248, %v4247
      %v4292 = vpack.c.bf16 %v4250, %v4249
      %v4293 = vpack.c.bf16 %v4252, %v4251
      %v4294 = vpack.c.bf16 %v4254, %v4253
      %v4295 = vpack.c.bf16 %v4256, %v4255
      %v4296 = vpack.c.bf16 %v4258, %v4257
      %v4297 = vpack.c.bf16 %v4260, %v4259
      %v4298 = vpack.c.bf16 %v4262, %v4261
      %v4299 = vpack.c.bf16 %v4264, %v4263
      %v4300 = vpack.c.bf16 %v4266, %v4265
      %v4301 = vpack.c.bf16 %v4268, %v4267
      %v4302 = vpack.c.bf16 %v4270, %v4269
      %v4303 = vpack.c.bf16 %v4272, %v4271
      %v4304 = vpack.c.bf16 %v4274, %v4273
      %v4305 = vpack.c.bf16 %v4276, %v4275
      %v4306 = vpack.c.bf16 %v4278, %v4277
      %v4307 = vpack.c.bf16 %v4280, %v4279
      %v4308 = vpack.c.bf16 %v4282, %v4281
      %v4309 = vpack.c.bf16 %v4284, %v4283
      %v4310 = vpack.c.bf16 %v4286, %v4285
      %v4311 = vpack.c.bf16 %v4288, %v4287
      %v4312 = vpack.c.bf16 %v4290, %v4289
      %v4313 = vunpack.c.l.bf16 %v4291
      %v4314 = vunpack.c.h.bf16 %v4291
      %v4315 = vunpack.c.l.bf16 %v4292
      %v4316 = vunpack.c.h.bf16 %v4292
      %v4317 = vunpack.c.l.bf16 %v4293
      %v4318 = vunpack.c.h.bf16 %v4293
      %v4319 = vunpack.c.l.bf16 %v4294
      %v4320 = vunpack.c.h.bf16 %v4294
      %v4321 = vunpack.c.l.bf16 %v4295
      %v4322 = vunpack.c.h.bf16 %v4295
      %v4323 = vunpack.c.l.bf16 %v4296
      %v4324 = vunpack.c.h.bf16 %v4296
      %v4325 = vunpack.c.l.bf16 %v4297
      %v4326 = vunpack.c.h.bf16 %v4297
      %v4327 = vunpack.c.l.bf16 %v4298
      %v4328 = vunpack.c.h.bf16 %v4298
      %v4329 = vunpack.c.l.bf16 %v4299
      %v4330 = vunpack.c.h.bf16 %v4299
      %v4331 = vunpack.c.l.bf16 %v4300
      %v4332 = vunpack.c.h.bf16 %v4300
      %v4333 = vunpack.c.l.bf16 %v4301
      %v4334 = vunpack.c.h.bf16 %v4301
      %v4335 = vunpack.c.l.bf16 %v4302
      %v4336 = vunpack.c.h.bf16 %v4302
      %v4337 = vunpack.c.l.bf16 %v4303
      %v4338 = vunpack.c.h.bf16 %v4303
      %v4339 = vunpack.c.l.bf16 %v4304
      %v4340 = vunpack.c.h.bf16 %v4304
      %v4341 = vunpack.c.l.bf16 %v4305
      %v4342 = vunpack.c.h.bf16 %v4305
      %v4343 = vunpack.c.l.bf16 %v4306
      %v4344 = vunpack.c.h.bf16 %v4306
      %v4345 = vunpack.c.l.bf16 %v4307
      %v4346 = vunpack.c.h.bf16 %v4307
      %v4347 = vunpack.c.l.bf16 %v4308
      %v4348 = vunpack.c.h.bf16 %v4308
      %v4349 = vunpack.c.l.bf16 %v4309
      %v4350 = vunpack.c.h.bf16 %v4309
      %v4351 = vunpack.c.l.bf16 %v4310
      %v4352 = vunpack.c.h.bf16 %v4310
      %v4353 = vunpack.c.l.bf16 %v4311
      %v4354 = vunpack.c.h.bf16 %v4311
      %v4355 = vunpack.c.l.bf16 %v4312
      %v4356 = vunpack.c.h.bf16 %v4312
      %v4357 = vadd.f32 %v4313, 1.0
      %v4358 = vadd.f32 %v4314, 1.0
      %v4359 = vadd.f32 %v4315, 1.0
      %v4360 = vadd.f32 %v4316, 1.0
      %v4361 = vadd.f32 %v4317, 1.0
      %v4362 = vadd.f32 %v4318, 1.0
      %v4363 = vadd.f32 %v4319, 1.0
      %v4364 = vadd.f32 %v4320, 1.0
      %v4365 = vadd.f32 %v4321, 1.0
      %v4366 = vadd.f32 %v4322, 1.0
      %v4367 = vadd.f32 %v4323, 1.0
      %v4368 = vadd.f32 %v4324, 1.0
      %v4369 = vadd.f32 %v4325, 1.0
      %v4370 = vadd.f32 %v4326, 1.0
      %v4371 = vadd.f32 %v4327, 1.0
      %v4372 = vadd.f32 %v4328, 1.0
      %v4373 = vadd.f32 %v4329, 1.0
      %v4374 = vadd.f32 %v4330, 1.0
      %v4375 = vadd.f32 %v4331, 1.0
      %v4376 = vadd.f32 %v4332, 1.0
      %v4377 = vadd.f32 %v4333, 1.0
      %v4378 = vadd.f32 %v4334, 1.0
      %v4379 = vadd.f32 %v4335, 1.0
      %v4380 = vadd.f32 %v4336, 1.0
      %v4381 = vadd.f32 %v4337, 1.0
      %v4382 = vadd.f32 %v4338, 1.0
      %v4383 = vadd.f32 %v4339, 1.0
      %v4384 = vadd.f32 %v4340, 1.0
      %v4385 = vadd.f32 %v4341, 1.0
      %v4386 = vadd.f32 %v4342, 1.0
      %v4387 = vadd.f32 %v4343, 1.0
      %v4388 = vadd.f32 %v4344, 1.0
      %v4389 = vadd.f32 %v4345, 1.0
      %v4390 = vadd.f32 %v4346, 1.0
      %v4391 = vadd.f32 %v4347, 1.0
      %v4392 = vadd.f32 %v4348, 1.0
      %v4393 = vadd.f32 %v4349, 1.0
      %v4394 = vadd.f32 %v4350, 1.0
      %v4395 = vadd.f32 %v4351, 1.0
      %v4396 = vadd.f32 %v4352, 1.0
      %v4397 = vadd.f32 %v4353, 1.0
      %v4398 = vadd.f32 %v4354, 1.0
      %v4399 = vadd.f32 %v4355, 1.0
      %v4400 = vadd.f32 %v4356, 1.0
      %v4401 = vpack.c.bf16 %v4358, %v4357
      %v4402 = vpack.c.bf16 %v4360, %v4359
      %v4403 = vpack.c.bf16 %v4362, %v4361
      %v4404 = vpack.c.bf16 %v4364, %v4363
      %v4405 = vpack.c.bf16 %v4366, %v4365
      %v4406 = vpack.c.bf16 %v4368, %v4367
      %v4407 = vpack.c.bf16 %v4370, %v4369
      %v4408 = vpack.c.bf16 %v4372, %v4371
      %v4409 = vpack.c.bf16 %v4374, %v4373
      %v4410 = vpack.c.bf16 %v4376, %v4375
      %v4411 = vpack.c.bf16 %v4378, %v4377
      %v4412 = vpack.c.bf16 %v4380, %v4379
      %v4413 = vpack.c.bf16 %v4382, %v4381
      %v4414 = vpack.c.bf16 %v4384, %v4383
      %v4415 = vpack.c.bf16 %v4386, %v4385
      %v4416 = vpack.c.bf16 %v4388, %v4387
      %v4417 = vpack.c.bf16 %v4390, %v4389
      %v4418 = vpack.c.bf16 %v4392, %v4391
      %v4419 = vpack.c.bf16 %v4394, %v4393
      %v4420 = vpack.c.bf16 %v4396, %v4395
      %v4421 = vpack.c.bf16 %v4398, %v4397
      %v4422 = vpack.c.bf16 %v4400, %v4399
      %v4423 = vunpack.c.l.bf16 %v3675
      %v4424 = vunpack.c.h.bf16 %v3675
      %v4425 = vunpack.c.l.bf16 %v3676
      %v4426 = vunpack.c.h.bf16 %v3676
      %v4427 = vunpack.c.l.bf16 %v3677
      %v4428 = vunpack.c.h.bf16 %v3677
      %v4429 = vunpack.c.l.bf16 %v3678
      %v4430 = vunpack.c.h.bf16 %v3678
      %v4431 = vunpack.c.l.bf16 %v3679
      %v4432 = vunpack.c.h.bf16 %v3679
      %v4433 = vunpack.c.l.bf16 %v3680
      %v4434 = vunpack.c.h.bf16 %v3680
      %v4435 = vunpack.c.l.bf16 %v3681
      %v4436 = vunpack.c.h.bf16 %v3681
      %v4437 = vunpack.c.l.bf16 %v3682
      %v4438 = vunpack.c.h.bf16 %v3682
      %v4439 = vunpack.c.l.bf16 %v3683
      %v4440 = vunpack.c.h.bf16 %v3683
      %v4441 = vunpack.c.l.bf16 %v3684
      %v4442 = vunpack.c.h.bf16 %v3684
      %v4443 = vunpack.c.l.bf16 %v3685
      %v4444 = vunpack.c.h.bf16 %v3685
      %v4445 = vunpack.c.l.bf16 %v3686
      %v4446 = vunpack.c.h.bf16 %v3686
      %v4447 = vunpack.c.l.bf16 %v3687
      %v4448 = vunpack.c.h.bf16 %v3687
      %v4449 = vunpack.c.l.bf16 %v3688
      %v4450 = vunpack.c.h.bf16 %v3688
      %v4451 = vunpack.c.l.bf16 %v3689
      %v4452 = vunpack.c.h.bf16 %v3689
      %v4453 = vunpack.c.l.bf16 %v3690
      %v4454 = vunpack.c.h.bf16 %v3690
      %v4455 = vunpack.c.l.bf16 %v3691
      %v4456 = vunpack.c.h.bf16 %v3691
      %v4457 = vunpack.c.l.bf16 %v3692
      %v4458 = vunpack.c.h.bf16 %v3692
      %v4459 = vunpack.c.l.bf16 %v3693
      %v4460 = vunpack.c.h.bf16 %v3693
      %v4461 = vunpack.c.l.bf16 %v3694
      %v4462 = vunpack.c.h.bf16 %v3694
      %v4463 = vunpack.c.l.bf16 %v3695
      %v4464 = vunpack.c.h.bf16 %v3695
      %v4465 = vunpack.c.l.bf16 %v3696
      %v4466 = vunpack.c.h.bf16 %v3696
      %v4467 = vunpack.c.l.bf16 %v4401
      %v4468 = vunpack.c.h.bf16 %v4401
      %v4469 = vunpack.c.l.bf16 %v4402
      %v4470 = vunpack.c.h.bf16 %v4402
      %v4471 = vunpack.c.l.bf16 %v4403
      %v4472 = vunpack.c.h.bf16 %v4403
      %v4473 = vunpack.c.l.bf16 %v4404
      %v4474 = vunpack.c.h.bf16 %v4404
      %v4475 = vunpack.c.l.bf16 %v4405
      %v4476 = vunpack.c.h.bf16 %v4405
      %v4477 = vunpack.c.l.bf16 %v4406
      %v4478 = vunpack.c.h.bf16 %v4406
      %v4479 = vunpack.c.l.bf16 %v4407
      %v4480 = vunpack.c.h.bf16 %v4407
      %v4481 = vunpack.c.l.bf16 %v4408
      %v4482 = vunpack.c.h.bf16 %v4408
      %v4483 = vunpack.c.l.bf16 %v4409
      %v4484 = vunpack.c.h.bf16 %v4409
      %v4485 = vunpack.c.l.bf16 %v4410
      %v4486 = vunpack.c.h.bf16 %v4410
      %v4487 = vunpack.c.l.bf16 %v4411
      %v4488 = vunpack.c.h.bf16 %v4411
      %v4489 = vunpack.c.l.bf16 %v4412
      %v4490 = vunpack.c.h.bf16 %v4412
      %v4491 = vunpack.c.l.bf16 %v4413
      %v4492 = vunpack.c.h.bf16 %v4413
      %v4493 = vunpack.c.l.bf16 %v4414
      %v4494 = vunpack.c.h.bf16 %v4414
      %v4495 = vunpack.c.l.bf16 %v4415
      %v4496 = vunpack.c.h.bf16 %v4415
      %v4497 = vunpack.c.l.bf16 %v4416
      %v4498 = vunpack.c.h.bf16 %v4416
      %v4499 = vunpack.c.l.bf16 %v4417
      %v4500 = vunpack.c.h.bf16 %v4417
      %v4501 = vunpack.c.l.bf16 %v4418
      %v4502 = vunpack.c.h.bf16 %v4418
      %v4503 = vunpack.c.l.bf16 %v4419
      %v4504 = vunpack.c.h.bf16 %v4419
      %v4505 = vunpack.c.l.bf16 %v4420
      %v4506 = vunpack.c.h.bf16 %v4420
      %v4507 = vunpack.c.l.bf16 %v4421
      %v4508 = vunpack.c.h.bf16 %v4421
      %v4509 = vunpack.c.l.bf16 %v4422
      %v4510 = vunpack.c.h.bf16 %v4422
      %v4511 = vmul.f32 %v4423, %v4467
      %v4512 = vmul.f32 %v4424, %v4468
      %v4513 = vmul.f32 %v4425, %v4469
      %v4514 = vmul.f32 %v4426, %v4470
      %v4515 = vmul.f32 %v4427, %v4471
      %v4516 = vmul.f32 %v4428, %v4472
      %v4517 = vmul.f32 %v4429, %v4473
      %v4518 = vmul.f32 %v4430, %v4474
      %v4519 = vmul.f32 %v4431, %v4475
      %v4520 = vmul.f32 %v4432, %v4476
      %v4521 = vmul.f32 %v4433, %v4477
      %v4522 = vmul.f32 %v4434, %v4478
      %v4523 = vmul.f32 %v4435, %v4479
      %v4524 = vmul.f32 %v4436, %v4480
      %v4525 = vmul.f32 %v4437, %v4481
      %v4526 = vmul.f32 %v4438, %v4482
      %v4527 = vmul.f32 %v4439, %v4483
      %v4528 = vmul.f32 %v4440, %v4484
      %v4529 = vmul.f32 %v4441, %v4485
      %v4530 = vmul.f32 %v4442, %v4486
      %v4531 = vmul.f32 %v4443, %v4487
      %v4532 = vmul.f32 %v4444, %v4488
      %v4533 = vmul.f32 %v4445, %v4489
      %v4534 = vmul.f32 %v4446, %v4490
      %v4535 = vmul.f32 %v4447, %v4491
      %v4536 = vmul.f32 %v4448, %v4492
      %v4537 = vmul.f32 %v4449, %v4493
      %v4538 = vmul.f32 %v4450, %v4494
      %v4539 = vmul.f32 %v4451, %v4495
      %v4540 = vmul.f32 %v4452, %v4496
      %v4541 = vmul.f32 %v4453, %v4497
      %v4542 = vmul.f32 %v4454, %v4498
      %v4543 = vmul.f32 %v4455, %v4499
      %v4544 = vmul.f32 %v4456, %v4500
      %v4545 = vmul.f32 %v4457, %v4501
      %v4546 = vmul.f32 %v4458, %v4502
      %v4547 = vmul.f32 %v4459, %v4503
      %v4548 = vmul.f32 %v4460, %v4504
      %v4549 = vmul.f32 %v4461, %v4505
      %v4550 = vmul.f32 %v4462, %v4506
      %v4551 = vmul.f32 %v4463, %v4507
      %v4552 = vmul.f32 %v4464, %v4508
      %v4553 = vmul.f32 %v4465, %v4509
      %v4554 = vmul.f32 %v4466, %v4510
      %v4555 = vpack.c.bf16 %v4515, %v4511
      %v4556 = vpack.c.bf16 %v4516, %v4512
      %v4557 = vpack.c.bf16 %v4517, %v4513
      %v4558 = vpack.c.bf16 %v4518, %v4514
      %v4559 = vpack.c.bf16 %v4523, %v4519
      %v4560 = vpack.c.bf16 %v4524, %v4520
      %v4561 = vpack.c.bf16 %v4525, %v4521
      %v4562 = vpack.c.bf16 %v4526, %v4522
      %v4563 = vpack.c.bf16 %v4531, %v4527
      %v4564 = vpack.c.bf16 %v4532, %v4528
      %v4565 = vpack.c.bf16 %v4533, %v4529
      %v4566 = vpack.c.bf16 %v4534, %v4530
      %v4567 = vpack.c.bf16 %v4539, %v4535
      %v4568 = vpack.c.bf16 %v4540, %v4536
      %v4569 = vpack.c.bf16 %v4541, %v4537
      %v4570 = vpack.c.bf16 %v4542, %v4538
      %v4571 = vpack.c.bf16 %v4547, %v4543
      %v4572 = vpack.c.bf16 %v4548, %v4544
      %v4573 = vpack.c.bf16 %v4549, %v4545
      %v4574 = vpack.c.bf16 %v4550, %v4546
      %v4575 = vpack.c.bf16 %v4551, %v4551
      %v4576 = vpack.c.bf16 %v4552, %v4552
      %v4577 = vpack.c.bf16 %v4553, %v4553
      %v4578 = vpack.c.bf16 %v4554, %v4554
      %v4579 = vld [vmem:[%s663] sm:$0xf]
      %v4580 = vld [vmem:[%s663 + $0x4] sm:$0xf]
      %v4581 = vld [vmem:[%s663 + $0x8] sm:$0xf]
      %v4582 = vld [vmem:[%s663 + $0xc] sm:$0xf]
      %v4583 = vld [vmem:[%s663 + $0x10] sm:$0xf]
      %v4584 = vld [vmem:[%s663 + $0x14] sm:$0xf]
      %v4585 = vld [vmem:[%s663 + $0x18] sm:$0xf]
      %v4586 = vld [vmem:[%s663 + $0x1c] sm:$0xf]
      %v4587 = vld [vmem:[%s663 + $0x20] sm:$0xf]
      %v4588 = vld [vmem:[%s663 + $0x24] sm:$0xf]
      %v4589 = vld [vmem:[%s663 + $0x28] sm:$0xf]
      %v4590 = vld [vmem:[%s663 + $0x2c] sm:$0xf]
      %v4591 = vld [vmem:[%s663 + $0x30] sm:$0xf]
      %v4592 = vld [vmem:[%s663 + $0x34] sm:$0xf]
      %v4593 = vld [vmem:[%s663 + $0x38] sm:$0xf]
      %v4594 = vld [vmem:[%s663 + $0x3c] sm:$0xf]
      %v4595 = vld [vmem:[%s663 + $0x40] sm:$0xf]
      %v4596 = vld [vmem:[%s663 + $0x44] sm:$0xf]
      %v4597 = vld [vmem:[%s663 + $0x48] sm:$0xf]
      %v4598 = vld [vmem:[%s663 + $0x4c] sm:$0xf]
      %v4599 = vld [vmem:[%s663 + $0x50] sm:$0xf]
      %v4600 = vld [vmem:[%s663 + $0x54] sm:$0xf]
      %v4601 = vld [vmem:[%s663 + $0x58] sm:$0xf]
      %v4602 = vld [vmem:[%s663 + $0x5c] sm:$0xf]
      %v4603 = vld [vmem:[%s663 + $0x60] sm:$0xf]
      %v4604 = vld [vmem:[%s663 + $0x64] sm:$0xf]
      %v4605 = vld [vmem:[%s663 + $0x68] sm:$0xf]
      %v4606 = vld [vmem:[%s663 + $0x6c] sm:$0xf]
      %v4607 = vld [vmem:[%s663 + $0x70] sm:$0xf]
      %v4608 = vld [vmem:[%s663 + $0x74] sm:$0xf]
      %v4609 = vld [vmem:[%s663 + $0x78] sm:$0xf]
      %v4610 = vld [vmem:[%s663 + $0x7c] sm:$0xf]
      %v4611 = vld [vmem:[%s663 + $0x80] sm:$0xf]
      %v4612 = vld [vmem:[%s663 + $0x84] sm:$0xf]
      %v4613 = vld [vmem:[%s663 + $0x88] sm:$0xf]
      %v4614 = vld [vmem:[%s663 + $0x8c] sm:$0xf]
      %v4615 = vld [vmem:[%s663 + $0x90] sm:$0xf]
      %v4616 = vld [vmem:[%s663 + $0x94] sm:$0xf]
      %v4617 = vld [vmem:[%s663 + $0x98] sm:$0xf]
      %v4618 = vld [vmem:[%s663 + $0x9c] sm:$0xf]
      %v4619 = vld [vmem:[%s663 + $0xa0] sm:$0xf]
      %v4620 = vld [vmem:[%s663 + $0xa4] sm:$0xf]
      %v4621 = vld [vmem:[%s663 + $0xa8] sm:$0xf]
      %v4622 = vld [vmem:[%s663 + $0xac] sm:$0xf]
      %v4623 = vld [vmem:[%s663 + $0xb0] sm:$0xf]
      %v4624 = vld [vmem:[%s663 + $0xb4] sm:$0xf]
      %v4625 = vld [vmem:[%s663 + $0xb8] sm:$0xf]
      %v4626 = vld [vmem:[%s663 + $0xbc] sm:$0xf]
      %v4627 = vld [vmem:[%s663 + $0xc0] sm:$0xf]
      %v4628 = vld [vmem:[%s663 + $0xc4] sm:$0xf]
      %v4629 = vld [vmem:[%s663 + $0xc8] sm:$0xf]
      %v4630 = vld [vmem:[%s663 + $0xcc] sm:$0xf]
      %v4631 = vld [vmem:[%s663 + $0xd0] sm:$0xf]
      %v4632 = vld [vmem:[%s663 + $0xd4] sm:$0xf]
      %v4633 = vld [vmem:[%s663 + $0xd8] sm:$0xf]
      %v4634 = vld [vmem:[%s663 + $0xdc] sm:$0xf]
      %v4635 = vld [vmem:[%s663 + $0xe0] sm:$0xf]
      %v4636 = vld [vmem:[%s663 + $0xe4] sm:$0xf]
      %v4637 = vld [vmem:[%s663 + $0xe8] sm:$0xf]
      %v4638 = vld [vmem:[%s663 + $0xec] sm:$0xf]
      %v4639 = vld [vmem:[%s663 + $0xf0] sm:$0xf]
      %v4640 = vld [vmem:[%s663 + $0xf4] sm:$0xf]
      %v4641 = vld [vmem:[%s663 + $0xf8] sm:$0xf]
      %v4642 = vld [vmem:[%s663 + $0xfc] sm:$0xf]
      %v4643 = vld [vmem:[%s666] sm:$0x1]
      %v4645 = vperm.slane %v4643, 0
      %v4711 = vunpack.c.l.b16 %v4579
      %v4712 = vunpack.c.l.b16 %v4580
      %v4713 = vunpack.c.l.b16 %v4581
      %v4714 = vunpack.c.l.b16 %v4582
      %v4715 = vunpack.c.l.b16 %v4583
      %v4716 = vunpack.c.l.b16 %v4584
      %v4717 = vunpack.c.l.b16 %v4585
      %v4718 = vunpack.c.l.b16 %v4586
      %v4719 = vunpack.c.l.b16 %v4587
      %v4720 = vunpack.c.l.b16 %v4588
      %v4721 = vunpack.c.l.b16 %v4589
      %v4722 = vunpack.c.l.b16 %v4590
      %v4723 = vunpack.c.l.b16 %v4591
      %v4724 = vunpack.c.l.b16 %v4592
      %v4725 = vunpack.c.l.b16 %v4593
      %v4726 = vunpack.c.l.b16 %v4594
      %v4727 = vunpack.c.l.b16 %v4595
      %v4728 = vunpack.c.l.b16 %v4596
      %v4729 = vunpack.c.l.b16 %v4597
      %v4730 = vunpack.c.l.b16 %v4598
      %v4731 = vunpack.c.l.b16 %v4599
      %v4732 = vunpack.c.l.b16 %v4600
      %v4733 = vunpack.c.l.b16 %v4601
      %v4734 = vunpack.c.l.b16 %v4602
      %v4735 = vunpack.c.l.b16 %v4603
      %v4736 = vunpack.c.l.b16 %v4604
      %v4737 = vunpack.c.l.b16 %v4605
      %v4738 = vunpack.c.l.b16 %v4606
      %v4739 = vunpack.c.l.b16 %v4607
      %v4740 = vunpack.c.l.b16 %v4608
      %v4741 = vunpack.c.l.b16 %v4609
      %v4742 = vunpack.c.l.b16 %v4610
      %v4743 = vunpack.c.l.b16 %v4611
      %v4744 = vunpack.c.l.b16 %v4612
      %v4745 = vunpack.c.l.b16 %v4613
      %v4746 = vunpack.c.l.b16 %v4614
      %v4747 = vunpack.c.l.b16 %v4615
      %v4748 = vunpack.c.l.b16 %v4616
      %v4749 = vunpack.c.l.b16 %v4617
      %v4750 = vunpack.c.l.b16 %v4618
      %v4751 = vunpack.c.l.b16 %v4619
      %v4752 = vunpack.c.l.b16 %v4620
      %v4753 = vunpack.c.l.b16 %v4621
      %v4754 = vunpack.c.l.b16 %v4622
      %v4755 = vunpack.c.l.b16 %v4623
      %v4756 = vunpack.c.l.b16 %v4624
      %v4757 = vunpack.c.l.b16 %v4625
      %v4758 = vunpack.c.l.b16 %v4626
      %v4759 = vunpack.c.l.b16 %v4627
      %v4760 = vunpack.c.l.b16 %v4628
      %v4761 = vunpack.c.l.b16 %v4629
      %v4762 = vunpack.c.l.b16 %v4630
      %v4763 = vunpack.c.l.b16 %v4631
      %v4764 = vunpack.c.l.b16 %v4632
      %v4765 = vunpack.c.l.b16 %v4633
      %v4766 = vunpack.c.l.b16 %v4634
      %v4767 = vunpack.c.l.b16 %v4635
      %v4768 = vunpack.c.l.b16 %v4636
      %v4769 = vunpack.c.l.b16 %v4637
      %v4770 = vunpack.c.l.b16 %v4638
      %v4771 = vunpack.c.l.b16 %v4639
      %v4772 = vunpack.c.l.b16 %v4640
      %v4773 = vunpack.c.l.b16 %v4641
      %v4774 = vunpack.c.l.b16 %v4642
      %v4775 = vpack.c.b16 %v4712, %v4711
      %v4776 = vpack.c.b16 %v4714, %v4713
      %v4777 = vpack.c.b16 %v4716, %v4715
      %v4778 = vpack.c.b16 %v4718, %v4717
      %v4779 = vpack.c.b16 %v4720, %v4719
      %v4780 = vpack.c.b16 %v4722, %v4721
      %v4781 = vpack.c.b16 %v4724, %v4723
      %v4782 = vpack.c.b16 %v4726, %v4725
      %v4783 = vpack.c.b16 %v4728, %v4727
      %v4784 = vpack.c.b16 %v4730, %v4729
      %v4785 = vpack.c.b16 %v4732, %v4731
      %v4786 = vpack.c.b16 %v4734, %v4733
      %v4787 = vpack.c.b16 %v4736, %v4735
      %v4788 = vpack.c.b16 %v4738, %v4737
      %v4789 = vpack.c.b16 %v4740, %v4739
      %v4790 = vpack.c.b16 %v4742, %v4741
      %v4791 = vpack.c.b16 %v4744, %v4743
      %v4792 = vpack.c.b16 %v4746, %v4745
      %v4793 = vpack.c.b16 %v4748, %v4747
      %v4794 = vpack.c.b16 %v4750, %v4749
      %v4795 = vpack.c.b16 %v4752, %v4751
      %v4796 = vpack.c.b16 %v4754, %v4753
      %v4797 = vpack.c.b16 %v4756, %v4755
      %v4798 = vpack.c.b16 %v4758, %v4757
      %v4799 = vpack.c.b16 %v4760, %v4759
      %v4800 = vpack.c.b16 %v4762, %v4761
      %v4801 = vpack.c.b16 %v4764, %v4763
      %v4802 = vpack.c.b16 %v4766, %v4765
      %v4803 = vpack.c.b16 %v4768, %v4767
      %v4804 = vpack.c.b16 %v4770, %v4769
      %v4805 = vpack.c.b16 %v4772, %v4771
      %v4806 = vpack.c.b16 %v4774, %v4773
      %4839 = vmatpush.bf16.msra.mxu0 %v4782
      %4840 = vmatpush.bf16.msra.mxu0 %v4781
      %4841 = vmatpush.bf16.msra.mxu0 %v4780
      %4842 = vmatpush.bf16.msra.mxu0 %v4779
      %4843 = vmatpush.bf16.msra.mxu0 %v4778
      %4844 = vmatpush.bf16.msra.mxu0 %v4777
      %4845 = vmatpush.bf16.msra.mxu0 %v4776
      %4846 = vmatpush.bf16.msra.mxu0 %v4775
      %4847 = vmatmul.bf16.gmra.mxu0 %v4555
      %v4848 = vpop.f32.mrf.mxu0
      %v4849 = vadd.f32 %v4645, %v4848
      %v4850 = vpop.f32.mrf.mxu0
      %v4851 = vadd.f32 %v4645, %v4850
      %4852 = vmatmul.bf16.gmra.mxu0 %v4559
      %v4853 = vpop.f32.mrf.mxu0
      %v4854 = vadd.f32 %v4645, %v4853
      %v4855 = vpop.f32.mrf.mxu0
      %v4856 = vadd.f32 %v4645, %v4855
      %4857 = vmatmul.bf16.gmra.mxu0 %v4563
      %v4858 = vpop.f32.mrf.mxu0
      %v4859 = vadd.f32 %v4645, %v4858
      %v4860 = vpop.f32.mrf.mxu0
      %v4861 = vadd.f32 %v4645, %v4860
      %4862 = vmatmul.bf16.gmra.mxu0 %v4567
      %v4863 = vpop.f32.mrf.mxu0
      %v4864 = vadd.f32 %v4645, %v4863
      %v4865 = vpop.f32.mrf.mxu0
      %v4866 = vadd.f32 %v4645, %v4865
      %4867 = vmatmul.bf16.gmra.mxu0 %v4571
      %v4868 = vpop.f32.mrf.mxu0
      %v4869 = vadd.f32 %v4645, %v4868
      %v4870 = vpop.f32.mrf.mxu0
      %v4871 = vadd.f32 %v4645, %v4870
      %4872 = vmatmul.bf16.gmra.mxu0 %v4575
      %v4873 = vpop.f32.mrf.mxu0
      %v4874 = vadd.f32 %v4645, %v4873
      %v4875 = vpop.f32.mrf.mxu0
      %4876 = vdwg.mxu0
      %4877 = vmatpush.bf16.msra.mxu0 %v4790
      %4878 = vmatpush.bf16.msra.mxu0 %v4789
      %4879 = vmatpush.bf16.msra.mxu0 %v4788
      %4880 = vmatpush.bf16.msra.mxu0 %v4787
      %4881 = vmatpush.bf16.msra.mxu0 %v4786
      %4882 = vmatpush.bf16.msra.mxu0 %v4785
      %4883 = vmatpush.bf16.msra.mxu0 %v4784
      %4884 = vmatpush.bf16.msra.mxu0 %v4783
      %4885 = vmatmul.bf16.gmra.mxu0 %v4556
      %v4886 = vpop.f32.mrf.mxu0
      %v4887 = vadd.f32 %v4849, %v4886
      %v4888 = vpop.f32.mrf.mxu0
      %v4889 = vadd.f32 %v4851, %v4888
      %4890 = vmatmul.bf16.gmra.mxu0 %v4560
      %v4891 = vpop.f32.mrf.mxu0
      %v4892 = vadd.f32 %v4854, %v4891
      %v4893 = vpop.f32.mrf.mxu0
      %v4894 = vadd.f32 %v4856, %v4893
      %4895 = vmatmul.bf16.gmra.mxu0 %v4564
      %v4896 = vpop.f32.mrf.mxu0
      %v4897 = vadd.f32 %v4859, %v4896
      %v4898 = vpop.f32.mrf.mxu0
      %v4899 = vadd.f32 %v4861, %v4898
      %4900 = vmatmul.bf16.gmra.mxu0 %v4568
      %v4901 = vpop.f32.mrf.mxu0
      %v4902 = vadd.f32 %v4864, %v4901
      %v4903 = vpop.f32.mrf.mxu0
      %v4904 = vadd.f32 %v4866, %v4903
      %4905 = vmatmul.bf16.gmra.mxu0 %v4572
      %v4906 = vpop.f32.mrf.mxu0
      %v4907 = vadd.f32 %v4869, %v4906
      %v4908 = vpop.f32.mrf.mxu0
      %v4909 = vadd.f32 %v4871, %v4908
      %4910 = vmatmul.bf16.gmra.mxu0 %v4576
      %v4911 = vpop.f32.mrf.mxu0
      %v4912 = vadd.f32 %v4874, %v4911
      %v4913 = vpop.f32.mrf.mxu0
      %4914 = vdwg.mxu0
      %4915 = vmatpush.bf16.msra.mxu0 %v4798
      %4916 = vmatpush.bf16.msra.mxu0 %v4797
      %4917 = vmatpush.bf16.msra.mxu0 %v4796
      %4918 = vmatpush.bf16.msra.mxu0 %v4795
      %4919 = vmatpush.bf16.msra.mxu0 %v4794
      %4920 = vmatpush.bf16.msra.mxu0 %v4793
      %4921 = vmatpush.bf16.msra.mxu0 %v4792
      %4922 = vmatpush.bf16.msra.mxu0 %v4791
      %4923 = vmatmul.bf16.gmra.mxu0 %v4557
      %v4924 = vpop.f32.mrf.mxu0
      %v4925 = vadd.f32 %v4887, %v4924
      %v4926 = vpop.f32.mrf.mxu0
      %v4927 = vadd.f32 %v4889, %v4926
      %4928 = vmatmul.bf16.gmra.mxu0 %v4561
      %v4929 = vpop.f32.mrf.mxu0
      %v4930 = vadd.f32 %v4892, %v4929
      %v4931 = vpop.f32.mrf.mxu0
      %v4932 = vadd.f32 %v4894, %v4931
      %4933 = vmatmul.bf16.gmra.mxu0 %v4565
      %v4934 = vpop.f32.mrf.mxu0
      %v4935 = vadd.f32 %v4897, %v4934
      %v4936 = vpop.f32.mrf.mxu0
      %v4937 = vadd.f32 %v4899, %v4936
      %4938 = vmatmul.bf16.gmra.mxu0 %v4569
      %v4939 = vpop.f32.mrf.mxu0
      %v4940 = vadd.f32 %v4902, %v4939
      %v4941 = vpop.f32.mrf.mxu0
      %v4942 = vadd.f32 %v4904, %v4941
      %4943 = vmatmul.bf16.gmra.mxu0 %v4573
      %v4944 = vpop.f32.mrf.mxu0
      %v4945 = vadd.f32 %v4907, %v4944
      %v4946 = vpop.f32.mrf.mxu0
      %v4947 = vadd.f32 %v4909, %v4946
      %4948 = vmatmul.bf16.gmra.mxu0 %v4577
      %v4949 = vpop.f32.mrf.mxu0
      %v4950 = vadd.f32 %v4912, %v4949
      %v4951 = vpop.f32.mrf.mxu0
      %4952 = vdwg.mxu0
      %4953 = vmatpush.bf16.msra.mxu0 %v4806
      %4954 = vmatpush.bf16.msra.mxu0 %v4805
      %4955 = vmatpush.bf16.msra.mxu0 %v4804
      %4956 = vmatpush.bf16.msra.mxu0 %v4803
      %4957 = vmatpush.bf16.msra.mxu0 %v4802
      %4958 = vmatpush.bf16.msra.mxu0 %v4801
      %4959 = vmatpush.bf16.msra.mxu0 %v4800
      %4960 = vmatpush.bf16.msra.mxu0 %v4799
      %4961 = vmatmul.bf16.gmra.mxu0 %v4558
      %v4962 = vpop.f32.mrf.mxu0
      %v4963 = vadd.f32 %v4925, %v4962
      %v4964 = vpop.f32.mrf.mxu0
      %v4965 = vadd.f32 %v4927, %v4964
      %4966 = vmatmul.bf16.gmra.mxu0 %v4562
      %v4967 = vpop.f32.mrf.mxu0
      %v4968 = vadd.f32 %v4930, %v4967
      %v4969 = vpop.f32.mrf.mxu0
      %v4970 = vadd.f32 %v4932, %v4969
      %4971 = vmatmul.bf16.gmra.mxu0 %v4566
      %v4972 = vpop.f32.mrf.mxu0
      %v4973 = vadd.f32 %v4935, %v4972
      %v4974 = vpop.f32.mrf.mxu0
      %v4975 = vadd.f32 %v4937, %v4974
      %4976 = vmatmul.bf16.gmra.mxu0 %v4570
      %v4977 = vpop.f32.mrf.mxu0
      %v4978 = vadd.f32 %v4940, %v4977
      %v4979 = vpop.f32.mrf.mxu0
      %v4980 = vadd.f32 %v4942, %v4979
      %4981 = vmatmul.bf16.gmra.mxu0 %v4574
      %v4982 = vpop.f32.mrf.mxu0
      %v4983 = vadd.f32 %v4945, %v4982
      %v4984 = vpop.f32.mrf.mxu0
      %v4985 = vadd.f32 %v4947, %v4984
      %4986 = vmatmul.bf16.gmra.mxu0 %v4578
      %v4987 = vpop.f32.mrf.mxu0
      %v4988 = vadd.f32 %v4950, %v4987
      %v4989 = vpop.f32.mrf.mxu0
      %4990 = vdwg.mxu0
      %v4991 = vadd.f32 %v698, %v3200
      %v4992 = vadd.f32 %v699, %v3201
      %v4993 = vadd.f32 %v700, %v3202
      %v4994 = vadd.f32 %v701, %v3203
      %v4995 = vadd.f32 %v702, %v3204
      %v4996 = vadd.f32 %v703, %v3205
      %v4997 = vadd.f32 %v704, %v3206
      %v4998 = vadd.f32 %v705, %v3207
      %v4999 = vadd.f32 %v706, %v3208
      %v5000 = vadd.f32 %v707, %v3209
      %v5001 = vadd.f32 %v708, %v3210
      %v5002 = vadd.f32 %v4991, %v4963
      %v5003 = vadd.f32 %v4992, %v4965
      %v5004 = vadd.f32 %v4993, %v4968
      %v5005 = vadd.f32 %v4994, %v4970
      %v5006 = vadd.f32 %v4995, %v4973
      %v5007 = vadd.f32 %v4996, %v4975
      %v5008 = vadd.f32 %v4997, %v4978
      %v5009 = vadd.f32 %v4998, %v4980
      %v5010 = vadd.f32 %v4999, %v4983
      %v5011 = vadd.f32 %v5000, %v4985
      %v5012 = vadd.f32 %v5001, %v4988
      %5013 = vst [vmem:[#allocation2] sm:$0xff] %v5002
      %5014 = vst [vmem:[#allocation2 + $0x8] sm:$0xff] %v5003
      %5015 = vst [vmem:[#allocation2 + $0x10] sm:$0xff] %v5004
      %5016 = vst [vmem:[#allocation2 + $0x18] sm:$0xff] %v5005
      %5017 = vst [vmem:[#allocation2 + $0x20] sm:$0xff] %v5006
      %5018 = vst [vmem:[#allocation2 + $0x28] sm:$0xff] %v5007
      %5019 = vst [vmem:[#allocation2 + $0x30] sm:$0xff] %v5008
      %5020 = vst [vmem:[#allocation2 + $0x38] sm:$0xff] %v5009
      %5021 = vst [vmem:[#allocation2 + $0x40] sm:$0xff] %v5010
      %5022 = vst [vmem:[#allocation2 + $0x48] sm:$0xff] %v5011
      %5023 = vst [vmem:[#allocation2 + $0x50] sm:$0xff] %v5012
      %p5024 = scmp.eq.s32.totalorder %s32, 1
      // Predicated region
      $region89: #{model_forward.1} parent=83 // pred_check
        %p5025 = pneg %p5024
      $region90: #{model_forward.1} parent=83 // pred_check_branch
        %5027 = sbr.rel (%p5025) target = $region92
      $region91: #{model_forward.1} parent=83 // pred_region
        %vm5028 = vcmask 1040384
        %v5029 = vsel %vm5028, %v5012, 0.0
        %5030 = vadd.xlane.f32.xlu0 %v5029
        %v5031 = vpop.xlane.xlu0 %5030
        %v5032 = vmul.f32 %v5031, %v737
        %v5033 = vsub.f32 %v5012, %v5032
        %v5034 = vmul.f32 %v5033, %v5033
        %v5035 = vsel %vm5028, %v5034, 0.0
        %5036 = vadd.xlane.f32.xlu0 %v5035
        %v5037 = vpop.xlane.xlu0 %5036
        %v5038 = vmul.f32 %v5037, %v737
        %v5039 = vadd.f32 %v5038, 1e-05
        %v5040 = vrsqrt.pop %v5039
        %v5041 = vmul.f32 %v5040, %v5039
        %v5042 = vmul.f32 %v5041, %v5040
        %v5043 = vmul.f32 0.5, %v5042
        %v5044 = vsub.f32 1.5, %v5043
        %v5045 = vmul.f32 %v5040, %v5044
        %vm5046 = vweird.f32 %v5039
        %vm5047 = vweird.f32 %v5040
        %vm5048 = vmor %vm5046, %vm5047
        %v5049 = vsel %vm5048, %v5040, %v5045
        %v5050 = vmul.f32 %v5033, %v5049
        %v5051 = vld [vmem:[%s12] sm:$0x1]
        %v5052 = vmul.f32 %v5050, %v5051
        %v5053 = vld [vmem:[%s13] sm:$0x1]
        %v5054 = vadd.f32 %v5052, %v5053
        %v5055 = vld [vmem:[%s14] sm:$0xff]
        %v5056 = vld [vmem:[%s14 + $0x8] sm:$0xff]
        %v5057 = vld [vmem:[%s14 + $0x10] sm:$0xff]
        %v5058 = vld [vmem:[%s14 + $0x18] sm:$0xff]
        %v5059 = vld [vmem:[%s14 + $0x20] sm:$0xff]
        %v5060 = vld [vmem:[%s14 + $0x28] sm:$0xff]
        %v5061 = vld [vmem:[%s14 + $0x30] sm:$0xff]
        %v5062 = vld [vmem:[%s14 + $0x38] sm:$0xff]
        %v5063 = vld [vmem:[%s14 + $0x40] sm:$0xff]
        %v5064 = vld [vmem:[%s14 + $0x48] sm:$0xff]
        %v5065 = vld [vmem:[%s14 + $0x50] sm:$0xff]
        %v5066 = vld [vmem:[%s14 + $0x58] sm:$0xff]
        %v5067 = vld [vmem:[%s14 + $0x60] sm:$0xff]
        %v5068 = vld [vmem:[%s14 + $0x68] sm:$0xff]
        %v5069 = vld [vmem:[%s14 + $0x70] sm:$0xff]
        %v5070 = vld [vmem:[%s14 + $0x78] sm:$0xff]
        %v5071 = vld [vmem:[%s15] sm:$0x1]
        %5072 = vmatpush.msra.mxu0 %v5070
        %5073 = vmatpush.msra.mxu0 %v5069
        %5074 = vmatpush.msra.mxu0 %v5068
        %5075 = vmatpush.msra.mxu0 %v5067
        %5076 = vmatpush.msra.mxu0 %v5066
        %5077 = vmatpush.msra.mxu0 %v5065
        %5078 = vmatpush.msra.mxu0 %v5064
        %5079 = vmatpush.msra.mxu0 %v5063
        %5080 = vmatpush.msra.mxu0 %v5062
        %5081 = vmatpush.msra.mxu0 %v5061
        %5082 = vmatpush.msra.mxu0 %v5060
        %5083 = vmatpush.msra.mxu0 %v5059
        %5084 = vmatpush.msra.mxu0 %v5058
        %5085 = vmatpush.msra.mxu0 %v5057
        %5086 = vmatpush.msra.mxu0 %v5056
        %5087 = vmatpush.msra.mxu0 %v5055
        %5088 = vmatmul.f32.gmra.mxu0 %v5054
        %v5089 = vpop.f32.mrf.mxu0
        %v5090 = vadd.f32 %v5071, %v5089
        %5091 = vdwg.mxu0
        %v5092 = vperm.slane %v5090, 0
        %5093 = vst [vmem:[%s670] sm:$0xff] %v5092
      $region92: #{model_forward.1} parent=83 // pred_fallthru
        _
      %p5094 = scmp.lt.s32.totalorder %s31, 1
      %s5095 = scalar_select %p5094, %s31, 1
      %s5096 = smul.addr %s5095, 8
      %s5097 = scalar_lea.vmem %s16, %s5096
      // Predicated region
      $region93: #{model_forward.1} parent=83 // pred_check
        %p5098 = pneg %p438
      $region94: #{model_forward.1} parent=83 // pred_check_branch
        %5100 = sbr.rel (%p5098) target = $region96
      $region95: #{model_forward.1} parent=83 // pred_region
        _
      $region96: #{model_forward.1} parent=83 // pred_fallthru
        _
    $region84: #{model_forward.1} parent=5 // pred_fallthru
      _
    %p5101 = scmp.le.s32.totalorder 2, %s22
    // Predicated region
    $region97: #{model_forward.1} parent=5 // pred_check
      %p5102 = pneg %p5101
    $region98: #{model_forward.1} parent=5 // pred_check_branch
      %5104 = sbr.rel (%p5102) target = $region100
    $region99: #{model_forward.1} parent=5 // pred_region
      %s5105 = ssub.s32 %s22, 2
      // Predicated region
      $region101: #{model_forward.1} parent=99 // pred_check
        %p5106 = pneg %p444
      $region102: #{model_forward.1} parent=99 // pred_check_branch
        %5108 = sbr.rel (%p5106) target = $region104
      $region103: #{model_forward.1} parent=99 // pred_region
        %p5109 = scmp.lt.s32.totalorder %s33, 1
        %s5110 = scalar_select %p5109, %s33, 1
        %s5111 = smul.addr %s5110, 8
        %s5112 = scalar_lea.vmem %s16, %s5111
      $region104: #{model_forward.1} parent=99 // pred_fallthru
        _
    $region100: #{model_forward.1} parent=5 // pred_fallthru
      _
  $region6: #{model_forward.1} parent=0 // loop_footer
    %s26 = sadd.s32 1, %s22
  $region7: #{model_forward.1} parent=0 // loop_footer_branch
    %21 = sbr.rel target = $region3
  $region8: #{model_forward.1} parent=0 // loop_exit
    _

</llo_original>
